<compile_context>
chip_gen: v5e
topology: v5e:2x2
jax: 0.10.0
libtpu: 0.0.40
codegen_flags: <defaults>
</compile_context>

<pallas_src>
import math
import functools

import jax
import jax.numpy as jnp
from jax.experimental import pallas as pl
from jax.experimental.pallas import tpu as pltpu


# ----------------------------- fused encoder kernel -----------------------------

def _encoder_kernel(z1_ref, x3_ref,
                    ln1_g, ln1_b, ln2_g, ln2_b, ln3_g, ln3_b,
                    a3_wqkv, a3_bqkv, a3_wo, a3_bo,
                    a2_wqkv, a2_bqkv, a2_wo, a2_bo,
                    f_w1, f_b1, f_w2, f_b2,
                    out_ref, *, heads, d_k):
    f32 = jnp.float32
    scale = 1.0 / math.sqrt(d_k)

    def layer_norm(x, g_ref, b_ref):
        mean = jnp.mean(x, axis=-1, keepdims=True)
        xc = x - mean
        var = jnp.mean(xc * xc, axis=-1, keepdims=True)
        return xc * jax.lax.rsqrt(var + 1e-5) * g_ref[...] + b_ref[...]  # PyTorch eps=1e-5

    def mha(xq, xkv, wqkv_ref, bqkv_ref, wo_ref, bo_ref):
        # wqkv_ref: (3H, D, dk) with q heads [0:H], k heads [H:2H], v heads [2H:3H]
        # wo_ref:   (H, dk, D)  -> concat(heads) @ Wo == sum_h head_h @ wo_ref[h]
        acc = None
        for h in range(heads):  # static unroll; heads is tiny
            qh = jnp.dot(xq, wqkv_ref[h], preferred_element_type=f32) + bqkv_ref[h]
            kh = jnp.dot(xkv, wqkv_ref[heads + h], preferred_element_type=f32) + bqkv_ref[heads + h]
            vh = jnp.dot(xkv, wqkv_ref[2 * heads + h], preferred_element_type=f32) + bqkv_ref[2 * heads + h]
            # scores: contract over d_k directly (no explicit kh.T materialization)
            s = jax.lax.dot_general(qh, kh, (((1,), (1,)), ((), ())),
                                    preferred_element_type=f32) * scale
            s = s - jnp.max(s, axis=-1, keepdims=True)
            p = jnp.exp(s)
            p = p * pl.reciprocal(jnp.sum(p, axis=-1, keepdims=True), approx=True)
            oh = jnp.dot(p, vh, preferred_element_type=f32)
            ph = jnp.dot(oh, wo_ref[h], preferred_element_type=f32)
            acc = ph if acc is None else acc + ph
        return acc + bo_ref[...]

    def ffn(x):
        h = jnp.dot(x, f_w1[...], preferred_element_type=f32) + f_b1[...]
        # exact erf-based GELU (matches the reference gelu())
        h = h * 0.5 * (1.0 + jax.lax.erf(h * (1.0 / math.sqrt(2.0))))
        return jnp.dot(h, f_w2[...], preferred_element_type=f32) + f_b2[...]

    z1 = z1_ref[...].astype(f32)   # (Lz, D) = concat(input1, input2) row block for this batch
    x3 = x3_ref[...].astype(f32)   # (L3, D)

    z = layer_norm(z1, ln1_g, ln1_b)
    z1 = z1 + mha(z, z, a3_wqkv, a3_bqkv, a3_wo, a3_bo)      # attn_3 self-attention
    z1 = ffn(z1)                                             # ff2 (no residual, as in the spec)
    z = layer_norm(z1, ln2_g, ln2_b)
    z2 = z1 + mha(z, x3, a2_wqkv, a2_bqkv, a2_wo, a2_bo)     # attn_2 cross-attention w/ input3
    z = layer_norm(z2, ln3_g, ln3_b)
    z2 = z2 + mha(z, z, a3_wqkv, a3_bqkv, a3_wo, a3_bo)      # attn_3 again (shared weights)
    z2 = ffn(z2)                                             # ff2 again (shared weights)

    out_ref[...] = z2.astype(out_ref.dtype)


# ----------------------------- wrapper: weight packing + pallas_call -----------------------------

def _pack_mha(p, heads):
    """Pack (D,D) q/k/v/out weights into per-head slabs so no lane slicing is needed in-kernel."""
    D = p["q"]["w"].shape[0]
    dk = D // heads

    def w_heads(w):                         # (D, D) -> (H, D, dk): head h = columns h*dk:(h+1)*dk
        return w.reshape(D, heads, dk).transpose(1, 0, 2)

    def b_heads(b):                         # (D,) -> (H, 1, dk)
        return b.reshape(heads, 1, dk)

    wqkv = jnp.concatenate([w_heads(p["q"]["w"]), w_heads(p["k"]["w"]), w_heads(p["v"]["w"])],
                           axis=0)                                   # (3H, D, dk)
    bqkv = jnp.concatenate([b_heads(p["q"]["b"]), b_heads(p["k"]["b"]), b_heads(p["v"]["b"])],
                           axis=0)                                   # (3H, 1, dk)
    wo = p["o"]["w"].reshape(heads, dk, D)                           # (H, dk, D): rows h*dk:(h+1)*dk
    bo = p["o"]["b"].reshape(1, D)
    return wqkv, bqkv, wo, bo


def transformer_encoder1_forward(params, input1, input2, input3, *, heads):
    B, L1, D = input1.shape
    L2, L3 = input2.shape[1], input3.shape[1]
    Lz = L1 + L2
    dk = D // heads
    H4 = 4 * D

    z1 = jnp.concatenate([input1, input2], axis=1)                   # (B, Lz, D)

    a3 = _pack_mha(params["attn_3"], heads)
    a2 = _pack_mha(params["attn_2"], heads)
    ff = params["ff2"]

    args = (
        z1, input3,
        params["norm_1"]["g"].reshape(1, D), params["norm_1"]["b"].reshape(1, D),
        params["norm_2"]["g"].reshape(1, D), params["norm_2"]["b"].reshape(1, D),
        params["norm_3"]["g"].reshape(1, D), params["norm_3"]["b"].reshape(1, D),
        *a3, *a2,
        ff["fc1"]["w"], ff["fc1"]["b"].reshape(1, H4),
        ff["fc2"]["w"], ff["fc2"]["b"].reshape(1, D),
    )

    def fixed(shape):
        idx = (0,) * len(shape)
        return pl.BlockSpec(shape, lambda b, _idx=idx: _idx)

    in_specs = [
        pl.BlockSpec((None, Lz, D), lambda b: (b, 0, 0)),            # z1 (per-batch block)
        pl.BlockSpec((None, L3, D), lambda b: (b, 0, 0)),            # input3
        fixed((1, D)), fixed((1, D)),                                # norm_1
        fixed((1, D)), fixed((1, D)),                                # norm_2
        fixed((1, D)), fixed((1, D)),                                # norm_3
        fixed((3 * heads, D, dk)), fixed((3 * heads, 1, dk)),        # attn_3 qkv
        fixed((heads, dk, D)), fixed((1, D)),                        # attn_3 out proj
        fixed((3 * heads, D, dk)), fixed((3 * heads, 1, dk)),        # attn_2 qkv
        fixed((heads, dk, D)), fixed((1, D)),                        # attn_2 out proj
        fixed((D, H4)), fixed((1, H4)),                              # ff2 fc1
        fixed((H4, D)), fixed((1, D)),                               # ff2 fc2
    ]

    # rough advisory cost estimate for XLA's scheduler
    def mha_flops(Lq, Lk):
        return 2 * Lq * D * D + 4 * Lk * D * D + 4 * Lq * Lk * D + 2 * Lq * D * D
    ffn_flops = 4 * Lz * D * H4
    flops = B * (2 * mha_flops(Lz, Lz) + mha_flops(Lz, L3) + 2 * ffn_flops)
    transc = B * (heads * (2 * Lz * Lz + Lz * L3) + 2 * Lz * H4 + 6 * Lz)
    nbytes = sum(int(a.size) * 4 for a in args) + B * Lz * D * 4

    return pl.pallas_call(
        functools.partial(_encoder_kernel, heads=heads, d_k=dk),
        out_shape=jax.ShapeDtypeStruct((B, Lz, D), jnp.float32),
        grid=(B,),
        in_specs=in_specs,
        out_specs=pl.BlockSpec((None, Lz, D), lambda b: (b, 0, 0)),
        compiler_params=pltpu.CompilerParams(dimension_semantics=("parallel",)),
        cost_estimate=pl.CostEstimate(flops=flops, transcendentals=transc,
                                      bytes_accessed=nbytes),
    )(*args)


# ----------------------------- deterministic parameter init -----------------------------

def _init_linear(key, din, dout):
    k1, k2 = jax.random.split(key)
    bound = 1.0 / math.sqrt(din)
    return {"w": jax.random.uniform(k1, (din, dout), jnp.float32, -bound, bound),
            "b": jax.random.uniform(k2, (dout,), jnp.float32, -bound, bound)}


def _init_ln(d):
    return {"g": jnp.ones((d,), jnp.float32), "b": jnp.zeros((d,), jnp.float32)}


def _init_mha(key, d):
    ks = jax.random.split(key, 4)
    return {"q": _init_linear(ks[0], d, d), "k": _init_linear(ks[1], d, d),
            "v": _init_linear(ks[2], d, d), "o": _init_linear(ks[3], d, d)}


def _init_ff(key, d):
    k1, k2 = jax.random.split(key)
    return {"fc1": _init_linear(k1, d, 4 * d), "fc2": _init_linear(k2, 4 * d, d)}


def init_params(key, d_model):
    # Only the submodules Transformer_Encoder1.forward actually uses
    # (norm_1..3, attn_2, attn_3, ff2); attn_1/attn_4/ff1/ff3/ff4/norm_4 are dead code.
    k2, k3, kf = jax.random.split(key, 3)
    return {"norm_1": _init_ln(d_model), "norm_2": _init_ln(d_model), "norm_3": _init_ln(d_model),
            "attn_2": _init_mha(k2, d_model), "attn_3": _init_mha(k3, d_model),
            "ff2": _init_ff(kf, d_model)}


# ----------------------------- main -----------------------------

if __name__ == "__main__":
    B, L1, L2, L3 = 2, 8, 8, 8
    d_model, heads = 32, 4

    key = jax.random.PRNGKey(0)
    kp, k1, k2, k3 = jax.random.split(key, 4)
    params = init_params(kp, d_model)

    input1 = jax.random.normal(k1, (B, L1, d_model), jnp.float32)
    input2 = jax.random.normal(k2, (B, L2, d_model), jnp.float32)
    input3 = jax.random.normal(k3, (B, L3, d_model), jnp.float32)

    fwd = jax.jit(functools.partial(transformer_encoder1_forward, heads=heads))
    out = fwd(params, input1, input2, input3)
    jax.block_until_ready(out)

    assert out.shape == (B, L1 + L2, d_model)
    assert bool(jnp.all(jnp.isfinite(out)))
    print("KERNEL_OK")
</pallas_src>

<mosaic_0001>
module attributes {stable_mosaic.version = 11 : i64} {
  func.func @_encoder_kernel(%arg0: i32, %arg1: memref<1x16x32xf32, #tpu.memory_space<vmem>>, %arg2: memref<1x8x32xf32, #tpu.memory_space<vmem>>, %arg3: memref<1x32xf32, #tpu.memory_space<vmem>>, %arg4: memref<1x32xf32, #tpu.memory_space<vmem>>, %arg5: memref<1x32xf32, #tpu.memory_space<vmem>>, %arg6: memref<1x32xf32, #tpu.memory_space<vmem>>, %arg7: memref<1x32xf32, #tpu.memory_space<vmem>>, %arg8: memref<1x32xf32, #tpu.memory_space<vmem>>, %arg9: memref<12x32x8xf32, #tpu.memory_space<vmem>>, %arg10: memref<12x1x8xf32, #tpu.memory_space<vmem>>, %arg11: memref<4x8x32xf32, #tpu.memory_space<vmem>>, %arg12: memref<1x32xf32, #tpu.memory_space<vmem>>, %arg13: memref<12x32x8xf32, #tpu.memory_space<vmem>>, %arg14: memref<12x1x8xf32, #tpu.memory_space<vmem>>, %arg15: memref<4x8x32xf32, #tpu.memory_space<vmem>>, %arg16: memref<1x32xf32, #tpu.memory_space<vmem>>, %arg17: memref<32x128xf32, #tpu.memory_space<vmem>>, %arg18: memref<1x128xf32, #tpu.memory_space<vmem>>, %arg19: memref<128x32xf32, #tpu.memory_space<vmem>>, %arg20: memref<1x32xf32, #tpu.memory_space<vmem>>, %arg21: memref<1x16x32xf32, #tpu.memory_space<vmem>>) attributes {dimension_semantics = [#tpu.dimension_semantics<parallel>], iteration_bounds = array<i64: 2>, scalar_prefetch = 0 : i64, scratch_operands = 0 : i64, tpu.core_type = #tpu.core_type<tc>, window_params = [{transform_indices = @transform_0, window_bounds = array<i64: 1, 16, 32>}, {transform_indices = @transform_1, window_bounds = array<i64: 1, 8, 32>}, {pipeline_mode = #tpu.pipeline_mode<synchronous>, transform_indices = @transform_2, window_bounds = array<i64: 1, 32>}, {pipeline_mode = #tpu.pipeline_mode<synchronous>, transform_indices = @transform_3, window_bounds = array<i64: 1, 32>}, {pipeline_mode = #tpu.pipeline_mode<synchronous>, transform_indices = @transform_4, window_bounds = array<i64: 1, 32>}, {pipeline_mode = #tpu.pipeline_mode<synchronous>, transform_indices = @transform_5, window_bounds = array<i64: 1, 32>}, {pipeline_mode = #tpu.pipeline_mode<synchronous>, transform_indices = @transform_6, window_bounds = array<i64: 1, 32>}, {pipeline_mode = #tpu.pipeline_mode<synchronous>, transform_indices = @transform_7, window_bounds = array<i64: 1, 32>}, {pipeline_mode = #tpu.pipeline_mode<synchronous>, transform_indices = @transform_8, window_bounds = array<i64: 12, 32, 8>}, {pipeline_mode = #tpu.pipeline_mode<synchronous>, transform_indices = @transform_9, window_bounds = array<i64: 12, 1, 8>}, {pipeline_mode = #tpu.pipeline_mode<synchronous>, transform_indices = @transform_10, window_bounds = array<i64: 4, 8, 32>}, {pipeline_mode = #tpu.pipeline_mode<synchronous>, transform_indices = @transform_11, window_bounds = array<i64: 1, 32>}, {pipeline_mode = #tpu.pipeline_mode<synchronous>, transform_indices = @transform_12, window_bounds = array<i64: 12, 32, 8>}, {pipeline_mode = #tpu.pipeline_mode<synchronous>, transform_indices = @transform_13, window_bounds = array<i64: 12, 1, 8>}, {pipeline_mode = #tpu.pipeline_mode<synchronous>, transform_indices = @transform_14, window_bounds = array<i64: 4, 8, 32>}, {pipeline_mode = #tpu.pipeline_mode<synchronous>, transform_indices = @transform_15, window_bounds = array<i64: 1, 32>}, {pipeline_mode = #tpu.pipeline_mode<synchronous>, transform_indices = @transform_16, window_bounds = array<i64: 32, 128>}, {pipeline_mode = #tpu.pipeline_mode<synchronous>, transform_indices = @transform_17, window_bounds = array<i64: 1, 128>}, {pipeline_mode = #tpu.pipeline_mode<synchronous>, transform_indices = @transform_18, window_bounds = array<i64: 128, 32>}, {pipeline_mode = #tpu.pipeline_mode<synchronous>, transform_indices = @transform_19, window_bounds = array<i64: 1, 32>}, {transform_indices = @transform_20, window_bounds = array<i64: 1, 16, 32>}]} {
    %c0 = arith.constant 0 : index
    %c0_0 = arith.constant 0 : index
    %c0_1 = arith.constant 0 : index
    %0 = vector.load %arg1[%c0, %c0_0, %c0_1] : memref<1x16x32xf32, #tpu.memory_space<vmem>>, vector<1x16x32xf32>
    %1 = vector.shape_cast %0 : vector<1x16x32xf32> to vector<16x32xf32>
    %c0_2 = arith.constant 0 : index
    %c0_3 = arith.constant 0 : index
    %c0_4 = arith.constant 0 : index
    %2 = vector.load %arg2[%c0_2, %c0_3, %c0_4] : memref<1x8x32xf32, #tpu.memory_space<vmem>>, vector<1x8x32xf32>
    %3 = vector.shape_cast %2 : vector<1x8x32xf32> to vector<8x32xf32>
    %cst = arith.constant dense<0.000000e+00> : vector<16xf32>
    %4 = vector.multi_reduction <add>, %1, %cst [1] : vector<16x32xf32> to vector<16xf32>
    %5 = vector.shape_cast %4 : vector<16xf32> to vector<16x1xf32>
    %cst_5 = arith.constant 3.200000e+01 : f32
    %6 = vector.broadcast %cst_5 : f32 to vector<16x1xf32>
    %7 = arith.divf %5, %6 : vector<16x1xf32>
    %8 = vector.broadcast %7 : vector<16x1xf32> to vector<16x32xf32>
    %9 = arith.subf %1, %8 : vector<16x32xf32>
    %10 = arith.mulf %9, %9 : vector<16x32xf32>
    %cst_6 = arith.constant dense<0.000000e+00> : vector<16xf32>
    %11 = vector.multi_reduction <add>, %10, %cst_6 [1] : vector<16x32xf32> to vector<16xf32>
    %12 = vector.shape_cast %11 : vector<16xf32> to vector<16x1xf32>
    %cst_7 = arith.constant 3.200000e+01 : f32
    %13 = vector.broadcast %cst_7 : f32 to vector<16x1xf32>
    %14 = arith.divf %12, %13 : vector<16x1xf32>
    %cst_8 = arith.constant 9.99999974E-6 : f32
    %15 = vector.broadcast %cst_8 : f32 to vector<16x1xf32>
    %16 = arith.addf %14, %15 : vector<16x1xf32>
    %17 = math.rsqrt %16 : vector<16x1xf32>
    %18 = vector.broadcast %17 : vector<16x1xf32> to vector<16x32xf32>
    %19 = arith.mulf %9, %18 : vector<16x32xf32>
    %c0_9 = arith.constant 0 : index
    %c0_10 = arith.constant 0 : index
    %20 = vector.load %arg3[%c0_9, %c0_10] : memref<1x32xf32, #tpu.memory_space<vmem>>, vector<1x32xf32>
    %21 = vector.broadcast %20 : vector<1x32xf32> to vector<16x32xf32>
    %22 = arith.mulf %19, %21 : vector<16x32xf32>
    %c0_11 = arith.constant 0 : index
    %c0_12 = arith.constant 0 : index
    %23 = vector.load %arg4[%c0_11, %c0_12] : memref<1x32xf32, #tpu.memory_space<vmem>>, vector<1x32xf32>
    %24 = vector.broadcast %23 : vector<1x32xf32> to vector<16x32xf32>
    %25 = arith.addf %22, %24 : vector<16x32xf32>
    %c0_13 = arith.constant 0 : index
    %c0_14 = arith.constant 0 : index
    %c0_15 = arith.constant 0 : index
    %26 = vector.load %arg9[%c0_13, %c0_14, %c0_15] : memref<12x32x8xf32, #tpu.memory_space<vmem>>, vector<1x32x8xf32>
    %27 = vector.shape_cast %26 : vector<1x32x8xf32> to vector<32x8xf32>
    %cst_16 = arith.constant dense<0.000000e+00> : vector<16x8xf32>
    %28 = tpu.matmul %25, %27, %cst_16 {dimension_numbers = #tpu.dot_dimension_numbers<[1], [0], [0], [1], [0, 0, 1, 1], [], []>} : vector<16x32xf32>, vector<32x8xf32>, vector<16x8xf32> -> vector<16x8xf32>
    %c0_17 = arith.constant 0 : index
    %c0_18 = arith.constant 0 : index
    %c0_19 = arith.constant 0 : index
    %29 = vector.load %arg10[%c0_17, %c0_18, %c0_19] : memref<12x1x8xf32, #tpu.memory_space<vmem>>, vector<1x1x8xf32>
    %30 = vector.shape_cast %29 : vector<1x1x8xf32> to vector<1x8xf32>
    %31 = vector.broadcast %30 : vector<1x8xf32> to vector<16x8xf32>
    %32 = arith.addf %28, %31 : vector<16x8xf32>
    %c4 = arith.constant 4 : index
    %c0_20 = arith.constant 0 : index
    %c0_21 = arith.constant 0 : index
    %33 = vector.load %arg9[%c4, %c0_20, %c0_21] : memref<12x32x8xf32, #tpu.memory_space<vmem>>, vector<1x32x8xf32>
    %34 = vector.shape_cast %33 : vector<1x32x8xf32> to vector<32x8xf32>
    %cst_22 = arith.constant dense<0.000000e+00> : vector<16x8xf32>
    %35 = tpu.matmul %25, %34, %cst_22 {dimension_numbers = #tpu.dot_dimension_numbers<[1], [0], [0], [1], [0, 0, 1, 1], [], []>} : vector<16x32xf32>, vector<32x8xf32>, vector<16x8xf32> -> vector<16x8xf32>
    %c4_23 = arith.constant 4 : index
    %c0_24 = arith.constant 0 : index
    %c0_25 = arith.constant 0 : index
    %36 = vector.load %arg10[%c4_23, %c0_24, %c0_25] : memref<12x1x8xf32, #tpu.memory_space<vmem>>, vector<1x1x8xf32>
    %37 = vector.shape_cast %36 : vector<1x1x8xf32> to vector<1x8xf32>
    %38 = vector.broadcast %37 : vector<1x8xf32> to vector<16x8xf32>
    %39 = arith.addf %35, %38 : vector<16x8xf32>
    %c8 = arith.constant 8 : index
    %c0_26 = arith.constant 0 : index
    %c0_27 = arith.constant 0 : index
    %40 = vector.load %arg9[%c8, %c0_26, %c0_27] : memref<12x32x8xf32, #tpu.memory_space<vmem>>, vector<1x32x8xf32>
    %41 = vector.shape_cast %40 : vector<1x32x8xf32> to vector<32x8xf32>
    %cst_28 = arith.constant dense<0.000000e+00> : vector<16x8xf32>
    %42 = tpu.matmul %25, %41, %cst_28 {dimension_numbers = #tpu.dot_dimension_numbers<[1], [0], [0], [1], [0, 0, 1, 1], [], []>} : vector<16x32xf32>, vector<32x8xf32>, vector<16x8xf32> -> vector<16x8xf32>
    %c8_29 = arith.constant 8 : index
    %c0_30 = arith.constant 0 : index
    %c0_31 = arith.constant 0 : index
    %43 = vector.load %arg10[%c8_29, %c0_30, %c0_31] : memref<12x1x8xf32, #tpu.memory_space<vmem>>, vector<1x1x8xf32>
    %44 = vector.shape_cast %43 : vector<1x1x8xf32> to vector<1x8xf32>
    %45 = vector.broadcast %44 : vector<1x8xf32> to vector<16x8xf32>
    %46 = arith.addf %42, %45 : vector<16x8xf32>
    %cst_32 = arith.constant dense<0.000000e+00> : vector<16x16xf32>
    %47 = tpu.matmul %32, %39, %cst_32 {dimension_numbers = #tpu.dot_dimension_numbers<[1], [1], [0], [0], [0, 0, 1, 0], [], []>} : vector<16x8xf32>, vector<16x8xf32>, vector<16x16xf32> -> vector<16x16xf32>
    %cst_33 = arith.constant 0.353553385 : f32
    %48 = vector.broadcast %cst_33 : f32 to vector<16x16xf32>
    %49 = arith.mulf %47, %48 : vector<16x16xf32>
    %cst_34 = arith.constant dense<0xFF800000> : vector<16xf32>
    %50 = vector.multi_reduction <maximumf>, %49, %cst_34 [1] : vector<16x16xf32> to vector<16xf32>
    %51 = vector.shape_cast %50 : vector<16xf32> to vector<16x1xf32>
    %52 = vector.broadcast %51 : vector<16x1xf32> to vector<16x16xf32>
    %53 = arith.subf %49, %52 : vector<16x16xf32>
    %54 = math.exp %53 : vector<16x16xf32>
    %cst_35 = arith.constant dense<0.000000e+00> : vector<16xf32>
    %55 = vector.multi_reduction <add>, %54, %cst_35 [1] : vector<16x16xf32> to vector<16xf32>
    %56 = vector.shape_cast %55 : vector<16xf32> to vector<16x1xf32>
    %57 = tpu.reciprocal %56 {approx = true} : vector<16x1xf32> -> vector<16x1xf32>
    %58 = vector.broadcast %57 : vector<16x1xf32> to vector<16x16xf32>
    %59 = arith.mulf %54, %58 : vector<16x16xf32>
    %cst_36 = arith.constant dense<0.000000e+00> : vector<16x8xf32>
    %60 = tpu.matmul %59, %46, %cst_36 {dimension_numbers = #tpu.dot_dimension_numbers<[1], [0], [0], [1], [0, 0, 1, 1], [], []>} : vector<16x16xf32>, vector<16x8xf32>, vector<16x8xf32> -> vector<16x8xf32>
    %c0_37 = arith.constant 0 : index
    %c0_38 = arith.constant 0 : index
    %c0_39 = arith.constant 0 : index
    %61 = vector.load %arg11[%c0_37, %c0_38, %c0_39] : memref<4x8x32xf32, #tpu.memory_space<vmem>>, vector<1x8x32xf32>
    %62 = vector.shape_cast %61 : vector<1x8x32xf32> to vector<8x32xf32>
    %cst_40 = arith.constant dense<0.000000e+00> : vector<16x32xf32>
    %63 = tpu.matmul %60, %62, %cst_40 {dimension_numbers = #tpu.dot_dimension_numbers<[1], [0], [0], [1], [0, 0, 1, 1], [], []>} : vector<16x8xf32>, vector<8x32xf32>, vector<16x32xf32> -> vector<16x32xf32>
    %c1 = arith.constant 1 : index
    %c0_41 = arith.constant 0 : index
    %c0_42 = arith.constant 0 : index
    %64 = vector.load %arg9[%c1, %c0_41, %c0_42] : memref<12x32x8xf32, #tpu.memory_space<vmem>>, vector<1x32x8xf32>
    %65 = vector.shape_cast %64 : vector<1x32x8xf32> to vector<32x8xf32>
    %cst_43 = arith.constant dense<0.000000e+00> : vector<16x8xf32>
    %66 = tpu.matmul %25, %65, %cst_43 {dimension_numbers = #tpu.dot_dimension_numbers<[1], [0], [0], [1], [0, 0, 1, 1], [], []>} : vector<16x32xf32>, vector<32x8xf32>, vector<16x8xf32> -> vector<16x8xf32>
    %c1_44 = arith.constant 1 : index
    %c0_45 = arith.constant 0 : index
    %c0_46 = arith.constant 0 : index
    %67 = vector.load %arg10[%c1_44, %c0_45, %c0_46] : memref<12x1x8xf32, #tpu.memory_space<vmem>>, vector<1x1x8xf32>
    %68 = vector.shape_cast %67 : vector<1x1x8xf32> to vector<1x8xf32>
    %69 = vector.broadcast %68 : vector<1x8xf32> to vector<16x8xf32>
    %70 = arith.addf %66, %69 : vector<16x8xf32>
    %c5 = arith.constant 5 : index
    %c0_47 = arith.constant 0 : index
    %c0_48 = arith.constant 0 : index
    %71 = vector.load %arg9[%c5, %c0_47, %c0_48] : memref<12x32x8xf32, #tpu.memory_space<vmem>>, vector<1x32x8xf32>
    %72 = vector.shape_cast %71 : vector<1x32x8xf32> to vector<32x8xf32>
    %cst_49 = arith.constant dense<0.000000e+00> : vector<16x8xf32>
    %73 = tpu.matmul %25, %72, %cst_49 {dimension_numbers = #tpu.dot_dimension_numbers<[1], [0], [0], [1], [0, 0, 1, 1], [], []>} : vector<16x32xf32>, vector<32x8xf32>, vector<16x8xf32> -> vector<16x8xf32>
    %c5_50 = arith.constant 5 : index
    %c0_51 = arith.constant 0 : index
    %c0_52 = arith.constant 0 : index
    %74 = vector.load %arg10[%c5_50, %c0_51, %c0_52] : memref<12x1x8xf32, #tpu.memory_space<vmem>>, vector<1x1x8xf32>
    %75 = vector.shape_cast %74 : vector<1x1x8xf32> to vector<1x8xf32>
    %76 = vector.broadcast %75 : vector<1x8xf32> to vector<16x8xf32>
    %77 = arith.addf %73, %76 : vector<16x8xf32>
    %c9 = arith.constant 9 : index
    %c0_53 = arith.constant 0 : index
    %c0_54 = arith.constant 0 : index
    %78 = vector.load %arg9[%c9, %c0_53, %c0_54] : memref<12x32x8xf32, #tpu.memory_space<vmem>>, vector<1x32x8xf32>
    %79 = vector.shape_cast %78 : vector<1x32x8xf32> to vector<32x8xf32>
    %cst_55 = arith.constant dense<0.000000e+00> : vector<16x8xf32>
    %80 = tpu.matmul %25, %79, %cst_55 {dimension_numbers = #tpu.dot_dimension_numbers<[1], [0], [0], [1], [0, 0, 1, 1], [], []>} : vector<16x32xf32>, vector<32x8xf32>, vector<16x8xf32> -> vector<16x8xf32>
    %c9_56 = arith.constant 9 : index
    %c0_57 = arith.constant 0 : index
    %c0_58 = arith.constant 0 : index
    %81 = vector.load %arg10[%c9_56, %c0_57, %c0_58] : memref<12x1x8xf32, #tpu.memory_space<vmem>>, vector<1x1x8xf32>
    %82 = vector.shape_cast %81 : vector<1x1x8xf32> to vector<1x8xf32>
    %83 = vector.broadcast %82 : vector<1x8xf32> to vector<16x8xf32>
    %84 = arith.addf %80, %83 : vector<16x8xf32>
    %cst_59 = arith.constant dense<0.000000e+00> : vector<16x16xf32>
    %85 = tpu.matmul %70, %77, %cst_59 {dimension_numbers = #tpu.dot_dimension_numbers<[1], [1], [0], [0], [0, 0, 1, 0], [], []>} : vector<16x8xf32>, vector<16x8xf32>, vector<16x16xf32> -> vector<16x16xf32>
    %cst_60 = arith.constant 0.353553385 : f32
    %86 = vector.broadcast %cst_60 : f32 to vector<16x16xf32>
    %87 = arith.mulf %85, %86 : vector<16x16xf32>
    %cst_61 = arith.constant dense<0xFF800000> : vector<16xf32>
    %88 = vector.multi_reduction <maximumf>, %87, %cst_61 [1] : vector<16x16xf32> to vector<16xf32>
    %89 = vector.shape_cast %88 : vector<16xf32> to vector<16x1xf32>
    %90 = vector.broadcast %89 : vector<16x1xf32> to vector<16x16xf32>
    %91 = arith.subf %87, %90 : vector<16x16xf32>
    %92 = math.exp %91 : vector<16x16xf32>
    %cst_62 = arith.constant dense<0.000000e+00> : vector<16xf32>
    %93 = vector.multi_reduction <add>, %92, %cst_62 [1] : vector<16x16xf32> to vector<16xf32>
    %94 = vector.shape_cast %93 : vector<16xf32> to vector<16x1xf32>
    %95 = tpu.reciprocal %94 {approx = true} : vector<16x1xf32> -> vector<16x1xf32>
    %96 = vector.broadcast %95 : vector<16x1xf32> to vector<16x16xf32>
    %97 = arith.mulf %92, %96 : vector<16x16xf32>
    %cst_63 = arith.constant dense<0.000000e+00> : vector<16x8xf32>
    %98 = tpu.matmul %97, %84, %cst_63 {dimension_numbers = #tpu.dot_dimension_numbers<[1], [0], [0], [1], [0, 0, 1, 1], [], []>} : vector<16x16xf32>, vector<16x8xf32>, vector<16x8xf32> -> vector<16x8xf32>
    %c1_64 = arith.constant 1 : index
    %c0_65 = arith.constant 0 : index
    %c0_66 = arith.constant 0 : index
    %99 = vector.load %arg11[%c1_64, %c0_65, %c0_66] : memref<4x8x32xf32, #tpu.memory_space<vmem>>, vector<1x8x32xf32>
    %100 = vector.shape_cast %99 : vector<1x8x32xf32> to vector<8x32xf32>
    %cst_67 = arith.constant dense<0.000000e+00> : vector<16x32xf32>
    %101 = tpu.matmul %98, %100, %cst_67 {dimension_numbers = #tpu.dot_dimension_numbers<[1], [0], [0], [1], [0, 0, 1, 1], [], []>} : vector<16x8xf32>, vector<8x32xf32>, vector<16x32xf32> -> vector<16x32xf32>
    %102 = arith.addf %63, %101 : vector<16x32xf32>
    %c2 = arith.constant 2 : index
    %c0_68 = arith.constant 0 : index
    %c0_69 = arith.constant 0 : index
    %103 = vector.load %arg9[%c2, %c0_68, %c0_69] : memref<12x32x8xf32, #tpu.memory_space<vmem>>, vector<1x32x8xf32>
    %104 = vector.shape_cast %103 : vector<1x32x8xf32> to vector<32x8xf32>
    %cst_70 = arith.constant dense<0.000000e+00> : vector<16x8xf32>
    %105 = tpu.matmul %25, %104, %cst_70 {dimension_numbers = #tpu.dot_dimension_numbers<[1], [0], [0], [1], [0, 0, 1, 1], [], []>} : vector<16x32xf32>, vector<32x8xf32>, vector<16x8xf32> -> vector<16x8xf32>
    %c2_71 = arith.constant 2 : index
    %c0_72 = arith.constant 0 : index
    %c0_73 = arith.constant 0 : index
    %106 = vector.load %arg10[%c2_71, %c0_72, %c0_73] : memref<12x1x8xf32, #tpu.memory_space<vmem>>, vector<1x1x8xf32>
    %107 = vector.shape_cast %106 : vector<1x1x8xf32> to vector<1x8xf32>
    %108 = vector.broadcast %107 : vector<1x8xf32> to vector<16x8xf32>
    %109 = arith.addf %105, %108 : vector<16x8xf32>
    %c6 = arith.constant 6 : index
    %c0_74 = arith.constant 0 : index
    %c0_75 = arith.constant 0 : index
    %110 = vector.load %arg9[%c6, %c0_74, %c0_75] : memref<12x32x8xf32, #tpu.memory_space<vmem>>, vector<1x32x8xf32>
    %111 = vector.shape_cast %110 : vector<1x32x8xf32> to vector<32x8xf32>
    %cst_76 = arith.constant dense<0.000000e+00> : vector<16x8xf32>
    %112 = tpu.matmul %25, %111, %cst_76 {dimension_numbers = #tpu.dot_dimension_numbers<[1], [0], [0], [1], [0, 0, 1, 1], [], []>} : vector<16x32xf32>, vector<32x8xf32>, vector<16x8xf32> -> vector<16x8xf32>
    %c6_77 = arith.constant 6 : index
    %c0_78 = arith.constant 0 : index
    %c0_79 = arith.constant 0 : index
    %113 = vector.load %arg10[%c6_77, %c0_78, %c0_79] : memref<12x1x8xf32, #tpu.memory_space<vmem>>, vector<1x1x8xf32>
    %114 = vector.shape_cast %113 : vector<1x1x8xf32> to vector<1x8xf32>
    %115 = vector.broadcast %114 : vector<1x8xf32> to vector<16x8xf32>
    %116 = arith.addf %112, %115 : vector<16x8xf32>
    %c10 = arith.constant 10 : index
    %c0_80 = arith.constant 0 : index
    %c0_81 = arith.constant 0 : index
    %117 = vector.load %arg9[%c10, %c0_80, %c0_81] : memref<12x32x8xf32, #tpu.memory_space<vmem>>, vector<1x32x8xf32>
    %118 = vector.shape_cast %117 : vector<1x32x8xf32> to vector<32x8xf32>
    %cst_82 = arith.constant dense<0.000000e+00> : vector<16x8xf32>
    %119 = tpu.matmul %25, %118, %cst_82 {dimension_numbers = #tpu.dot_dimension_numbers<[1], [0], [0], [1], [0, 0, 1, 1], [], []>} : vector<16x32xf32>, vector<32x8xf32>, vector<16x8xf32> -> vector<16x8xf32>
    %c10_83 = arith.constant 10 : index
    %c0_84 = arith.constant 0 : index
    %c0_85 = arith.constant 0 : index
    %120 = vector.load %arg10[%c10_83, %c0_84, %c0_85] : memref<12x1x8xf32, #tpu.memory_space<vmem>>, vector<1x1x8xf32>
    %121 = vector.shape_cast %120 : vector<1x1x8xf32> to vector<1x8xf32>
    %122 = vector.broadcast %121 : vector<1x8xf32> to vector<16x8xf32>
    %123 = arith.addf %119, %122 : vector<16x8xf32>
    %cst_86 = arith.constant dense<0.000000e+00> : vector<16x16xf32>
    %124 = tpu.matmul %109, %116, %cst_86 {dimension_numbers = #tpu.dot_dimension_numbers<[1], [1], [0], [0], [0, 0, 1, 0], [], []>} : vector<16x8xf32>, vector<16x8xf32>, vector<16x16xf32> -> vector<16x16xf32>
    %cst_87 = arith.constant 0.353553385 : f32
    %125 = vector.broadcast %cst_87 : f32 to vector<16x16xf32>
    %126 = arith.mulf %124, %125 : vector<16x16xf32>
    %cst_88 = arith.constant dense<0xFF800000> : vector<16xf32>
    %127 = vector.multi_reduction <maximumf>, %126, %cst_88 [1] : vector<16x16xf32> to vector<16xf32>
    %128 = vector.shape_cast %127 : vector<16xf32> to vector<16x1xf32>
    %129 = vector.broadcast %128 : vector<16x1xf32> to vector<16x16xf32>
    %130 = arith.subf %126, %129 : vector<16x16xf32>
    %131 = math.exp %130 : vector<16x16xf32>
    %cst_89 = arith.constant dense<0.000000e+00> : vector<16xf32>
    %132 = vector.multi_reduction <add>, %131, %cst_89 [1] : vector<16x16xf32> to vector<16xf32>
    %133 = vector.shape_cast %132 : vector<16xf32> to vector<16x1xf32>
    %134 = tpu.reciprocal %133 {approx = true} : vector<16x1xf32> -> vector<16x1xf32>
    %135 = vector.broadcast %134 : vector<16x1xf32> to vector<16x16xf32>
    %136 = arith.mulf %131, %135 : vector<16x16xf32>
    %cst_90 = arith.constant dense<0.000000e+00> : vector<16x8xf32>
    %137 = tpu.matmul %136, %123, %cst_90 {dimension_numbers = #tpu.dot_dimension_numbers<[1], [0], [0], [1], [0, 0, 1, 1], [], []>} : vector<16x16xf32>, vector<16x8xf32>, vector<16x8xf32> -> vector<16x8xf32>
    %c2_91 = arith.constant 2 : index
    %c0_92 = arith.constant 0 : index
    %c0_93 = arith.constant 0 : index
    %138 = vector.load %arg11[%c2_91, %c0_92, %c0_93] : memref<4x8x32xf32, #tpu.memory_space<vmem>>, vector<1x8x32xf32>
    %139 = vector.shape_cast %138 : vector<1x8x32xf32> to vector<8x32xf32>
    %cst_94 = arith.constant dense<0.000000e+00> : vector<16x32xf32>
    %140 = tpu.matmul %137, %139, %cst_94 {dimension_numbers = #tpu.dot_dimension_numbers<[1], [0], [0], [1], [0, 0, 1, 1], [], []>} : vector<16x8xf32>, vector<8x32xf32>, vector<16x32xf32> -> vector<16x32xf32>
    %141 = arith.addf %102, %140 : vector<16x32xf32>
    %c3 = arith.constant 3 : index
    %c0_95 = arith.constant 0 : index
    %c0_96 = arith.constant 0 : index
    %142 = vector.load %arg9[%c3, %c0_95, %c0_96] : memref<12x32x8xf32, #tpu.memory_space<vmem>>, vector<1x32x8xf32>
    %143 = vector.shape_cast %142 : vector<1x32x8xf32> to vector<32x8xf32>
    %cst_97 = arith.constant dense<0.000000e+00> : vector<16x8xf32>
    %144 = tpu.matmul %25, %143, %cst_97 {dimension_numbers = #tpu.dot_dimension_numbers<[1], [0], [0], [1], [0, 0, 1, 1], [], []>} : vector<16x32xf32>, vector<32x8xf32>, vector<16x8xf32> -> vector<16x8xf32>
    %c3_98 = arith.constant 3 : index
    %c0_99 = arith.constant 0 : index
    %c0_100 = arith.constant 0 : index
    %145 = vector.load %arg10[%c3_98, %c0_99, %c0_100] : memref<12x1x8xf32, #tpu.memory_space<vmem>>, vector<1x1x8xf32>
    %146 = vector.shape_cast %145 : vector<1x1x8xf32> to vector<1x8xf32>
    %147 = vector.broadcast %146 : vector<1x8xf32> to vector<16x8xf32>
    %148 = arith.addf %144, %147 : vector<16x8xf32>
    %c7 = arith.constant 7 : index
    %c0_101 = arith.constant 0 : index
    %c0_102 = arith.constant 0 : index
    %149 = vector.load %arg9[%c7, %c0_101, %c0_102] : memref<12x32x8xf32, #tpu.memory_space<vmem>>, vector<1x32x8xf32>
    %150 = vector.shape_cast %149 : vector<1x32x8xf32> to vector<32x8xf32>
    %cst_103 = arith.constant dense<0.000000e+00> : vector<16x8xf32>
    %151 = tpu.matmul %25, %150, %cst_103 {dimension_numbers = #tpu.dot_dimension_numbers<[1], [0], [0], [1], [0, 0, 1, 1], [], []>} : vector<16x32xf32>, vector<32x8xf32>, vector<16x8xf32> -> vector<16x8xf32>
    %c7_104 = arith.constant 7 : index
    %c0_105 = arith.constant 0 : index
    %c0_106 = arith.constant 0 : index
    %152 = vector.load %arg10[%c7_104, %c0_105, %c0_106] : memref<12x1x8xf32, #tpu.memory_space<vmem>>, vector<1x1x8xf32>
    %153 = vector.shape_cast %152 : vector<1x1x8xf32> to vector<1x8xf32>
    %154 = vector.broadcast %153 : vector<1x8xf32> to vector<16x8xf32>
    %155 = arith.addf %151, %154 : vector<16x8xf32>
    %c11 = arith.constant 11 : index
    %c0_107 = arith.constant 0 : index
    %c0_108 = arith.constant 0 : index
    %156 = vector.load %arg9[%c11, %c0_107, %c0_108] : memref<12x32x8xf32, #tpu.memory_space<vmem>>, vector<1x32x8xf32>
    %157 = vector.shape_cast %156 : vector<1x32x8xf32> to vector<32x8xf32>
    %cst_109 = arith.constant dense<0.000000e+00> : vector<16x8xf32>
    %158 = tpu.matmul %25, %157, %cst_109 {dimension_numbers = #tpu.dot_dimension_numbers<[1], [0], [0], [1], [0, 0, 1, 1], [], []>} : vector<16x32xf32>, vector<32x8xf32>, vector<16x8xf32> -> vector<16x8xf32>
    %c11_110 = arith.constant 11 : index
    %c0_111 = arith.constant 0 : index
    %c0_112 = arith.constant 0 : index
    %159 = vector.load %arg10[%c11_110, %c0_111, %c0_112] : memref<12x1x8xf32, #tpu.memory_space<vmem>>, vector<1x1x8xf32>
    %160 = vector.shape_cast %159 : vector<1x1x8xf32> to vector<1x8xf32>
    %161 = vector.broadcast %160 : vector<1x8xf32> to vector<16x8xf32>
    %162 = arith.addf %158, %161 : vector<16x8xf32>
    %cst_113 = arith.constant dense<0.000000e+00> : vector<16x16xf32>
    %163 = tpu.matmul %148, %155, %cst_113 {dimension_numbers = #tpu.dot_dimension_numbers<[1], [1], [0], [0], [0, 0, 1, 0], [], []>} : vector<16x8xf32>, vector<16x8xf32>, vector<16x16xf32> -> vector<16x16xf32>
    %cst_114 = arith.constant 0.353553385 : f32
    %164 = vector.broadcast %cst_114 : f32 to vector<16x16xf32>
    %165 = arith.mulf %163, %164 : vector<16x16xf32>
    %cst_115 = arith.constant dense<0xFF800000> : vector<16xf32>
    %166 = vector.multi_reduction <maximumf>, %165, %cst_115 [1] : vector<16x16xf32> to vector<16xf32>
    %167 = vector.shape_cast %166 : vector<16xf32> to vector<16x1xf32>
    %168 = vector.broadcast %167 : vector<16x1xf32> to vector<16x16xf32>
    %169 = arith.subf %165, %168 : vector<16x16xf32>
    %170 = math.exp %169 : vector<16x16xf32>
    %cst_116 = arith.constant dense<0.000000e+00> : vector<16xf32>
    %171 = vector.multi_reduction <add>, %170, %cst_116 [1] : vector<16x16xf32> to vector<16xf32>
    %172 = vector.shape_cast %171 : vector<16xf32> to vector<16x1xf32>
    %173 = tpu.reciprocal %172 {approx = true} : vector<16x1xf32> -> vector<16x1xf32>
    %174 = vector.broadcast %173 : vector<16x1xf32> to vector<16x16xf32>
    %175 = arith.mulf %170, %174 : vector<16x16xf32>
    %cst_117 = arith.constant dense<0.000000e+00> : vector<16x8xf32>
    %176 = tpu.matmul %175, %162, %cst_117 {dimension_numbers = #tpu.dot_dimension_numbers<[1], [0], [0], [1], [0, 0, 1, 1], [], []>} : vector<16x16xf32>, vector<16x8xf32>, vector<16x8xf32> -> vector<16x8xf32>
    %c3_118 = arith.constant 3 : index
    %c0_119 = arith.constant 0 : index
    %c0_120 = arith.constant 0 : index
    %177 = vector.load %arg11[%c3_118, %c0_119, %c0_120] : memref<4x8x32xf32, #tpu.memory_space<vmem>>, vector<1x8x32xf32>
    %178 = vector.shape_cast %177 : vector<1x8x32xf32> to vector<8x32xf32>
    %cst_121 = arith.constant dense<0.000000e+00> : vector<16x32xf32>
    %179 = tpu.matmul %176, %178, %cst_121 {dimension_numbers = #tpu.dot_dimension_numbers<[1], [0], [0], [1], [0, 0, 1, 1], [], []>} : vector<16x8xf32>, vector<8x32xf32>, vector<16x32xf32> -> vector<16x32xf32>
    %180 = arith.addf %141, %179 : vector<16x32xf32>
    %c0_122 = arith.constant 0 : index
    %c0_123 = arith.constant 0 : index
    %181 = vector.load %arg12[%c0_122, %c0_123] : memref<1x32xf32, #tpu.memory_space<vmem>>, vector<1x32xf32>
    %182 = vector.broadcast %181 : vector<1x32xf32> to vector<16x32xf32>
    %183 = arith.addf %180, %182 : vector<16x32xf32>
    %184 = arith.addf %1, %183 : vector<16x32xf32>
    %c0_124 = arith.constant 0 : index
    %c0_125 = arith.constant 0 : index
    %185 = vector.load %arg17[%c0_124, %c0_125] : memref<32x128xf32, #tpu.memory_space<vmem>>, vector<32x128xf32>
    %cst_126 = arith.constant dense<0.000000e+00> : vector<16x128xf32>
    %186 = tpu.matmul %184, %185, %cst_126 {dimension_numbers = #tpu.dot_dimension_numbers<[1], [0], [0], [1], [0, 0, 1, 1], [], []>} : vector<16x32xf32>, vector<32x128xf32>, vector<16x128xf32> -> vector<16x128xf32>
    %c0_127 = arith.constant 0 : index
    %c0_128 = arith.constant 0 : index
    %187 = vector.load %arg18[%c0_127, %c0_128] : memref<1x128xf32, #tpu.memory_space<vmem>>, vector<1x128xf32>
    %188 = vector.broadcast %187 : vector<1x128xf32> to vector<16x128xf32>
    %189 = arith.addf %186, %188 : vector<16x128xf32>
    %cst_129 = arith.constant 5.000000e-01 : f32
    %190 = vector.broadcast %cst_129 : f32 to vector<16x128xf32>
    %191 = arith.mulf %189, %190 : vector<16x128xf32>
    %cst_130 = arith.constant 0.707106769 : f32
    %192 = vector.broadcast %cst_130 : f32 to vector<16x128xf32>
    %193 = arith.mulf %189, %192 : vector<16x128xf32>
    %194 = math.erf %193 : vector<16x128xf32>
    %cst_131 = arith.constant 1.000000e+00 : f32
    %195 = vector.broadcast %cst_131 : f32 to vector<16x128xf32>
    %196 = arith.addf %195, %194 : vector<16x128xf32>
    %197 = arith.mulf %191, %196 : vector<16x128xf32>
    %c0_132 = arith.constant 0 : index
    %c0_133 = arith.constant 0 : index
    %198 = vector.load %arg19[%c0_132, %c0_133] : memref<128x32xf32, #tpu.memory_space<vmem>>, vector<128x32xf32>
    %cst_134 = arith.constant dense<0.000000e+00> : vector<16x32xf32>
    %199 = tpu.matmul %197, %198, %cst_134 {dimension_numbers = #tpu.dot_dimension_numbers<[1], [0], [0], [1], [0, 0, 1, 1], [], []>} : vector<16x128xf32>, vector<128x32xf32>, vector<16x32xf32> -> vector<16x32xf32>
    %c0_135 = arith.constant 0 : index
    %c0_136 = arith.constant 0 : index
    %200 = vector.load %arg20[%c0_135, %c0_136] : memref<1x32xf32, #tpu.memory_space<vmem>>, vector<1x32xf32>
    %201 = vector.broadcast %200 : vector<1x32xf32> to vector<16x32xf32>
    %202 = arith.addf %199, %201 : vector<16x32xf32>
    %cst_137 = arith.constant dense<0.000000e+00> : vector<16xf32>
    %203 = vector.multi_reduction <add>, %202, %cst_137 [1] : vector<16x32xf32> to vector<16xf32>
    %204 = vector.shape_cast %203 : vector<16xf32> to vector<16x1xf32>
    %cst_138 = arith.constant 3.200000e+01 : f32
    %205 = vector.broadcast %cst_138 : f32 to vector<16x1xf32>
    %206 = arith.divf %204, %205 : vector<16x1xf32>
    %207 = vector.broadcast %206 : vector<16x1xf32> to vector<16x32xf32>
    %208 = arith.subf %202, %207 : vector<16x32xf32>
    %209 = arith.mulf %208, %208 : vector<16x32xf32>
    %cst_139 = arith.constant dense<0.000000e+00> : vector<16xf32>
    %210 = vector.multi_reduction <add>, %209, %cst_139 [1] : vector<16x32xf32> to vector<16xf32>
    %211 = vector.shape_cast %210 : vector<16xf32> to vector<16x1xf32>
    %cst_140 = arith.constant 3.200000e+01 : f32
    %212 = vector.broadcast %cst_140 : f32 to vector<16x1xf32>
    %213 = arith.divf %211, %212 : vector<16x1xf32>
    %cst_141 = arith.constant 9.99999974E-6 : f32
    %214 = vector.broadcast %cst_141 : f32 to vector<16x1xf32>
    %215 = arith.addf %213, %214 : vector<16x1xf32>
    %216 = math.rsqrt %215 : vector<16x1xf32>
    %217 = vector.broadcast %216 : vector<16x1xf32> to vector<16x32xf32>
    %218 = arith.mulf %208, %217 : vector<16x32xf32>
    %c0_142 = arith.constant 0 : index
    %c0_143 = arith.constant 0 : index
    %219 = vector.load %arg5[%c0_142, %c0_143] : memref<1x32xf32, #tpu.memory_space<vmem>>, vector<1x32xf32>
    %220 = vector.broadcast %219 : vector<1x32xf32> to vector<16x32xf32>
    %221 = arith.mulf %218, %220 : vector<16x32xf32>
    %c0_144 = arith.constant 0 : index
    %c0_145 = arith.constant 0 : index
    %222 = vector.load %arg6[%c0_144, %c0_145] : memref<1x32xf32, #tpu.memory_space<vmem>>, vector<1x32xf32>
    %223 = vector.broadcast %222 : vector<1x32xf32> to vector<16x32xf32>
    %224 = arith.addf %221, %223 : vector<16x32xf32>
    %c0_146 = arith.constant 0 : index
    %c0_147 = arith.constant 0 : index
    %c0_148 = arith.constant 0 : index
    %225 = vector.load %arg13[%c0_146, %c0_147, %c0_148] : memref<12x32x8xf32, #tpu.memory_space<vmem>>, vector<1x32x8xf32>
    %226 = vector.shape_cast %225 : vector<1x32x8xf32> to vector<32x8xf32>
    %cst_149 = arith.constant dense<0.000000e+00> : vector<16x8xf32>
    %227 = tpu.matmul %224, %226, %cst_149 {dimension_numbers = #tpu.dot_dimension_numbers<[1], [0], [0], [1], [0, 0, 1, 1], [], []>} : vector<16x32xf32>, vector<32x8xf32>, vector<16x8xf32> -> vector<16x8xf32>
    %c0_150 = arith.constant 0 : index
    %c0_151 = arith.constant 0 : index
    %c0_152 = arith.constant 0 : index
    %228 = vector.load %arg14[%c0_150, %c0_151, %c0_152] : memref<12x1x8xf32, #tpu.memory_space<vmem>>, vector<1x1x8xf32>
    %229 = vector.shape_cast %228 : vector<1x1x8xf32> to vector<1x8xf32>
    %230 = vector.broadcast %229 : vector<1x8xf32> to vector<16x8xf32>
    %231 = arith.addf %227, %230 : vector<16x8xf32>
    %c4_153 = arith.constant 4 : index
    %c0_154 = arith.constant 0 : index
    %c0_155 = arith.constant 0 : index
    %232 = vector.load %arg13[%c4_153, %c0_154, %c0_155] : memref<12x32x8xf32, #tpu.memory_space<vmem>>, vector<1x32x8xf32>
    %233 = vector.shape_cast %232 : vector<1x32x8xf32> to vector<32x8xf32>
    %cst_156 = arith.constant dense<0.000000e+00> : vector<8x8xf32>
    %234 = tpu.matmul %3, %233, %cst_156 {dimension_numbers = #tpu.dot_dimension_numbers<[1], [0], [0], [1], [0, 0, 1, 1], [], []>} : vector<8x32xf32>, vector<32x8xf32>, vector<8x8xf32> -> vector<8x8xf32>
    %c4_157 = arith.constant 4 : index
    %c0_158 = arith.constant 0 : index
    %c0_159 = arith.constant 0 : index
    %235 = vector.load %arg14[%c4_157, %c0_158, %c0_159] : memref<12x1x8xf32, #tpu.memory_space<vmem>>, vector<1x1x8xf32>
    %236 = vector.shape_cast %235 : vector<1x1x8xf32> to vector<1x8xf32>
    %237 = vector.broadcast %236 : vector<1x8xf32> to vector<8x8xf32>
    %238 = arith.addf %234, %237 : vector<8x8xf32>
    %c8_160 = arith.constant 8 : index
    %c0_161 = arith.constant 0 : index
    %c0_162 = arith.constant 0 : index
    %239 = vector.load %arg13[%c8_160, %c0_161, %c0_162] : memref<12x32x8xf32, #tpu.memory_space<vmem>>, vector<1x32x8xf32>
    %240 = vector.shape_cast %239 : vector<1x32x8xf32> to vector<32x8xf32>
    %cst_163 = arith.constant dense<0.000000e+00> : vector<8x8xf32>
    %241 = tpu.matmul %3, %240, %cst_163 {dimension_numbers = #tpu.dot_dimension_numbers<[1], [0], [0], [1], [0, 0, 1, 1], [], []>} : vector<8x32xf32>, vector<32x8xf32>, vector<8x8xf32> -> vector<8x8xf32>
    %c8_164 = arith.constant 8 : index
    %c0_165 = arith.constant 0 : index
    %c0_166 = arith.constant 0 : index
    %242 = vector.load %arg14[%c8_164, %c0_165, %c0_166] : memref<12x1x8xf32, #tpu.memory_space<vmem>>, vector<1x1x8xf32>
    %243 = vector.shape_cast %242 : vector<1x1x8xf32> to vector<1x8xf32>
    %244 = vector.broadcast %243 : vector<1x8xf32> to vector<8x8xf32>
    %245 = arith.addf %241, %244 : vector<8x8xf32>
    %cst_167 = arith.constant dense<0.000000e+00> : vector<16x8xf32>
    %246 = tpu.matmul %231, %238, %cst_167 {dimension_numbers = #tpu.dot_dimension_numbers<[1], [1], [0], [0], [0, 0, 1, 0], [], []>} : vector<16x8xf32>, vector<8x8xf32>, vector<16x8xf32> -> vector<16x8xf32>
    %cst_168 = arith.constant 0.353553385 : f32
    %247 = vector.broadcast %cst_168 : f32 to vector<16x8xf32>
    %248 = arith.mulf %246, %247 : vector<16x8xf32>
    %cst_169 = arith.constant dense<0xFF800000> : vector<16xf32>
    %249 = vector.multi_reduction <maximumf>, %248, %cst_169 [1] : vector<16x8xf32> to vector<16xf32>
    %250 = vector.shape_cast %249 : vector<16xf32> to vector<16x1xf32>
    %251 = vector.broadcast %250 : vector<16x1xf32> to vector<16x8xf32>
    %252 = arith.subf %248, %251 : vector<16x8xf32>
    %253 = math.exp %252 : vector<16x8xf32>
    %cst_170 = arith.constant dense<0.000000e+00> : vector<16xf32>
    %254 = vector.multi_reduction <add>, %253, %cst_170 [1] : vector<16x8xf32> to vector<16xf32>
    %255 = vector.shape_cast %254 : vector<16xf32> to vector<16x1xf32>
    %256 = tpu.reciprocal %255 {approx = true} : vector<16x1xf32> -> vector<16x1xf32>
    %257 = vector.broadcast %256 : vector<16x1xf32> to vector<16x8xf32>
    %258 = arith.mulf %253, %257 : vector<16x8xf32>
    %cst_171 = arith.constant dense<0.000000e+00> : vector<16x8xf32>
    %259 = tpu.matmul %258, %245, %cst_171 {dimension_numbers = #tpu.dot_dimension_numbers<[1], [0], [0], [1], [0, 0, 1, 1], [], []>} : vector<16x8xf32>, vector<8x8xf32>, vector<16x8xf32> -> vector<16x8xf32>
    %c0_172 = arith.constant 0 : index
    %c0_173 = arith.constant 0 : index
    %c0_174 = arith.constant 0 : index
    %260 = vector.load %arg15[%c0_172, %c0_173, %c0_174] : memref<4x8x32xf32, #tpu.memory_space<vmem>>, vector<1x8x32xf32>
    %261 = vector.shape_cast %260 : vector<1x8x32xf32> to vector<8x32xf32>
    %cst_175 = arith.constant dense<0.000000e+00> : vector<16x32xf32>
    %262 = tpu.matmul %259, %261, %cst_175 {dimension_numbers = #tpu.dot_dimension_numbers<[1], [0], [0], [1], [0, 0, 1, 1], [], []>} : vector<16x8xf32>, vector<8x32xf32>, vector<16x32xf32> -> vector<16x32xf32>
    %c1_176 = arith.constant 1 : index
    %c0_177 = arith.constant 0 : index
    %c0_178 = arith.constant 0 : index
    %263 = vector.load %arg13[%c1_176, %c0_177, %c0_178] : memref<12x32x8xf32, #tpu.memory_space<vmem>>, vector<1x32x8xf32>
    %264 = vector.shape_cast %263 : vector<1x32x8xf32> to vector<32x8xf32>
    %cst_179 = arith.constant dense<0.000000e+00> : vector<16x8xf32>
    %265 = tpu.matmul %224, %264, %cst_179 {dimension_numbers = #tpu.dot_dimension_numbers<[1], [0], [0], [1], [0, 0, 1, 1], [], []>} : vector<16x32xf32>, vector<32x8xf32>, vector<16x8xf32> -> vector<16x8xf32>
    %c1_180 = arith.constant 1 : index
    %c0_181 = arith.constant 0 : index
    %c0_182 = arith.constant 0 : index
    %266 = vector.load %arg14[%c1_180, %c0_181, %c0_182] : memref<12x1x8xf32, #tpu.memory_space<vmem>>, vector<1x1x8xf32>
    %267 = vector.shape_cast %266 : vector<1x1x8xf32> to vector<1x8xf32>
    %268 = vector.broadcast %267 : vector<1x8xf32> to vector<16x8xf32>
    %269 = arith.addf %265, %268 : vector<16x8xf32>
    %c5_183 = arith.constant 5 : index
    %c0_184 = arith.constant 0 : index
    %c0_185 = arith.constant 0 : index
    %270 = vector.load %arg13[%c5_183, %c0_184, %c0_185] : memref<12x32x8xf32, #tpu.memory_space<vmem>>, vector<1x32x8xf32>
    %271 = vector.shape_cast %270 : vector<1x32x8xf32> to vector<32x8xf32>
    %cst_186 = arith.constant dense<0.000000e+00> : vector<8x8xf32>
    %272 = tpu.matmul %3, %271, %cst_186 {dimension_numbers = #tpu.dot_dimension_numbers<[1], [0], [0], [1], [0, 0, 1, 1], [], []>} : vector<8x32xf32>, vector<32x8xf32>, vector<8x8xf32> -> vector<8x8xf32>
    %c5_187 = arith.constant 5 : index
    %c0_188 = arith.constant 0 : index
    %c0_189 = arith.constant 0 : index
    %273 = vector.load %arg14[%c5_187, %c0_188, %c0_189] : memref<12x1x8xf32, #tpu.memory_space<vmem>>, vector<1x1x8xf32>
    %274 = vector.shape_cast %273 : vector<1x1x8xf32> to vector<1x8xf32>
    %275 = vector.broadcast %274 : vector<1x8xf32> to vector<8x8xf32>
    %276 = arith.addf %272, %275 : vector<8x8xf32>
    %c9_190 = arith.constant 9 : index
    %c0_191 = arith.constant 0 : index
    %c0_192 = arith.constant 0 : index
    %277 = vector.load %arg13[%c9_190, %c0_191, %c0_192] : memref<12x32x8xf32, #tpu.memory_space<vmem>>, vector<1x32x8xf32>
    %278 = vector.shape_cast %277 : vector<1x32x8xf32> to vector<32x8xf32>
    %cst_193 = arith.constant dense<0.000000e+00> : vector<8x8xf32>
    %279 = tpu.matmul %3, %278, %cst_193 {dimension_numbers = #tpu.dot_dimension_numbers<[1], [0], [0], [1], [0, 0, 1, 1], [], []>} : vector<8x32xf32>, vector<32x8xf32>, vector<8x8xf32> -> vector<8x8xf32>
    %c9_194 = arith.constant 9 : index
    %c0_195 = arith.constant 0 : index
    %c0_196 = arith.constant 0 : index
    %280 = vector.load %arg14[%c9_194, %c0_195, %c0_196] : memref<12x1x8xf32, #tpu.memory_space<vmem>>, vector<1x1x8xf32>
    %281 = vector.shape_cast %280 : vector<1x1x8xf32> to vector<1x8xf32>
    %282 = vector.broadcast %281 : vector<1x8xf32> to vector<8x8xf32>
    %283 = arith.addf %279, %282 : vector<8x8xf32>
    %cst_197 = arith.constant dense<0.000000e+00> : vector<16x8xf32>
    %284 = tpu.matmul %269, %276, %cst_197 {dimension_numbers = #tpu.dot_dimension_numbers<[1], [1], [0], [0], [0, 0, 1, 0], [], []>} : vector<16x8xf32>, vector<8x8xf32>, vector<16x8xf32> -> vector<16x8xf32>
    %cst_198 = arith.constant 0.353553385 : f32
    %285 = vector.broadcast %cst_198 : f32 to vector<16x8xf32>
    %286 = arith.mulf %284, %285 : vector<16x8xf32>
    %cst_199 = arith.constant dense<0xFF800000> : vector<16xf32>
    %287 = vector.multi_reduction <maximumf>, %286, %cst_199 [1] : vector<16x8xf32> to vector<16xf32>
    %288 = vector.shape_cast %287 : vector<16xf32> to vector<16x1xf32>
    %289 = vector.broadcast %288 : vector<16x1xf32> to vector<16x8xf32>
    %290 = arith.subf %286, %289 : vector<16x8xf32>
    %291 = math.exp %290 : vector<16x8xf32>
    %cst_200 = arith.constant dense<0.000000e+00> : vector<16xf32>
    %292 = vector.multi_reduction <add>, %291, %cst_200 [1] : vector<16x8xf32> to vector<16xf32>
    %293 = vector.shape_cast %292 : vector<16xf32> to vector<16x1xf32>
    %294 = tpu.reciprocal %293 {approx = true} : vector<16x1xf32> -> vector<16x1xf32>
    %295 = vector.broadcast %294 : vector<16x1xf32> to vector<16x8xf32>
    %296 = arith.mulf %291, %295 : vector<16x8xf32>
    %cst_201 = arith.constant dense<0.000000e+00> : vector<16x8xf32>
    %297 = tpu.matmul %296, %283, %cst_201 {dimension_numbers = #tpu.dot_dimension_numbers<[1], [0], [0], [1], [0, 0, 1, 1], [], []>} : vector<16x8xf32>, vector<8x8xf32>, vector<16x8xf32> -> vector<16x8xf32>
    %c1_202 = arith.constant 1 : index
    %c0_203 = arith.constant 0 : index
    %c0_204 = arith.constant 0 : index
    %298 = vector.load %arg15[%c1_202, %c0_203, %c0_204] : memref<4x8x32xf32, #tpu.memory_space<vmem>>, vector<1x8x32xf32>
    %299 = vector.shape_cast %298 : vector<1x8x32xf32> to vector<8x32xf32>
    %cst_205 = arith.constant dense<0.000000e+00> : vector<16x32xf32>
    %300 = tpu.matmul %297, %299, %cst_205 {dimension_numbers = #tpu.dot_dimension_numbers<[1], [0], [0], [1], [0, 0, 1, 1], [], []>} : vector<16x8xf32>, vector<8x32xf32>, vector<16x32xf32> -> vector<16x32xf32>
    %301 = arith.addf %262, %300 : vector<16x32xf32>
    %c2_206 = arith.constant 2 : index
    %c0_207 = arith.constant 0 : index
    %c0_208 = arith.constant 0 : index
    %302 = vector.load %arg13[%c2_206, %c0_207, %c0_208] : memref<12x32x8xf32, #tpu.memory_space<vmem>>, vector<1x32x8xf32>
    %303 = vector.shape_cast %302 : vector<1x32x8xf32> to vector<32x8xf32>
    %cst_209 = arith.constant dense<0.000000e+00> : vector<16x8xf32>
    %304 = tpu.matmul %224, %303, %cst_209 {dimension_numbers = #tpu.dot_dimension_numbers<[1], [0], [0], [1], [0, 0, 1, 1], [], []>} : vector<16x32xf32>, vector<32x8xf32>, vector<16x8xf32> -> vector<16x8xf32>
    %c2_210 = arith.constant 2 : index
    %c0_211 = arith.constant 0 : index
    %c0_212 = arith.constant 0 : index
    %305 = vector.load %arg14[%c2_210, %c0_211, %c0_212] : memref<12x1x8xf32, #tpu.memory_space<vmem>>, vector<1x1x8xf32>
    %306 = vector.shape_cast %305 : vector<1x1x8xf32> to vector<1x8xf32>
    %307 = vector.broadcast %306 : vector<1x8xf32> to vector<16x8xf32>
    %308 = arith.addf %304, %307 : vector<16x8xf32>
    %c6_213 = arith.constant 6 : index
    %c0_214 = arith.constant 0 : index
    %c0_215 = arith.constant 0 : index
    %309 = vector.load %arg13[%c6_213, %c0_214, %c0_215] : memref<12x32x8xf32, #tpu.memory_space<vmem>>, vector<1x32x8xf32>
    %310 = vector.shape_cast %309 : vector<1x32x8xf32> to vector<32x8xf32>
    %cst_216 = arith.constant dense<0.000000e+00> : vector<8x8xf32>
    %311 = tpu.matmul %3, %310, %cst_216 {dimension_numbers = #tpu.dot_dimension_numbers<[1], [0], [0], [1], [0, 0, 1, 1], [], []>} : vector<8x32xf32>, vector<32x8xf32>, vector<8x8xf32> -> vector<8x8xf32>
    %c6_217 = arith.constant 6 : index
    %c0_218 = arith.constant 0 : index
    %c0_219 = arith.constant 0 : index
    %312 = vector.load %arg14[%c6_217, %c0_218, %c0_219] : memref<12x1x8xf32, #tpu.memory_space<vmem>>, vector<1x1x8xf32>
    %313 = vector.shape_cast %312 : vector<1x1x8xf32> to vector<1x8xf32>
    %314 = vector.broadcast %313 : vector<1x8xf32> to vector<8x8xf32>
    %315 = arith.addf %311, %314 : vector<8x8xf32>
    %c10_220 = arith.constant 10 : index
    %c0_221 = arith.constant 0 : index
    %c0_222 = arith.constant 0 : index
    %316 = vector.load %arg13[%c10_220, %c0_221, %c0_222] : memref<12x32x8xf32, #tpu.memory_space<vmem>>, vector<1x32x8xf32>
    %317 = vector.shape_cast %316 : vector<1x32x8xf32> to vector<32x8xf32>
    %cst_223 = arith.constant dense<0.000000e+00> : vector<8x8xf32>
    %318 = tpu.matmul %3, %317, %cst_223 {dimension_numbers = #tpu.dot_dimension_numbers<[1], [0], [0], [1], [0, 0, 1, 1], [], []>} : vector<8x32xf32>, vector<32x8xf32>, vector<8x8xf32> -> vector<8x8xf32>
    %c10_224 = arith.constant 10 : index
    %c0_225 = arith.constant 0 : index
    %c0_226 = arith.constant 0 : index
    %319 = vector.load %arg14[%c10_224, %c0_225, %c0_226] : memref<12x1x8xf32, #tpu.memory_space<vmem>>, vector<1x1x8xf32>
    %320 = vector.shape_cast %319 : vector<1x1x8xf32> to vector<1x8xf32>
    %321 = vector.broadcast %320 : vector<1x8xf32> to vector<8x8xf32>
    %322 = arith.addf %318, %321 : vector<8x8xf32>
    %cst_227 = arith.constant dense<0.000000e+00> : vector<16x8xf32>
    %323 = tpu.matmul %308, %315, %cst_227 {dimension_numbers = #tpu.dot_dimension_numbers<[1], [1], [0], [0], [0, 0, 1, 0], [], []>} : vector<16x8xf32>, vector<8x8xf32>, vector<16x8xf32> -> vector<16x8xf32>
    %cst_228 = arith.constant 0.353553385 : f32
    %324 = vector.broadcast %cst_228 : f32 to vector<16x8xf32>
    %325 = arith.mulf %323, %324 : vector<16x8xf32>
    %cst_229 = arith.constant dense<0xFF800000> : vector<16xf32>
    %326 = vector.multi_reduction <maximumf>, %325, %cst_229 [1] : vector<16x8xf32> to vector<16xf32>
    %327 = vector.shape_cast %326 : vector<16xf32> to vector<16x1xf32>
    %328 = vector.broadcast %327 : vector<16x1xf32> to vector<16x8xf32>
    %329 = arith.subf %325, %328 : vector<16x8xf32>
    %330 = math.exp %329 : vector<16x8xf32>
    %cst_230 = arith.constant dense<0.000000e+00> : vector<16xf32>
    %331 = vector.multi_reduction <add>, %330, %cst_230 [1] : vector<16x8xf32> to vector<16xf32>
    %332 = vector.shape_cast %331 : vector<16xf32> to vector<16x1xf32>
    %333 = tpu.reciprocal %332 {approx = true} : vector<16x1xf32> -> vector<16x1xf32>
    %334 = vector.broadcast %333 : vector<16x1xf32> to vector<16x8xf32>
    %335 = arith.mulf %330, %334 : vector<16x8xf32>
    %cst_231 = arith.constant dense<0.000000e+00> : vector<16x8xf32>
    %336 = tpu.matmul %335, %322, %cst_231 {dimension_numbers = #tpu.dot_dimension_numbers<[1], [0], [0], [1], [0, 0, 1, 1], [], []>} : vector<16x8xf32>, vector<8x8xf32>, vector<16x8xf32> -> vector<16x8xf32>
    %c2_232 = arith.constant 2 : index
    %c0_233 = arith.constant 0 : index
    %c0_234 = arith.constant 0 : index
    %337 = vector.load %arg15[%c2_232, %c0_233, %c0_234] : memref<4x8x32xf32, #tpu.memory_space<vmem>>, vector<1x8x32xf32>
    %338 = vector.shape_cast %337 : vector<1x8x32xf32> to vector<8x32xf32>
    %cst_235 = arith.constant dense<0.000000e+00> : vector<16x32xf32>
    %339 = tpu.matmul %336, %338, %cst_235 {dimension_numbers = #tpu.dot_dimension_numbers<[1], [0], [0], [1], [0, 0, 1, 1], [], []>} : vector<16x8xf32>, vector<8x32xf32>, vector<16x32xf32> -> vector<16x32xf32>
    %340 = arith.addf %301, %339 : vector<16x32xf32>
    %c3_236 = arith.constant 3 : index
    %c0_237 = arith.constant 0 : index
    %c0_238 = arith.constant 0 : index
    %341 = vector.load %arg13[%c3_236, %c0_237, %c0_238] : memref<12x32x8xf32, #tpu.memory_space<vmem>>, vector<1x32x8xf32>
    %342 = vector.shape_cast %341 : vector<1x32x8xf32> to vector<32x8xf32>
    %cst_239 = arith.constant dense<0.000000e+00> : vector<16x8xf32>
    %343 = tpu.matmul %224, %342, %cst_239 {dimension_numbers = #tpu.dot_dimension_numbers<[1], [0], [0], [1], [0, 0, 1, 1], [], []>} : vector<16x32xf32>, vector<32x8xf32>, vector<16x8xf32> -> vector<16x8xf32>
    %c3_240 = arith.constant 3 : index
    %c0_241 = arith.constant 0 : index
    %c0_242 = arith.constant 0 : index
    %344 = vector.load %arg14[%c3_240, %c0_241, %c0_242] : memref<12x1x8xf32, #tpu.memory_space<vmem>>, vector<1x1x8xf32>
    %345 = vector.shape_cast %344 : vector<1x1x8xf32> to vector<1x8xf32>
    %346 = vector.broadcast %345 : vector<1x8xf32> to vector<16x8xf32>
    %347 = arith.addf %343, %346 : vector<16x8xf32>
    %c7_243 = arith.constant 7 : index
    %c0_244 = arith.constant 0 : index
    %c0_245 = arith.constant 0 : index
    %348 = vector.load %arg13[%c7_243, %c0_244, %c0_245] : memref<12x32x8xf32, #tpu.memory_space<vmem>>, vector<1x32x8xf32>
    %349 = vector.shape_cast %348 : vector<1x32x8xf32> to vector<32x8xf32>
    %cst_246 = arith.constant dense<0.000000e+00> : vector<8x8xf32>
    %350 = tpu.matmul %3, %349, %cst_246 {dimension_numbers = #tpu.dot_dimension_numbers<[1], [0], [0], [1], [0, 0, 1, 1], [], []>} : vector<8x32xf32>, vector<32x8xf32>, vector<8x8xf32> -> vector<8x8xf32>
    %c7_247 = arith.constant 7 : index
    %c0_248 = arith.constant 0 : index
    %c0_249 = arith.constant 0 : index
    %351 = vector.load %arg14[%c7_247, %c0_248, %c0_249] : memref<12x1x8xf32, #tpu.memory_space<vmem>>, vector<1x1x8xf32>
    %352 = vector.shape_cast %351 : vector<1x1x8xf32> to vector<1x8xf32>
    %353 = vector.broadcast %352 : vector<1x8xf32> to vector<8x8xf32>
    %354 = arith.addf %350, %353 : vector<8x8xf32>
    %c11_250 = arith.constant 11 : index
    %c0_251 = arith.constant 0 : index
    %c0_252 = arith.constant 0 : index
    %355 = vector.load %arg13[%c11_250, %c0_251, %c0_252] : memref<12x32x8xf32, #tpu.memory_space<vmem>>, vector<1x32x8xf32>
    %356 = vector.shape_cast %355 : vector<1x32x8xf32> to vector<32x8xf32>
    %cst_253 = arith.constant dense<0.000000e+00> : vector<8x8xf32>
    %357 = tpu.matmul %3, %356, %cst_253 {dimension_numbers = #tpu.dot_dimension_numbers<[1], [0], [0], [1], [0, 0, 1, 1], [], []>} : vector<8x32xf32>, vector<32x8xf32>, vector<8x8xf32> -> vector<8x8xf32>
    %c11_254 = arith.constant 11 : index
    %c0_255 = arith.constant 0 : index
    %c0_256 = arith.constant 0 : index
    %358 = vector.load %arg14[%c11_254, %c0_255, %c0_256] : memref<12x1x8xf32, #tpu.memory_space<vmem>>, vector<1x1x8xf32>
    %359 = vector.shape_cast %358 : vector<1x1x8xf32> to vector<1x8xf32>
    %360 = vector.broadcast %359 : vector<1x8xf32> to vector<8x8xf32>
    %361 = arith.addf %357, %360 : vector<8x8xf32>
    %cst_257 = arith.constant dense<0.000000e+00> : vector<16x8xf32>
    %362 = tpu.matmul %347, %354, %cst_257 {dimension_numbers = #tpu.dot_dimension_numbers<[1], [1], [0], [0], [0, 0, 1, 0], [], []>} : vector<16x8xf32>, vector<8x8xf32>, vector<16x8xf32> -> vector<16x8xf32>
    %cst_258 = arith.constant 0.353553385 : f32
    %363 = vector.broadcast %cst_258 : f32 to vector<16x8xf32>
    %364 = arith.mulf %362, %363 : vector<16x8xf32>
    %cst_259 = arith.constant dense<0xFF800000> : vector<16xf32>
    %365 = vector.multi_reduction <maximumf>, %364, %cst_259 [1] : vector<16x8xf32> to vector<16xf32>
    %366 = vector.shape_cast %365 : vector<16xf32> to vector<16x1xf32>
    %367 = vector.broadcast %366 : vector<16x1xf32> to vector<16x8xf32>
    %368 = arith.subf %364, %367 : vector<16x8xf32>
    %369 = math.exp %368 : vector<16x8xf32>
    %cst_260 = arith.constant dense<0.000000e+00> : vector<16xf32>
    %370 = vector.multi_reduction <add>, %369, %cst_260 [1] : vector<16x8xf32> to vector<16xf32>
    %371 = vector.shape_cast %370 : vector<16xf32> to vector<16x1xf32>
    %372 = tpu.reciprocal %371 {approx = true} : vector<16x1xf32> -> vector<16x1xf32>
    %373 = vector.broadcast %372 : vector<16x1xf32> to vector<16x8xf32>
    %374 = arith.mulf %369, %373 : vector<16x8xf32>
    %cst_261 = arith.constant dense<0.000000e+00> : vector<16x8xf32>
    %375 = tpu.matmul %374, %361, %cst_261 {dimension_numbers = #tpu.dot_dimension_numbers<[1], [0], [0], [1], [0, 0, 1, 1], [], []>} : vector<16x8xf32>, vector<8x8xf32>, vector<16x8xf32> -> vector<16x8xf32>
    %c3_262 = arith.constant 3 : index
    %c0_263 = arith.constant 0 : index
    %c0_264 = arith.constant 0 : index
    %376 = vector.load %arg15[%c3_262, %c0_263, %c0_264] : memref<4x8x32xf32, #tpu.memory_space<vmem>>, vector<1x8x32xf32>
    %377 = vector.shape_cast %376 : vector<1x8x32xf32> to vector<8x32xf32>
    %cst_265 = arith.constant dense<0.000000e+00> : vector<16x32xf32>
    %378 = tpu.matmul %375, %377, %cst_265 {dimension_numbers = #tpu.dot_dimension_numbers<[1], [0], [0], [1], [0, 0, 1, 1], [], []>} : vector<16x8xf32>, vector<8x32xf32>, vector<16x32xf32> -> vector<16x32xf32>
    %379 = arith.addf %340, %378 : vector<16x32xf32>
    %c0_266 = arith.constant 0 : index
    %c0_267 = arith.constant 0 : index
    %380 = vector.load %arg16[%c0_266, %c0_267] : memref<1x32xf32, #tpu.memory_space<vmem>>, vector<1x32xf32>
    %381 = vector.broadcast %380 : vector<1x32xf32> to vector<16x32xf32>
    %382 = arith.addf %379, %381 : vector<16x32xf32>
    %383 = arith.addf %202, %382 : vector<16x32xf32>
    %cst_268 = arith.constant dense<0.000000e+00> : vector<16xf32>
    %384 = vector.multi_reduction <add>, %383, %cst_268 [1] : vector<16x32xf32> to vector<16xf32>
    %385 = vector.shape_cast %384 : vector<16xf32> to vector<16x1xf32>
    %cst_269 = arith.constant 3.200000e+01 : f32
    %386 = vector.broadcast %cst_269 : f32 to vector<16x1xf32>
    %387 = arith.divf %385, %386 : vector<16x1xf32>
    %388 = vector.broadcast %387 : vector<16x1xf32> to vector<16x32xf32>
    %389 = arith.subf %383, %388 : vector<16x32xf32>
    %390 = arith.mulf %389, %389 : vector<16x32xf32>
    %cst_270 = arith.constant dense<0.000000e+00> : vector<16xf32>
    %391 = vector.multi_reduction <add>, %390, %cst_270 [1] : vector<16x32xf32> to vector<16xf32>
    %392 = vector.shape_cast %391 : vector<16xf32> to vector<16x1xf32>
    %cst_271 = arith.constant 3.200000e+01 : f32
    %393 = vector.broadcast %cst_271 : f32 to vector<16x1xf32>
    %394 = arith.divf %392, %393 : vector<16x1xf32>
    %cst_272 = arith.constant 9.99999974E-6 : f32
    %395 = vector.broadcast %cst_272 : f32 to vector<16x1xf32>
    %396 = arith.addf %394, %395 : vector<16x1xf32>
    %397 = math.rsqrt %396 : vector<16x1xf32>
    %398 = vector.broadcast %397 : vector<16x1xf32> to vector<16x32xf32>
    %399 = arith.mulf %389, %398 : vector<16x32xf32>
    %c0_273 = arith.constant 0 : index
    %c0_274 = arith.constant 0 : index
    %400 = vector.load %arg7[%c0_273, %c0_274] : memref<1x32xf32, #tpu.memory_space<vmem>>, vector<1x32xf32>
    %401 = vector.broadcast %400 : vector<1x32xf32> to vector<16x32xf32>
    %402 = arith.mulf %399, %401 : vector<16x32xf32>
    %c0_275 = arith.constant 0 : index
    %c0_276 = arith.constant 0 : index
    %403 = vector.load %arg8[%c0_275, %c0_276] : memref<1x32xf32, #tpu.memory_space<vmem>>, vector<1x32xf32>
    %404 = vector.broadcast %403 : vector<1x32xf32> to vector<16x32xf32>
    %405 = arith.addf %402, %404 : vector<16x32xf32>
    %c0_277 = arith.constant 0 : index
    %c0_278 = arith.constant 0 : index
    %c0_279 = arith.constant 0 : index
    %406 = vector.load %arg9[%c0_277, %c0_278, %c0_279] : memref<12x32x8xf32, #tpu.memory_space<vmem>>, vector<1x32x8xf32>
    %407 = vector.shape_cast %406 : vector<1x32x8xf32> to vector<32x8xf32>
    %cst_280 = arith.constant dense<0.000000e+00> : vector<16x8xf32>
    %408 = tpu.matmul %405, %407, %cst_280 {dimension_numbers = #tpu.dot_dimension_numbers<[1], [0], [0], [1], [0, 0, 1, 1], [], []>} : vector<16x32xf32>, vector<32x8xf32>, vector<16x8xf32> -> vector<16x8xf32>
    %c0_281 = arith.constant 0 : index
    %c0_282 = arith.constant 0 : index
    %c0_283 = arith.constant 0 : index
    %409 = vector.load %arg10[%c0_281, %c0_282, %c0_283] : memref<12x1x8xf32, #tpu.memory_space<vmem>>, vector<1x1x8xf32>
    %410 = vector.shape_cast %409 : vector<1x1x8xf32> to vector<1x8xf32>
    %411 = vector.broadcast %410 : vector<1x8xf32> to vector<16x8xf32>
    %412 = arith.addf %408, %411 : vector<16x8xf32>
    %c4_284 = arith.constant 4 : index
    %c0_285 = arith.constant 0 : index
    %c0_286 = arith.constant 0 : index
    %413 = vector.load %arg9[%c4_284, %c0_285, %c0_286] : memref<12x32x8xf32, #tpu.memory_space<vmem>>, vector<1x32x8xf32>
    %414 = vector.shape_cast %413 : vector<1x32x8xf32> to vector<32x8xf32>
    %cst_287 = arith.constant dense<0.000000e+00> : vector<16x8xf32>
    %415 = tpu.matmul %405, %414, %cst_287 {dimension_numbers = #tpu.dot_dimension_numbers<[1], [0], [0], [1], [0, 0, 1, 1], [], []>} : vector<16x32xf32>, vector<32x8xf32>, vector<16x8xf32> -> vector<16x8xf32>
    %c4_288 = arith.constant 4 : index
    %c0_289 = arith.constant 0 : index
    %c0_290 = arith.constant 0 : index
    %416 = vector.load %arg10[%c4_288, %c0_289, %c0_290] : memref<12x1x8xf32, #tpu.memory_space<vmem>>, vector<1x1x8xf32>
    %417 = vector.shape_cast %416 : vector<1x1x8xf32> to vector<1x8xf32>
    %418 = vector.broadcast %417 : vector<1x8xf32> to vector<16x8xf32>
    %419 = arith.addf %415, %418 : vector<16x8xf32>
    %c8_291 = arith.constant 8 : index
    %c0_292 = arith.constant 0 : index
    %c0_293 = arith.constant 0 : index
    %420 = vector.load %arg9[%c8_291, %c0_292, %c0_293] : memref<12x32x8xf32, #tpu.memory_space<vmem>>, vector<1x32x8xf32>
    %421 = vector.shape_cast %420 : vector<1x32x8xf32> to vector<32x8xf32>
    %cst_294 = arith.constant dense<0.000000e+00> : vector<16x8xf32>
    %422 = tpu.matmul %405, %421, %cst_294 {dimension_numbers = #tpu.dot_dimension_numbers<[1], [0], [0], [1], [0, 0, 1, 1], [], []>} : vector<16x32xf32>, vector<32x8xf32>, vector<16x8xf32> -> vector<16x8xf32>
    %c8_295 = arith.constant 8 : index
    %c0_296 = arith.constant 0 : index
    %c0_297 = arith.constant 0 : index
    %423 = vector.load %arg10[%c8_295, %c0_296, %c0_297] : memref<12x1x8xf32, #tpu.memory_space<vmem>>, vector<1x1x8xf32>
    %424 = vector.shape_cast %423 : vector<1x1x8xf32> to vector<1x8xf32>
    %425 = vector.broadcast %424 : vector<1x8xf32> to vector<16x8xf32>
    %426 = arith.addf %422, %425 : vector<16x8xf32>
    %cst_298 = arith.constant dense<0.000000e+00> : vector<16x16xf32>
    %427 = tpu.matmul %412, %419, %cst_298 {dimension_numbers = #tpu.dot_dimension_numbers<[1], [1], [0], [0], [0, 0, 1, 0], [], []>} : vector<16x8xf32>, vector<16x8xf32>, vector<16x16xf32> -> vector<16x16xf32>
    %cst_299 = arith.constant 0.353553385 : f32
    %428 = vector.broadcast %cst_299 : f32 to vector<16x16xf32>
    %429 = arith.mulf %427, %428 : vector<16x16xf32>
    %cst_300 = arith.constant dense<0xFF800000> : vector<16xf32>
    %430 = vector.multi_reduction <maximumf>, %429, %cst_300 [1] : vector<16x16xf32> to vector<16xf32>
    %431 = vector.shape_cast %430 : vector<16xf32> to vector<16x1xf32>
    %432 = vector.broadcast %431 : vector<16x1xf32> to vector<16x16xf32>
    %433 = arith.subf %429, %432 : vector<16x16xf32>
    %434 = math.exp %433 : vector<16x16xf32>
    %cst_301 = arith.constant dense<0.000000e+00> : vector<16xf32>
    %435 = vector.multi_reduction <add>, %434, %cst_301 [1] : vector<16x16xf32> to vector<16xf32>
    %436 = vector.shape_cast %435 : vector<16xf32> to vector<16x1xf32>
    %437 = tpu.reciprocal %436 {approx = true} : vector<16x1xf32> -> vector<16x1xf32>
    %438 = vector.broadcast %437 : vector<16x1xf32> to vector<16x16xf32>
    %439 = arith.mulf %434, %438 : vector<16x16xf32>
    %cst_302 = arith.constant dense<0.000000e+00> : vector<16x8xf32>
    %440 = tpu.matmul %439, %426, %cst_302 {dimension_numbers = #tpu.dot_dimension_numbers<[1], [0], [0], [1], [0, 0, 1, 1], [], []>} : vector<16x16xf32>, vector<16x8xf32>, vector<16x8xf32> -> vector<16x8xf32>
    %c0_303 = arith.constant 0 : index
    %c0_304 = arith.constant 0 : index
    %c0_305 = arith.constant 0 : index
    %441 = vector.load %arg11[%c0_303, %c0_304, %c0_305] : memref<4x8x32xf32, #tpu.memory_space<vmem>>, vector<1x8x32xf32>
    %442 = vector.shape_cast %441 : vector<1x8x32xf32> to vector<8x32xf32>
    %cst_306 = arith.constant dense<0.000000e+00> : vector<16x32xf32>
    %443 = tpu.matmul %440, %442, %cst_306 {dimension_numbers = #tpu.dot_dimension_numbers<[1], [0], [0], [1], [0, 0, 1, 1], [], []>} : vector<16x8xf32>, vector<8x32xf32>, vector<16x32xf32> -> vector<16x32xf32>
    %c1_307 = arith.constant 1 : index
    %c0_308 = arith.constant 0 : index
    %c0_309 = arith.constant 0 : index
    %444 = vector.load %arg9[%c1_307, %c0_308, %c0_309] : memref<12x32x8xf32, #tpu.memory_space<vmem>>, vector<1x32x8xf32>
    %445 = vector.shape_cast %444 : vector<1x32x8xf32> to vector<32x8xf32>
    %cst_310 = arith.constant dense<0.000000e+00> : vector<16x8xf32>
    %446 = tpu.matmul %405, %445, %cst_310 {dimension_numbers = #tpu.dot_dimension_numbers<[1], [0], [0], [1], [0, 0, 1, 1], [], []>} : vector<16x32xf32>, vector<32x8xf32>, vector<16x8xf32> -> vector<16x8xf32>
    %c1_311 = arith.constant 1 : index
    %c0_312 = arith.constant 0 : index
    %c0_313 = arith.constant 0 : index
    %447 = vector.load %arg10[%c1_311, %c0_312, %c0_313] : memref<12x1x8xf32, #tpu.memory_space<vmem>>, vector<1x1x8xf32>
    %448 = vector.shape_cast %447 : vector<1x1x8xf32> to vector<1x8xf32>
    %449 = vector.broadcast %448 : vector<1x8xf32> to vector<16x8xf32>
    %450 = arith.addf %446, %449 : vector<16x8xf32>
    %c5_314 = arith.constant 5 : index
    %c0_315 = arith.constant 0 : index
    %c0_316 = arith.constant 0 : index
    %451 = vector.load %arg9[%c5_314, %c0_315, %c0_316] : memref<12x32x8xf32, #tpu.memory_space<vmem>>, vector<1x32x8xf32>
    %452 = vector.shape_cast %451 : vector<1x32x8xf32> to vector<32x8xf32>
    %cst_317 = arith.constant dense<0.000000e+00> : vector<16x8xf32>
    %453 = tpu.matmul %405, %452, %cst_317 {dimension_numbers = #tpu.dot_dimension_numbers<[1], [0], [0], [1], [0, 0, 1, 1], [], []>} : vector<16x32xf32>, vector<32x8xf32>, vector<16x8xf32> -> vector<16x8xf32>
    %c5_318 = arith.constant 5 : index
    %c0_319 = arith.constant 0 : index
    %c0_320 = arith.constant 0 : index
    %454 = vector.load %arg10[%c5_318, %c0_319, %c0_320] : memref<12x1x8xf32, #tpu.memory_space<vmem>>, vector<1x1x8xf32>
    %455 = vector.shape_cast %454 : vector<1x1x8xf32> to vector<1x8xf32>
    %456 = vector.broadcast %455 : vector<1x8xf32> to vector<16x8xf32>
    %457 = arith.addf %453, %456 : vector<16x8xf32>
    %c9_321 = arith.constant 9 : index
    %c0_322 = arith.constant 0 : index
    %c0_323 = arith.constant 0 : index
    %458 = vector.load %arg9[%c9_321, %c0_322, %c0_323] : memref<12x32x8xf32, #tpu.memory_space<vmem>>, vector<1x32x8xf32>
    %459 = vector.shape_cast %458 : vector<1x32x8xf32> to vector<32x8xf32>
    %cst_324 = arith.constant dense<0.000000e+00> : vector<16x8xf32>
    %460 = tpu.matmul %405, %459, %cst_324 {dimension_numbers = #tpu.dot_dimension_numbers<[1], [0], [0], [1], [0, 0, 1, 1], [], []>} : vector<16x32xf32>, vector<32x8xf32>, vector<16x8xf32> -> vector<16x8xf32>
    %c9_325 = arith.constant 9 : index
    %c0_326 = arith.constant 0 : index
    %c0_327 = arith.constant 0 : index
    %461 = vector.load %arg10[%c9_325, %c0_326, %c0_327] : memref<12x1x8xf32, #tpu.memory_space<vmem>>, vector<1x1x8xf32>
    %462 = vector.shape_cast %461 : vector<1x1x8xf32> to vector<1x8xf32>
    %463 = vector.broadcast %462 : vector<1x8xf32> to vector<16x8xf32>
    %464 = arith.addf %460, %463 : vector<16x8xf32>
    %cst_328 = arith.constant dense<0.000000e+00> : vector<16x16xf32>
    %465 = tpu.matmul %450, %457, %cst_328 {dimension_numbers = #tpu.dot_dimension_numbers<[1], [1], [0], [0], [0, 0, 1, 0], [], []>} : vector<16x8xf32>, vector<16x8xf32>, vector<16x16xf32> -> vector<16x16xf32>
    %cst_329 = arith.constant 0.353553385 : f32
    %466 = vector.broadcast %cst_329 : f32 to vector<16x16xf32>
    %467 = arith.mulf %465, %466 : vector<16x16xf32>
    %cst_330 = arith.constant dense<0xFF800000> : vector<16xf32>
    %468 = vector.multi_reduction <maximumf>, %467, %cst_330 [1] : vector<16x16xf32> to vector<16xf32>
    %469 = vector.shape_cast %468 : vector<16xf32> to vector<16x1xf32>
    %470 = vector.broadcast %469 : vector<16x1xf32> to vector<16x16xf32>
    %471 = arith.subf %467, %470 : vector<16x16xf32>
    %472 = math.exp %471 : vector<16x16xf32>
    %cst_331 = arith.constant dense<0.000000e+00> : vector<16xf32>
    %473 = vector.multi_reduction <add>, %472, %cst_331 [1] : vector<16x16xf32> to vector<16xf32>
    %474 = vector.shape_cast %473 : vector<16xf32> to vector<16x1xf32>
    %475 = tpu.reciprocal %474 {approx = true} : vector<16x1xf32> -> vector<16x1xf32>
    %476 = vector.broadcast %475 : vector<16x1xf32> to vector<16x16xf32>
    %477 = arith.mulf %472, %476 : vector<16x16xf32>
    %cst_332 = arith.constant dense<0.000000e+00> : vector<16x8xf32>
    %478 = tpu.matmul %477, %464, %cst_332 {dimension_numbers = #tpu.dot_dimension_numbers<[1], [0], [0], [1], [0, 0, 1, 1], [], []>} : vector<16x16xf32>, vector<16x8xf32>, vector<16x8xf32> -> vector<16x8xf32>
    %c1_333 = arith.constant 1 : index
    %c0_334 = arith.constant 0 : index
    %c0_335 = arith.constant 0 : index
    %479 = vector.load %arg11[%c1_333, %c0_334, %c0_335] : memref<4x8x32xf32, #tpu.memory_space<vmem>>, vector<1x8x32xf32>
    %480 = vector.shape_cast %479 : vector<1x8x32xf32> to vector<8x32xf32>
    %cst_336 = arith.constant dense<0.000000e+00> : vector<16x32xf32>
    %481 = tpu.matmul %478, %480, %cst_336 {dimension_numbers = #tpu.dot_dimension_numbers<[1], [0], [0], [1], [0, 0, 1, 1], [], []>} : vector<16x8xf32>, vector<8x32xf32>, vector<16x32xf32> -> vector<16x32xf32>
    %482 = arith.addf %443, %481 : vector<16x32xf32>
    %c2_337 = arith.constant 2 : index
    %c0_338 = arith.constant 0 : index
    %c0_339 = arith.constant 0 : index
    %483 = vector.load %arg9[%c2_337, %c0_338, %c0_339] : memref<12x32x8xf32, #tpu.memory_space<vmem>>, vector<1x32x8xf32>
    %484 = vector.shape_cast %483 : vector<1x32x8xf32> to vector<32x8xf32>
    %cst_340 = arith.constant dense<0.000000e+00> : vector<16x8xf32>
    %485 = tpu.matmul %405, %484, %cst_340 {dimension_numbers = #tpu.dot_dimension_numbers<[1], [0], [0], [1], [0, 0, 1, 1], [], []>} : vector<16x32xf32>, vector<32x8xf32>, vector<16x8xf32> -> vector<16x8xf32>
    %c2_341 = arith.constant 2 : index
    %c0_342 = arith.constant 0 : index
    %c0_343 = arith.constant 0 : index
    %486 = vector.load %arg10[%c2_341, %c0_342, %c0_343] : memref<12x1x8xf32, #tpu.memory_space<vmem>>, vector<1x1x8xf32>
    %487 = vector.shape_cast %486 : vector<1x1x8xf32> to vector<1x8xf32>
    %488 = vector.broadcast %487 : vector<1x8xf32> to vector<16x8xf32>
    %489 = arith.addf %485, %488 : vector<16x8xf32>
    %c6_344 = arith.constant 6 : index
    %c0_345 = arith.constant 0 : index
    %c0_346 = arith.constant 0 : index
    %490 = vector.load %arg9[%c6_344, %c0_345, %c0_346] : memref<12x32x8xf32, #tpu.memory_space<vmem>>, vector<1x32x8xf32>
    %491 = vector.shape_cast %490 : vector<1x32x8xf32> to vector<32x8xf32>
    %cst_347 = arith.constant dense<0.000000e+00> : vector<16x8xf32>
    %492 = tpu.matmul %405, %491, %cst_347 {dimension_numbers = #tpu.dot_dimension_numbers<[1], [0], [0], [1], [0, 0, 1, 1], [], []>} : vector<16x32xf32>, vector<32x8xf32>, vector<16x8xf32> -> vector<16x8xf32>
    %c6_348 = arith.constant 6 : index
    %c0_349 = arith.constant 0 : index
    %c0_350 = arith.constant 0 : index
    %493 = vector.load %arg10[%c6_348, %c0_349, %c0_350] : memref<12x1x8xf32, #tpu.memory_space<vmem>>, vector<1x1x8xf32>
    %494 = vector.shape_cast %493 : vector<1x1x8xf32> to vector<1x8xf32>
    %495 = vector.broadcast %494 : vector<1x8xf32> to vector<16x8xf32>
    %496 = arith.addf %492, %495 : vector<16x8xf32>
    %c10_351 = arith.constant 10 : index
    %c0_352 = arith.constant 0 : index
    %c0_353 = arith.constant 0 : index
    %497 = vector.load %arg9[%c10_351, %c0_352, %c0_353] : memref<12x32x8xf32, #tpu.memory_space<vmem>>, vector<1x32x8xf32>
    %498 = vector.shape_cast %497 : vector<1x32x8xf32> to vector<32x8xf32>
    %cst_354 = arith.constant dense<0.000000e+00> : vector<16x8xf32>
    %499 = tpu.matmul %405, %498, %cst_354 {dimension_numbers = #tpu.dot_dimension_numbers<[1], [0], [0], [1], [0, 0, 1, 1], [], []>} : vector<16x32xf32>, vector<32x8xf32>, vector<16x8xf32> -> vector<16x8xf32>
    %c10_355 = arith.constant 10 : index
    %c0_356 = arith.constant 0 : index
    %c0_357 = arith.constant 0 : index
    %500 = vector.load %arg10[%c10_355, %c0_356, %c0_357] : memref<12x1x8xf32, #tpu.memory_space<vmem>>, vector<1x1x8xf32>
    %501 = vector.shape_cast %500 : vector<1x1x8xf32> to vector<1x8xf32>
    %502 = vector.broadcast %501 : vector<1x8xf32> to vector<16x8xf32>
    %503 = arith.addf %499, %502 : vector<16x8xf32>
    %cst_358 = arith.constant dense<0.000000e+00> : vector<16x16xf32>
    %504 = tpu.matmul %489, %496, %cst_358 {dimension_numbers = #tpu.dot_dimension_numbers<[1], [1], [0], [0], [0, 0, 1, 0], [], []>} : vector<16x8xf32>, vector<16x8xf32>, vector<16x16xf32> -> vector<16x16xf32>
    %cst_359 = arith.constant 0.353553385 : f32
    %505 = vector.broadcast %cst_359 : f32 to vector<16x16xf32>
    %506 = arith.mulf %504, %505 : vector<16x16xf32>
    %cst_360 = arith.constant dense<0xFF800000> : vector<16xf32>
    %507 = vector.multi_reduction <maximumf>, %506, %cst_360 [1] : vector<16x16xf32> to vector<16xf32>
    %508 = vector.shape_cast %507 : vector<16xf32> to vector<16x1xf32>
    %509 = vector.broadcast %508 : vector<16x1xf32> to vector<16x16xf32>
    %510 = arith.subf %506, %509 : vector<16x16xf32>
    %511 = math.exp %510 : vector<16x16xf32>
    %cst_361 = arith.constant dense<0.000000e+00> : vector<16xf32>
    %512 = vector.multi_reduction <add>, %511, %cst_361 [1] : vector<16x16xf32> to vector<16xf32>
    %513 = vector.shape_cast %512 : vector<16xf32> to vector<16x1xf32>
    %514 = tpu.reciprocal %513 {approx = true} : vector<16x1xf32> -> vector<16x1xf32>
    %515 = vector.broadcast %514 : vector<16x1xf32> to vector<16x16xf32>
    %516 = arith.mulf %511, %515 : vector<16x16xf32>
    %cst_362 = arith.constant dense<0.000000e+00> : vector<16x8xf32>
    %517 = tpu.matmul %516, %503, %cst_362 {dimension_numbers = #tpu.dot_dimension_numbers<[1], [0], [0], [1], [0, 0, 1, 1], [], []>} : vector<16x16xf32>, vector<16x8xf32>, vector<16x8xf32> -> vector<16x8xf32>
    %c2_363 = arith.constant 2 : index
    %c0_364 = arith.constant 0 : index
    %c0_365 = arith.constant 0 : index
    %518 = vector.load %arg11[%c2_363, %c0_364, %c0_365] : memref<4x8x32xf32, #tpu.memory_space<vmem>>, vector<1x8x32xf32>
    %519 = vector.shape_cast %518 : vector<1x8x32xf32> to vector<8x32xf32>
    %cst_366 = arith.constant dense<0.000000e+00> : vector<16x32xf32>
    %520 = tpu.matmul %517, %519, %cst_366 {dimension_numbers = #tpu.dot_dimension_numbers<[1], [0], [0], [1], [0, 0, 1, 1], [], []>} : vector<16x8xf32>, vector<8x32xf32>, vector<16x32xf32> -> vector<16x32xf32>
    %521 = arith.addf %482, %520 : vector<16x32xf32>
    %c3_367 = arith.constant 3 : index
    %c0_368 = arith.constant 0 : index
    %c0_369 = arith.constant 0 : index
    %522 = vector.load %arg9[%c3_367, %c0_368, %c0_369] : memref<12x32x8xf32, #tpu.memory_space<vmem>>, vector<1x32x8xf32>
    %523 = vector.shape_cast %522 : vector<1x32x8xf32> to vector<32x8xf32>
    %cst_370 = arith.constant dense<0.000000e+00> : vector<16x8xf32>
    %524 = tpu.matmul %405, %523, %cst_370 {dimension_numbers = #tpu.dot_dimension_numbers<[1], [0], [0], [1], [0, 0, 1, 1], [], []>} : vector<16x32xf32>, vector<32x8xf32>, vector<16x8xf32> -> vector<16x8xf32>
    %c3_371 = arith.constant 3 : index
    %c0_372 = arith.constant 0 : index
    %c0_373 = arith.constant 0 : index
    %525 = vector.load %arg10[%c3_371, %c0_372, %c0_373] : memref<12x1x8xf32, #tpu.memory_space<vmem>>, vector<1x1x8xf32>
    %526 = vector.shape_cast %525 : vector<1x1x8xf32> to vector<1x8xf32>
    %527 = vector.broadcast %526 : vector<1x8xf32> to vector<16x8xf32>
    %528 = arith.addf %524, %527 : vector<16x8xf32>
    %c7_374 = arith.constant 7 : index
    %c0_375 = arith.constant 0 : index
    %c0_376 = arith.constant 0 : index
    %529 = vector.load %arg9[%c7_374, %c0_375, %c0_376] : memref<12x32x8xf32, #tpu.memory_space<vmem>>, vector<1x32x8xf32>
    %530 = vector.shape_cast %529 : vector<1x32x8xf32> to vector<32x8xf32>
    %cst_377 = arith.constant dense<0.000000e+00> : vector<16x8xf32>
    %531 = tpu.matmul %405, %530, %cst_377 {dimension_numbers = #tpu.dot_dimension_numbers<[1], [0], [0], [1], [0, 0, 1, 1], [], []>} : vector<16x32xf32>, vector<32x8xf32>, vector<16x8xf32> -> vector<16x8xf32>
    %c7_378 = arith.constant 7 : index
    %c0_379 = arith.constant 0 : index
    %c0_380 = arith.constant 0 : index
    %532 = vector.load %arg10[%c7_378, %c0_379, %c0_380] : memref<12x1x8xf32, #tpu.memory_space<vmem>>, vector<1x1x8xf32>
    %533 = vector.shape_cast %532 : vector<1x1x8xf32> to vector<1x8xf32>
    %534 = vector.broadcast %533 : vector<1x8xf32> to vector<16x8xf32>
    %535 = arith.addf %531, %534 : vector<16x8xf32>
    %c11_381 = arith.constant 11 : index
    %c0_382 = arith.constant 0 : index
    %c0_383 = arith.constant 0 : index
    %536 = vector.load %arg9[%c11_381, %c0_382, %c0_383] : memref<12x32x8xf32, #tpu.memory_space<vmem>>, vector<1x32x8xf32>
    %537 = vector.shape_cast %536 : vector<1x32x8xf32> to vector<32x8xf32>
    %cst_384 = arith.constant dense<0.000000e+00> : vector<16x8xf32>
    %538 = tpu.matmul %405, %537, %cst_384 {dimension_numbers = #tpu.dot_dimension_numbers<[1], [0], [0], [1], [0, 0, 1, 1], [], []>} : vector<16x32xf32>, vector<32x8xf32>, vector<16x8xf32> -> vector<16x8xf32>
    %c11_385 = arith.constant 11 : index
    %c0_386 = arith.constant 0 : index
    %c0_387 = arith.constant 0 : index
    %539 = vector.load %arg10[%c11_385, %c0_386, %c0_387] : memref<12x1x8xf32, #tpu.memory_space<vmem>>, vector<1x1x8xf32>
    %540 = vector.shape_cast %539 : vector<1x1x8xf32> to vector<1x8xf32>
    %541 = vector.broadcast %540 : vector<1x8xf32> to vector<16x8xf32>
    %542 = arith.addf %538, %541 : vector<16x8xf32>
    %cst_388 = arith.constant dense<0.000000e+00> : vector<16x16xf32>
    %543 = tpu.matmul %528, %535, %cst_388 {dimension_numbers = #tpu.dot_dimension_numbers<[1], [1], [0], [0], [0, 0, 1, 0], [], []>} : vector<16x8xf32>, vector<16x8xf32>, vector<16x16xf32> -> vector<16x16xf32>
    %cst_389 = arith.constant 0.353553385 : f32
    %544 = vector.broadcast %cst_389 : f32 to vector<16x16xf32>
    %545 = arith.mulf %543, %544 : vector<16x16xf32>
    %cst_390 = arith.constant dense<0xFF800000> : vector<16xf32>
    %546 = vector.multi_reduction <maximumf>, %545, %cst_390 [1] : vector<16x16xf32> to vector<16xf32>
    %547 = vector.shape_cast %546 : vector<16xf32> to vector<16x1xf32>
    %548 = vector.broadcast %547 : vector<16x1xf32> to vector<16x16xf32>
    %549 = arith.subf %545, %548 : vector<16x16xf32>
    %550 = math.exp %549 : vector<16x16xf32>
    %cst_391 = arith.constant dense<0.000000e+00> : vector<16xf32>
    %551 = vector.multi_reduction <add>, %550, %cst_391 [1] : vector<16x16xf32> to vector<16xf32>
    %552 = vector.shape_cast %551 : vector<16xf32> to vector<16x1xf32>
    %553 = tpu.reciprocal %552 {approx = true} : vector<16x1xf32> -> vector<16x1xf32>
    %554 = vector.broadcast %553 : vector<16x1xf32> to vector<16x16xf32>
    %555 = arith.mulf %550, %554 : vector<16x16xf32>
    %cst_392 = arith.constant dense<0.000000e+00> : vector<16x8xf32>
    %556 = tpu.matmul %555, %542, %cst_392 {dimension_numbers = #tpu.dot_dimension_numbers<[1], [0], [0], [1], [0, 0, 1, 1], [], []>} : vector<16x16xf32>, vector<16x8xf32>, vector<16x8xf32> -> vector<16x8xf32>
    %c3_393 = arith.constant 3 : index
    %c0_394 = arith.constant 0 : index
    %c0_395 = arith.constant 0 : index
    %557 = vector.load %arg11[%c3_393, %c0_394, %c0_395] : memref<4x8x32xf32, #tpu.memory_space<vmem>>, vector<1x8x32xf32>
    %558 = vector.shape_cast %557 : vector<1x8x32xf32> to vector<8x32xf32>
    %cst_396 = arith.constant dense<0.000000e+00> : vector<16x32xf32>
    %559 = tpu.matmul %556, %558, %cst_396 {dimension_numbers = #tpu.dot_dimension_numbers<[1], [0], [0], [1], [0, 0, 1, 1], [], []>} : vector<16x8xf32>, vector<8x32xf32>, vector<16x32xf32> -> vector<16x32xf32>
    %560 = arith.addf %521, %559 : vector<16x32xf32>
    %c0_397 = arith.constant 0 : index
    %c0_398 = arith.constant 0 : index
    %561 = vector.load %arg12[%c0_397, %c0_398] : memref<1x32xf32, #tpu.memory_space<vmem>>, vector<1x32xf32>
    %562 = vector.broadcast %561 : vector<1x32xf32> to vector<16x32xf32>
    %563 = arith.addf %560, %562 : vector<16x32xf32>
    %564 = arith.addf %383, %563 : vector<16x32xf32>
    %c0_399 = arith.constant 0 : index
    %c0_400 = arith.constant 0 : index
    %565 = vector.load %arg17[%c0_399, %c0_400] : memref<32x128xf32, #tpu.memory_space<vmem>>, vector<32x128xf32>
    %cst_401 = arith.constant dense<0.000000e+00> : vector<16x128xf32>
    %566 = tpu.matmul %564, %565, %cst_401 {dimension_numbers = #tpu.dot_dimension_numbers<[1], [0], [0], [1], [0, 0, 1, 1], [], []>} : vector<16x32xf32>, vector<32x128xf32>, vector<16x128xf32> -> vector<16x128xf32>
    %c0_402 = arith.constant 0 : index
    %c0_403 = arith.constant 0 : index
    %567 = vector.load %arg18[%c0_402, %c0_403] : memref<1x128xf32, #tpu.memory_space<vmem>>, vector<1x128xf32>
    %568 = vector.broadcast %567 : vector<1x128xf32> to vector<16x128xf32>
    %569 = arith.addf %566, %568 : vector<16x128xf32>
    %cst_404 = arith.constant 5.000000e-01 : f32
    %570 = vector.broadcast %cst_404 : f32 to vector<16x128xf32>
    %571 = arith.mulf %569, %570 : vector<16x128xf32>
    %cst_405 = arith.constant 0.707106769 : f32
    %572 = vector.broadcast %cst_405 : f32 to vector<16x128xf32>
    %573 = arith.mulf %569, %572 : vector<16x128xf32>
    %574 = math.erf %573 : vector<16x128xf32>
    %cst_406 = arith.constant 1.000000e+00 : f32
    %575 = vector.broadcast %cst_406 : f32 to vector<16x128xf32>
    %576 = arith.addf %575, %574 : vector<16x128xf32>
    %577 = arith.mulf %571, %576 : vector<16x128xf32>
    %c0_407 = arith.constant 0 : index
    %c0_408 = arith.constant 0 : index
    %578 = vector.load %arg19[%c0_407, %c0_408] : memref<128x32xf32, #tpu.memory_space<vmem>>, vector<128x32xf32>
    %cst_409 = arith.constant dense<0.000000e+00> : vector<16x32xf32>
    %579 = tpu.matmul %577, %578, %cst_409 {dimension_numbers = #tpu.dot_dimension_numbers<[1], [0], [0], [1], [0, 0, 1, 1], [], []>} : vector<16x128xf32>, vector<128x32xf32>, vector<16x32xf32> -> vector<16x32xf32>
    %c0_410 = arith.constant 0 : index
    %c0_411 = arith.constant 0 : index
    %580 = vector.load %arg20[%c0_410, %c0_411] : memref<1x32xf32, #tpu.memory_space<vmem>>, vector<1x32xf32>
    %581 = vector.broadcast %580 : vector<1x32xf32> to vector<16x32xf32>
    %582 = arith.addf %579, %581 : vector<16x32xf32>
    %c0_412 = arith.constant 0 : index
    %c0_413 = arith.constant 0 : index
    %c0_414 = arith.constant 0 : index
    %583 = vector.load %arg21[%c0_412, %c0_413, %c0_414] : memref<1x16x32xf32, #tpu.memory_space<vmem>>, vector<1x16x32xf32>
    %584 = vector.shape_cast %583 : vector<1x16x32xf32> to vector<16x32xf32>
    %585 = vector.shape_cast %582 : vector<16x32xf32> to vector<1x16x32xf32>
    tpu.vector_store %arg21[%c0_412, %c0_413, %c0_414], %585 {strides = array<i32>} : memref<1x16x32xf32, #tpu.memory_space<vmem>>, vector<1x16x32xf32>,
    return
  }
  func.func @transform_0(%arg0: i32) -> (i32, i32, i32) {
    %c0_i32 = arith.constant 0 : i32
    %c0_i32_0 = arith.constant 0 : i32
    %c0_i32_1 = arith.constant 0 : i32
    return %arg0, %c0_i32, %c0_i32_0 : i32, i32, i32
  }
  func.func @transform_1(%arg0: i32) -> (i32, i32, i32) {
    %c0_i32 = arith.constant 0 : i32
    %c0_i32_0 = arith.constant 0 : i32
    %c0_i32_1 = arith.constant 0 : i32
    return %arg0, %c0_i32, %c0_i32_0 : i32, i32, i32
  }
  func.func @transform_2(%arg0: i32) -> (i32, i32) {
    %c0_i32 = arith.constant 0 : i32
    %c0_i32_0 = arith.constant 0 : i32
    %c0_i32_1 = arith.constant 0 : i32
    return %c0_i32, %c0_i32_0 : i32, i32
  }
  func.func @transform_3(%arg0: i32) -> (i32, i32) {
    %c0_i32 = arith.constant 0 : i32
    %c0_i32_0 = arith.constant 0 : i32
    %c0_i32_1 = arith.constant 0 : i32
    return %c0_i32, %c0_i32_0 : i32, i32
  }
  func.func @transform_4(%arg0: i32) -> (i32, i32) {
    %c0_i32 = arith.constant 0 : i32
    %c0_i32_0 = arith.constant 0 : i32
    %c0_i32_1 = arith.constant 0 : i32
    return %c0_i32, %c0_i32_0 : i32, i32
  }
  func.func @transform_5(%arg0: i32) -> (i32, i32) {
    %c0_i32 = arith.constant 0 : i32
    %c0_i32_0 = arith.constant 0 : i32
    %c0_i32_1 = arith.constant 0 : i32
    return %c0_i32, %c0_i32_0 : i32, i32
  }
  func.func @transform_6(%arg0: i32) -> (i32, i32) {
    %c0_i32 = arith.constant 0 : i32
    %c0_i32_0 = arith.constant 0 : i32
    %c0_i32_1 = arith.constant 0 : i32
    return %c0_i32, %c0_i32_0 : i32, i32
  }
  func.func @transform_7(%arg0: i32) -> (i32, i32) {
    %c0_i32 = arith.constant 0 : i32
    %c0_i32_0 = arith.constant 0 : i32
    %c0_i32_1 = arith.constant 0 : i32
    return %c0_i32, %c0_i32_0 : i32, i32
  }
  func.func @transform_8(%arg0: i32) -> (i32, i32, i32) {
    %c0_i32 = arith.constant 0 : i32
    %c0_i32_0 = arith.constant 0 : i32
    %c0_i32_1 = arith.constant 0 : i32
    %c0_i32_2 = arith.constant 0 : i32
    return %c0_i32, %c0_i32_0, %c0_i32_1 : i32, i32, i32
  }
  func.func @transform_9(%arg0: i32) -> (i32, i32, i32) {
    %c0_i32 = arith.constant 0 : i32
    %c0_i32_0 = arith.constant 0 : i32
    %c0_i32_1 = arith.constant 0 : i32
    %c0_i32_2 = arith.constant 0 : i32
    return %c0_i32, %c0_i32_0, %c0_i32_1 : i32, i32, i32
  }
  func.func @transform_10(%arg0: i32) -> (i32, i32, i32) {
    %c0_i32 = arith.constant 0 : i32
    %c0_i32_0 = arith.constant 0 : i32
    %c0_i32_1 = arith.constant 0 : i32
    %c0_i32_2 = arith.constant 0 : i32
    return %c0_i32, %c0_i32_0, %c0_i32_1 : i32, i32, i32
  }
  func.func @transform_11(%arg0: i32) -> (i32, i32) {
    %c0_i32 = arith.constant 0 : i32
    %c0_i32_0 = arith.constant 0 : i32
    %c0_i32_1 = arith.constant 0 : i32
    return %c0_i32, %c0_i32_0 : i32, i32
  }
  func.func @transform_12(%arg0: i32) -> (i32, i32, i32) {
    %c0_i32 = arith.constant 0 : i32
    %c0_i32_0 = arith.constant 0 : i32
    %c0_i32_1 = arith.constant 0 : i32
    %c0_i32_2 = arith.constant 0 : i32
    return %c0_i32, %c0_i32_0, %c0_i32_1 : i32, i32, i32
  }
  func.func @transform_13(%arg0: i32) -> (i32, i32, i32) {
    %c0_i32 = arith.constant 0 : i32
    %c0_i32_0 = arith.constant 0 : i32
    %c0_i32_1 = arith.constant 0 : i32
    %c0_i32_2 = arith.constant 0 : i32
    return %c0_i32, %c0_i32_0, %c0_i32_1 : i32, i32, i32
  }
  func.func @transform_14(%arg0: i32) -> (i32, i32, i32) {
    %c0_i32 = arith.constant 0 : i32
    %c0_i32_0 = arith.constant 0 : i32
    %c0_i32_1 = arith.constant 0 : i32
    %c0_i32_2 = arith.constant 0 : i32
    return %c0_i32, %c0_i32_0, %c0_i32_1 : i32, i32, i32
  }
  func.func @transform_15(%arg0: i32) -> (i32, i32) {
    %c0_i32 = arith.constant 0 : i32
    %c0_i32_0 = arith.constant 0 : i32
    %c0_i32_1 = arith.constant 0 : i32
    return %c0_i32, %c0_i32_0 : i32, i32
  }
  func.func @transform_16(%arg0: i32) -> (i32, i32) {
    %c0_i32 = arith.constant 0 : i32
    %c0_i32_0 = arith.constant 0 : i32
    %c0_i32_1 = arith.constant 0 : i32
    return %c0_i32, %c0_i32_0 : i32, i32
  }
  func.func @transform_17(%arg0: i32) -> (i32, i32) {
    %c0_i32 = arith.constant 0 : i32
    %c0_i32_0 = arith.constant 0 : i32
    %c0_i32_1 = arith.constant 0 : i32
    return %c0_i32, %c0_i32_0 : i32, i32
  }
  func.func @transform_18(%arg0: i32) -> (i32, i32) {
    %c0_i32 = arith.constant 0 : i32
    %c0_i32_0 = arith.constant 0 : i32
    %c0_i32_1 = arith.constant 0 : i32
    return %c0_i32, %c0_i32_0 : i32, i32
  }
  func.func @transform_19(%arg0: i32) -> (i32, i32) {
    %c0_i32 = arith.constant 0 : i32
    %c0_i32_0 = arith.constant 0 : i32
    %c0_i32_1 = arith.constant 0 : i32
    return %c0_i32, %c0_i32_0 : i32, i32
  }
  func.func @transform_20(%arg0: i32) -> (i32, i32, i32) {
    %c0_i32 = arith.constant 0 : i32
    %c0_i32_0 = arith.constant 0 : i32
    %c0_i32_1 = arith.constant 0 : i32
    return %arg0, %c0_i32, %c0_i32_0 : i32, i32, i32
  }
}

</mosaic_0001>

<llo_original>
// kernel: transformer_encoder1_forward.1
$region0: #{transformer_encoder1_forward.1}
  #allocation0 [shape = 'u32[]', space=smem, size = 0x4, offset = 0x4, fixed_abs, tag = 'smem constant byte address 0x4 - core index']
  #allocation1 [shape = 'u32[72,128]{1,0:T(1,128)}', space=vmem, size = 0x9000, scoped, tag = 'internal scratch']
  %s0 = inlined_call_operand.vmem [shape: f32[2,16,32], index: 0, kind: input, shape index: {}]
  %s1 = inlined_call_operand.vmem [shape: f32[2,8,32], index: 1, kind: input, shape index: {}]
  %s2 = inlined_call_operand.vmem [shape: f32[1,32], index: 2, kind: input, shape index: {}]
  %s3 = inlined_call_operand.vmem [shape: f32[1,32], index: 3, kind: input, shape index: {}]
  %s4 = inlined_call_operand.vmem [shape: f32[1,32], index: 4, kind: input, shape index: {}]
  %s5 = inlined_call_operand.vmem [shape: f32[1,32], index: 5, kind: input, shape index: {}]
  %s6 = inlined_call_operand.vmem [shape: f32[1,32], index: 6, kind: input, shape index: {}]
  %s7 = inlined_call_operand.vmem [shape: f32[1,32], index: 7, kind: input, shape index: {}]
  %s8 = inlined_call_operand.vmem [shape: f32[12,32,8], index: 8, kind: input, shape index: {}]
  %s9 = inlined_call_operand.vmem [shape: f32[12,1,8], index: 9, kind: input, shape index: {}]
  %s10 = inlined_call_operand.vmem [shape: f32[4,8,32], index: 10, kind: input, shape index: {}]
  %s11 = inlined_call_operand.vmem [shape: f32[1,32], index: 11, kind: input, shape index: {}]
  %s12 = inlined_call_operand.vmem [shape: f32[12,32,8], index: 12, kind: input, shape index: {}]
  %s13 = inlined_call_operand.vmem [shape: f32[12,1,8], index: 13, kind: input, shape index: {}]
  %s14 = inlined_call_operand.vmem [shape: f32[4,8,32], index: 14, kind: input, shape index: {}]
  %s15 = inlined_call_operand.vmem [shape: f32[1,32], index: 15, kind: input, shape index: {}]
  %s16 = inlined_call_operand.vmem [shape: f32[32,128], index: 16, kind: input, shape index: {}]
  %s17 = inlined_call_operand.vmem [shape: f32[1,128], index: 17, kind: input, shape index: {}]
  %s18 = inlined_call_operand.vmem [shape: f32[128,32], index: 18, kind: input, shape index: {}]
  %s19 = inlined_call_operand.vmem [shape: f32[1,32], index: 19, kind: input, shape index: {}]
  %s20 = inlined_call_operand.hbm [shape: f32[2,16,32], index: 20, kind: output, shape index: {}]
  %s21 = sld [smem:[#allocation0]]
  $region113: #{transformer_encoder1_forward.1} parent=0
    _
  %s23 = ssub.s32 1, %s21
  %s24 = scalar_select 0, %s23, %s21
  $region1: #{transformer_encoder1_forward.1} parent=0
    #allocation2 [shape = 'u8[16384]{0}', space=vmem, size = 0x4000, scoped, tag = 'output window, operand 0']
    #allocation3 [shape = 's32[2]{0}', space=sflag, size = 0x8, scoped, tag = 'scoped memory for transformer_encoder1_forward.1']
    %25 = vsyncpa [#allocation3], 0
    %s26 = scalar_lea.sflag [#allocation3], 1
    %27 = vsyncpa %s26, 0
    loop: start=0, step=1, limit=4
    $region2: #{transformer_encoder1_forward.1} parent=1 // loop_pre_header
      _
    $region3: #{transformer_encoder1_forward.1} parent=1 // loop_header
      %s29 = sphi 0, %s33
      %p30 = scmp.ge.s32.totalorder %s29, 4
      %s39 = sphi 0, %s41
      %s42 = sphi 0, %s39
      %s43 = sphi 0, %s42
      %s59 = sphi 0, %s43
      %s65 = sphi 0, %s67
      %s68 = sphi 0, %s65
      %s69 = sphi 0, %s68
      %s85 = sphi 0, %s69
      %s89 = sphi 0, %s89
      %s91 = sphi 0, %s89
      %s92 = sphi 0, %s91
      %s106 = sphi 0, %s92
      %s110 = sphi 0, %s110
      %s112 = sphi 0, %s110
      %s113 = sphi 0, %s112
      %s127 = sphi 0, %s113
      %s131 = sphi 0, %s131
      %s133 = sphi 0, %s131
      %s134 = sphi 0, %s133
      %s148 = sphi 0, %s134
      %s152 = sphi 0, %s152
      %s154 = sphi 0, %s152
      %s155 = sphi 0, %s154
      %s169 = sphi 0, %s155
      %s173 = sphi 0, %s173
      %s175 = sphi 0, %s173
      %s176 = sphi 0, %s175
      %s190 = sphi 0, %s176
      %s194 = sphi 0, %s194
      %s196 = sphi 0, %s194
      %s197 = sphi 0, %s196
      %s211 = sphi 0, %s197
      %s215 = sphi 0, %s215
      %s217 = sphi 0, %s215
      %s218 = sphi 0, %s217
      %s232 = sphi 0, %s218
      %s236 = sphi 0, %s236
      %s238 = sphi 0, %s236
      %s239 = sphi 0, %s238
      %s253 = sphi 0, %s239
      %s257 = sphi 0, %s257
      %s259 = sphi 0, %s257
      %s260 = sphi 0, %s259
      %s274 = sphi 0, %s260
      %s278 = sphi 0, %s278
      %s280 = sphi 0, %s278
      %s281 = sphi 0, %s280
      %s295 = sphi 0, %s281
      %s299 = sphi 0, %s299
      %s301 = sphi 0, %s299
      %s302 = sphi 0, %s301
      %s316 = sphi 0, %s302
      %s320 = sphi 0, %s320
      %s322 = sphi 0, %s320
      %s323 = sphi 0, %s322
      %s337 = sphi 0, %s323
      %s341 = sphi 0, %s341
      %s343 = sphi 0, %s341
      %s344 = sphi 0, %s343
      %s358 = sphi 0, %s344
      %s362 = sphi 0, %s362
      %s364 = sphi 0, %s362
      %s365 = sphi 0, %s364
      %s379 = sphi 0, %s365
      %s383 = sphi 0, %s383
      %s385 = sphi 0, %s383
      %s386 = sphi 0, %s385
      %s400 = sphi 0, %s386
      %s404 = sphi 0, %s404
      %s406 = sphi 0, %s404
      %s407 = sphi 0, %s406
      %s421 = sphi 0, %s407
      %s425 = sphi 0, %s425
      %s427 = sphi 0, %s425
      %s428 = sphi 0, %s427
      %s442 = sphi 0, %s428
      %s446 = sphi 0, %s446
      %s448 = sphi 0, %s446
      %s449 = sphi 0, %s448
      %s463 = sphi 0, %s449
      %s469 = sphi 0, %s471
      %s472 = sphi 0, %s469
      %s473 = sphi 0, %s472
      %s489 = sphi 0, %s473
    $region4: #{transformer_encoder1_forward.1} parent=1 // loop_header_branch
      %32 = sbr.rel (%p30) target = $region8
    $region5: #{transformer_encoder1_forward.1} parent=1 // loop_body
      %s34 = ssub.s32 %s29, 1
      %s35 = ssub.s32 %s29, 2
      %s36 = sadd.s32 %s29, 1
      %s37 = ssub.s32 %s29, %s36
      %p38 = scmp.eq.s32.totalorder %s37, 0
      %s40 = sadd.s32 %s39, 1
      %s41 = scalar_select %p38, %s39, %s40
      %p44 = pneg %p38
      %p45 = scmp.eq.s32.totalorder %s29, 1
      %p46 = por %p44, %p45
      %p47 = scmp.ne.s32.totalorder %s39, %s42
      %p48 = scmp.eq.s32.totalorder %s29, 0
      %p49 = por %p47, %p48
      %p50 = scmp.ne.s32.totalorder %s39, %s42
      %p51 = scmp.eq.s32.totalorder %s34, 1
      %p52 = por %p50, %p51
      %p53 = scmp.ne.s32.totalorder %s42, %s43
      %p54 = scmp.eq.s32.totalorder %s34, 0
      %p55 = por %p53, %p54
      %p56 = scmp.ne.s32.totalorder %s42, %s43
      %p57 = scmp.eq.s32.totalorder %s35, 1
      %p58 = por %p56, %p57
      %p60 = scmp.ne.s32.totalorder %s43, %s59
      %p61 = scmp.eq.s32.totalorder %s35, 0
      %p62 = por %p60, %p61
      %s63 = ssub.s32 %s29, %s36
      %p64 = scmp.eq.s32.totalorder %s63, 0
      %s66 = sadd.s32 %s65, 1
      %s67 = scalar_select %p64, %s65, %s66
      %p70 = pneg %p64
      %p71 = scmp.eq.s32.totalorder %s29, 1
      %p72 = por %p70, %p71
      %p73 = scmp.ne.s32.totalorder %s65, %s68
      %p74 = scmp.eq.s32.totalorder %s29, 0
      %p75 = por %p73, %p74
      %p76 = scmp.ne.s32.totalorder %s65, %s68
      %p77 = scmp.eq.s32.totalorder %s34, 1
      %p78 = por %p76, %p77
      %p79 = scmp.ne.s32.totalorder %s68, %s69
      %p80 = scmp.eq.s32.totalorder %s34, 0
      %p81 = por %p79, %p80
      %p82 = scmp.ne.s32.totalorder %s68, %s69
      %p83 = scmp.eq.s32.totalorder %s35, 1
      %p84 = por %p82, %p83
      %p86 = scmp.ne.s32.totalorder %s69, %s85
      %p87 = scmp.eq.s32.totalorder %s35, 0
      %p88 = por %p86, %p87
      %s90 = sadd.s32 %s89, 1
      %p93 = scmp.eq.s32.totalorder %s29, 1
      %p94 = scmp.ne.s32.totalorder %s89, %s91
      %p95 = scmp.eq.s32.totalorder %s29, 0
      %p96 = por %p94, %p95
      %p97 = scmp.ne.s32.totalorder %s89, %s91
      %p98 = scmp.eq.s32.totalorder %s34, 1
      %p99 = por %p97, %p98
      %p100 = scmp.ne.s32.totalorder %s91, %s92
      %p101 = scmp.eq.s32.totalorder %s34, 0
      %p102 = por %p100, %p101
      %p103 = scmp.ne.s32.totalorder %s91, %s92
      %p104 = scmp.eq.s32.totalorder %s35, 1
      %p105 = por %p103, %p104
      %p107 = scmp.ne.s32.totalorder %s92, %s106
      %p108 = scmp.eq.s32.totalorder %s35, 0
      %p109 = por %p107, %p108
      %s111 = sadd.s32 %s110, 1
      %p114 = scmp.eq.s32.totalorder %s29, 1
      %p115 = scmp.ne.s32.totalorder %s110, %s112
      %p116 = scmp.eq.s32.totalorder %s29, 0
      %p117 = por %p115, %p116
      %p118 = scmp.ne.s32.totalorder %s110, %s112
      %p119 = scmp.eq.s32.totalorder %s34, 1
      %p120 = por %p118, %p119
      %p121 = scmp.ne.s32.totalorder %s112, %s113
      %p122 = scmp.eq.s32.totalorder %s34, 0
      %p123 = por %p121, %p122
      %p124 = scmp.ne.s32.totalorder %s112, %s113
      %p125 = scmp.eq.s32.totalorder %s35, 1
      %p126 = por %p124, %p125
      %p128 = scmp.ne.s32.totalorder %s113, %s127
      %p129 = scmp.eq.s32.totalorder %s35, 0
      %p130 = por %p128, %p129
      %s132 = sadd.s32 %s131, 1
      %p135 = scmp.eq.s32.totalorder %s29, 1
      %p136 = scmp.ne.s32.totalorder %s131, %s133
      %p137 = scmp.eq.s32.totalorder %s29, 0
      %p138 = por %p136, %p137
      %p139 = scmp.ne.s32.totalorder %s131, %s133
      %p140 = scmp.eq.s32.totalorder %s34, 1
      %p141 = por %p139, %p140
      %p142 = scmp.ne.s32.totalorder %s133, %s134
      %p143 = scmp.eq.s32.totalorder %s34, 0
      %p144 = por %p142, %p143
      %p145 = scmp.ne.s32.totalorder %s133, %s134
      %p146 = scmp.eq.s32.totalorder %s35, 1
      %p147 = por %p145, %p146
      %p149 = scmp.ne.s32.totalorder %s134, %s148
      %p150 = scmp.eq.s32.totalorder %s35, 0
      %p151 = por %p149, %p150
      %s153 = sadd.s32 %s152, 1
      %p156 = scmp.eq.s32.totalorder %s29, 1
      %p157 = scmp.ne.s32.totalorder %s152, %s154
      %p158 = scmp.eq.s32.totalorder %s29, 0
      %p159 = por %p157, %p158
      %p160 = scmp.ne.s32.totalorder %s152, %s154
      %p161 = scmp.eq.s32.totalorder %s34, 1
      %p162 = por %p160, %p161
      %p163 = scmp.ne.s32.totalorder %s154, %s155
      %p164 = scmp.eq.s32.totalorder %s34, 0
      %p165 = por %p163, %p164
      %p166 = scmp.ne.s32.totalorder %s154, %s155
      %p167 = scmp.eq.s32.totalorder %s35, 1
      %p168 = por %p166, %p167
      %p170 = scmp.ne.s32.totalorder %s155, %s169
      %p171 = scmp.eq.s32.totalorder %s35, 0
      %p172 = por %p170, %p171
      %s174 = sadd.s32 %s173, 1
      %p177 = scmp.eq.s32.totalorder %s29, 1
      %p178 = scmp.ne.s32.totalorder %s173, %s175
      %p179 = scmp.eq.s32.totalorder %s29, 0
      %p180 = por %p178, %p179
      %p181 = scmp.ne.s32.totalorder %s173, %s175
      %p182 = scmp.eq.s32.totalorder %s34, 1
      %p183 = por %p181, %p182
      %p184 = scmp.ne.s32.totalorder %s175, %s176
      %p185 = scmp.eq.s32.totalorder %s34, 0
      %p186 = por %p184, %p185
      %p187 = scmp.ne.s32.totalorder %s175, %s176
      %p188 = scmp.eq.s32.totalorder %s35, 1
      %p189 = por %p187, %p188
      %p191 = scmp.ne.s32.totalorder %s176, %s190
      %p192 = scmp.eq.s32.totalorder %s35, 0
      %p193 = por %p191, %p192
      %s195 = sadd.s32 %s194, 1
      %p198 = scmp.eq.s32.totalorder %s29, 1
      %p199 = scmp.ne.s32.totalorder %s194, %s196
      %p200 = scmp.eq.s32.totalorder %s29, 0
      %p201 = por %p199, %p200
      %p202 = scmp.ne.s32.totalorder %s194, %s196
      %p203 = scmp.eq.s32.totalorder %s34, 1
      %p204 = por %p202, %p203
      %p205 = scmp.ne.s32.totalorder %s196, %s197
      %p206 = scmp.eq.s32.totalorder %s34, 0
      %p207 = por %p205, %p206
      %p208 = scmp.ne.s32.totalorder %s196, %s197
      %p209 = scmp.eq.s32.totalorder %s35, 1
      %p210 = por %p208, %p209
      %p212 = scmp.ne.s32.totalorder %s197, %s211
      %p213 = scmp.eq.s32.totalorder %s35, 0
      %p214 = por %p212, %p213
      %s216 = sadd.s32 %s215, 1
      %p219 = scmp.eq.s32.totalorder %s29, 1
      %p220 = scmp.ne.s32.totalorder %s215, %s217
      %p221 = scmp.eq.s32.totalorder %s29, 0
      %p222 = por %p220, %p221
      %p223 = scmp.ne.s32.totalorder %s215, %s217
      %p224 = scmp.eq.s32.totalorder %s34, 1
      %p225 = por %p223, %p224
      %p226 = scmp.ne.s32.totalorder %s217, %s218
      %p227 = scmp.eq.s32.totalorder %s34, 0
      %p228 = por %p226, %p227
      %p229 = scmp.ne.s32.totalorder %s217, %s218
      %p230 = scmp.eq.s32.totalorder %s35, 1
      %p231 = por %p229, %p230
      %p233 = scmp.ne.s32.totalorder %s218, %s232
      %p234 = scmp.eq.s32.totalorder %s35, 0
      %p235 = por %p233, %p234
      %s237 = sadd.s32 %s236, 1
      %p240 = scmp.eq.s32.totalorder %s29, 1
      %p241 = scmp.ne.s32.totalorder %s236, %s238
      %p242 = scmp.eq.s32.totalorder %s29, 0
      %p243 = por %p241, %p242
      %p244 = scmp.ne.s32.totalorder %s236, %s238
      %p245 = scmp.eq.s32.totalorder %s34, 1
      %p246 = por %p244, %p245
      %p247 = scmp.ne.s32.totalorder %s238, %s239
      %p248 = scmp.eq.s32.totalorder %s34, 0
      %p249 = por %p247, %p248
      %p250 = scmp.ne.s32.totalorder %s238, %s239
      %p251 = scmp.eq.s32.totalorder %s35, 1
      %p252 = por %p250, %p251
      %p254 = scmp.ne.s32.totalorder %s239, %s253
      %p255 = scmp.eq.s32.totalorder %s35, 0
      %p256 = por %p254, %p255
      %s258 = sadd.s32 %s257, 1
      %p261 = scmp.eq.s32.totalorder %s29, 1
      %p262 = scmp.ne.s32.totalorder %s257, %s259
      %p263 = scmp.eq.s32.totalorder %s29, 0
      %p264 = por %p262, %p263
      %p265 = scmp.ne.s32.totalorder %s257, %s259
      %p266 = scmp.eq.s32.totalorder %s34, 1
      %p267 = por %p265, %p266
      %p268 = scmp.ne.s32.totalorder %s259, %s260
      %p269 = scmp.eq.s32.totalorder %s34, 0
      %p270 = por %p268, %p269
      %p271 = scmp.ne.s32.totalorder %s259, %s260
      %p272 = scmp.eq.s32.totalorder %s35, 1
      %p273 = por %p271, %p272
      %p275 = scmp.ne.s32.totalorder %s260, %s274
      %p276 = scmp.eq.s32.totalorder %s35, 0
      %p277 = por %p275, %p276
      %s279 = sadd.s32 %s278, 1
      %p282 = scmp.eq.s32.totalorder %s29, 1
      %p283 = scmp.ne.s32.totalorder %s278, %s280
      %p284 = scmp.eq.s32.totalorder %s29, 0
      %p285 = por %p283, %p284
      %p286 = scmp.ne.s32.totalorder %s278, %s280
      %p287 = scmp.eq.s32.totalorder %s34, 1
      %p288 = por %p286, %p287
      %p289 = scmp.ne.s32.totalorder %s280, %s281
      %p290 = scmp.eq.s32.totalorder %s34, 0
      %p291 = por %p289, %p290
      %p292 = scmp.ne.s32.totalorder %s280, %s281
      %p293 = scmp.eq.s32.totalorder %s35, 1
      %p294 = por %p292, %p293
      %p296 = scmp.ne.s32.totalorder %s281, %s295
      %p297 = scmp.eq.s32.totalorder %s35, 0
      %p298 = por %p296, %p297
      %s300 = sadd.s32 %s299, 1
      %p303 = scmp.eq.s32.totalorder %s29, 1
      %p304 = scmp.ne.s32.totalorder %s299, %s301
      %p305 = scmp.eq.s32.totalorder %s29, 0
      %p306 = por %p304, %p305
      %p307 = scmp.ne.s32.totalorder %s299, %s301
      %p308 = scmp.eq.s32.totalorder %s34, 1
      %p309 = por %p307, %p308
      %p310 = scmp.ne.s32.totalorder %s301, %s302
      %p311 = scmp.eq.s32.totalorder %s34, 0
      %p312 = por %p310, %p311
      %p313 = scmp.ne.s32.totalorder %s301, %s302
      %p314 = scmp.eq.s32.totalorder %s35, 1
      %p315 = por %p313, %p314
      %p317 = scmp.ne.s32.totalorder %s302, %s316
      %p318 = scmp.eq.s32.totalorder %s35, 0
      %p319 = por %p317, %p318
      %s321 = sadd.s32 %s320, 1
      %p324 = scmp.eq.s32.totalorder %s29, 1
      %p325 = scmp.ne.s32.totalorder %s320, %s322
      %p326 = scmp.eq.s32.totalorder %s29, 0
      %p327 = por %p325, %p326
      %p328 = scmp.ne.s32.totalorder %s320, %s322
      %p329 = scmp.eq.s32.totalorder %s34, 1
      %p330 = por %p328, %p329
      %p331 = scmp.ne.s32.totalorder %s322, %s323
      %p332 = scmp.eq.s32.totalorder %s34, 0
      %p333 = por %p331, %p332
      %p334 = scmp.ne.s32.totalorder %s322, %s323
      %p335 = scmp.eq.s32.totalorder %s35, 1
      %p336 = por %p334, %p335
      %p338 = scmp.ne.s32.totalorder %s323, %s337
      %p339 = scmp.eq.s32.totalorder %s35, 0
      %p340 = por %p338, %p339
      %s342 = sadd.s32 %s341, 1
      %p345 = scmp.eq.s32.totalorder %s29, 1
      %p346 = scmp.ne.s32.totalorder %s341, %s343
      %p347 = scmp.eq.s32.totalorder %s29, 0
      %p348 = por %p346, %p347
      %p349 = scmp.ne.s32.totalorder %s341, %s343
      %p350 = scmp.eq.s32.totalorder %s34, 1
      %p351 = por %p349, %p350
      %p352 = scmp.ne.s32.totalorder %s343, %s344
      %p353 = scmp.eq.s32.totalorder %s34, 0
      %p354 = por %p352, %p353
      %p355 = scmp.ne.s32.totalorder %s343, %s344
      %p356 = scmp.eq.s32.totalorder %s35, 1
      %p357 = por %p355, %p356
      %p359 = scmp.ne.s32.totalorder %s344, %s358
      %p360 = scmp.eq.s32.totalorder %s35, 0
      %p361 = por %p359, %p360
      %s363 = sadd.s32 %s362, 1
      %p366 = scmp.eq.s32.totalorder %s29, 1
      %p367 = scmp.ne.s32.totalorder %s362, %s364
      %p368 = scmp.eq.s32.totalorder %s29, 0
      %p369 = por %p367, %p368
      %p370 = scmp.ne.s32.totalorder %s362, %s364
      %p371 = scmp.eq.s32.totalorder %s34, 1
      %p372 = por %p370, %p371
      %p373 = scmp.ne.s32.totalorder %s364, %s365
      %p374 = scmp.eq.s32.totalorder %s34, 0
      %p375 = por %p373, %p374
      %p376 = scmp.ne.s32.totalorder %s364, %s365
      %p377 = scmp.eq.s32.totalorder %s35, 1
      %p378 = por %p376, %p377
      %p380 = scmp.ne.s32.totalorder %s365, %s379
      %p381 = scmp.eq.s32.totalorder %s35, 0
      %p382 = por %p380, %p381
      %s384 = sadd.s32 %s383, 1
      %p387 = scmp.eq.s32.totalorder %s29, 1
      %p388 = scmp.ne.s32.totalorder %s383, %s385
      %p389 = scmp.eq.s32.totalorder %s29, 0
      %p390 = por %p388, %p389
      %p391 = scmp.ne.s32.totalorder %s383, %s385
      %p392 = scmp.eq.s32.totalorder %s34, 1
      %p393 = por %p391, %p392
      %p394 = scmp.ne.s32.totalorder %s385, %s386
      %p395 = scmp.eq.s32.totalorder %s34, 0
      %p396 = por %p394, %p395
      %p397 = scmp.ne.s32.totalorder %s385, %s386
      %p398 = scmp.eq.s32.totalorder %s35, 1
      %p399 = por %p397, %p398
      %p401 = scmp.ne.s32.totalorder %s386, %s400
      %p402 = scmp.eq.s32.totalorder %s35, 0
      %p403 = por %p401, %p402
      %s405 = sadd.s32 %s404, 1
      %p408 = scmp.eq.s32.totalorder %s29, 1
      %p409 = scmp.ne.s32.totalorder %s404, %s406
      %p410 = scmp.eq.s32.totalorder %s29, 0
      %p411 = por %p409, %p410
      %p412 = scmp.ne.s32.totalorder %s404, %s406
      %p413 = scmp.eq.s32.totalorder %s34, 1
      %p414 = por %p412, %p413
      %p415 = scmp.ne.s32.totalorder %s406, %s407
      %p416 = scmp.eq.s32.totalorder %s34, 0
      %p417 = por %p415, %p416
      %p418 = scmp.ne.s32.totalorder %s406, %s407
      %p419 = scmp.eq.s32.totalorder %s35, 1
      %p420 = por %p418, %p419
      %p422 = scmp.ne.s32.totalorder %s407, %s421
      %p423 = scmp.eq.s32.totalorder %s35, 0
      %p424 = por %p422, %p423
      %s426 = sadd.s32 %s425, 1
      %p429 = scmp.eq.s32.totalorder %s29, 1
      %p430 = scmp.ne.s32.totalorder %s425, %s427
      %p431 = scmp.eq.s32.totalorder %s29, 0
      %p432 = por %p430, %p431
      %p433 = scmp.ne.s32.totalorder %s425, %s427
      %p434 = scmp.eq.s32.totalorder %s34, 1
      %p435 = por %p433, %p434
      %p436 = scmp.ne.s32.totalorder %s427, %s428
      %p437 = scmp.eq.s32.totalorder %s34, 0
      %p438 = por %p436, %p437
      %p439 = scmp.ne.s32.totalorder %s427, %s428
      %p440 = scmp.eq.s32.totalorder %s35, 1
      %p441 = por %p439, %p440
      %p443 = scmp.ne.s32.totalorder %s428, %s442
      %p444 = scmp.eq.s32.totalorder %s35, 0
      %p445 = por %p443, %p444
      %s447 = sadd.s32 %s446, 1
      %p450 = scmp.eq.s32.totalorder %s29, 1
      %p451 = scmp.ne.s32.totalorder %s446, %s448
      %p452 = scmp.eq.s32.totalorder %s29, 0
      %p453 = por %p451, %p452
      %p454 = scmp.ne.s32.totalorder %s446, %s448
      %p455 = scmp.eq.s32.totalorder %s34, 1
      %p456 = por %p454, %p455
      %p457 = scmp.ne.s32.totalorder %s448, %s449
      %p458 = scmp.eq.s32.totalorder %s34, 0
      %p459 = por %p457, %p458
      %p460 = scmp.ne.s32.totalorder %s448, %s449
      %p461 = scmp.eq.s32.totalorder %s35, 1
      %p462 = por %p460, %p461
      %p464 = scmp.ne.s32.totalorder %s449, %s463
      %p465 = scmp.eq.s32.totalorder %s35, 0
      %p466 = por %p464, %p465
      %s467 = ssub.s32 %s29, %s36
      %p468 = scmp.eq.s32.totalorder %s467, 0
      %s470 = sadd.s32 %s469, 1
      %s471 = scalar_select %p468, %s469, %s470
      %p474 = pneg %p468
      %p475 = scmp.eq.s32.totalorder %s29, 1
      %p476 = por %p474, %p475
      %p477 = scmp.ne.s32.totalorder %s469, %s472
      %p478 = scmp.eq.s32.totalorder %s29, 0
      %p479 = por %p477, %p478
      %p480 = scmp.ne.s32.totalorder %s469, %s472
      %p481 = scmp.eq.s32.totalorder %s34, 1
      %p482 = por %p480, %p481
      %p483 = scmp.ne.s32.totalorder %s472, %s473
      %p484 = scmp.eq.s32.totalorder %s34, 0
      %p485 = por %p483, %p484
      %p486 = scmp.ne.s32.totalorder %s472, %s473
      %p487 = scmp.eq.s32.totalorder %s35, 1
      %p488 = por %p486, %p487
      %p490 = scmp.ne.s32.totalorder %s473, %s489
      %p491 = scmp.eq.s32.totalorder %s35, 0
      %p492 = por %p490, %p491
      %p493 = scmp.le.s32.totalorder 1, %s29
      %p494 = scmp.lt.s32.totalorder %s29, 3
      %p495 = pnand %p493, %p494
      %p496 = pneg %p495
      // Predicated region
      $region9: #{transformer_encoder1_forward.1} parent=5 // pred_check
        _
      $region10: #{transformer_encoder1_forward.1} parent=5 // pred_check_branch
        %498 = sbr.rel (%p495) target = $region12
      $region11: #{transformer_encoder1_forward.1} parent=5 // pred_region
        %s499 = ssub.s32 %s29, 1
        // Predicated region
        $region13: #{transformer_encoder1_forward.1} parent=11 // pred_check
          %p500 = pneg %p102
        $region14: #{transformer_encoder1_forward.1} parent=11 // pred_check_branch
          %502 = sbr.rel (%p500) target = $region16
        $region15: #{transformer_encoder1_forward.1} parent=11 // pred_region
          _
        $region16: #{transformer_encoder1_forward.1} parent=11 // pred_fallthru
          _
        // Predicated region
        $region17: #{transformer_encoder1_forward.1} parent=11 // pred_check
          %p503 = pneg %p123
        $region18: #{transformer_encoder1_forward.1} parent=11 // pred_check_branch
          %505 = sbr.rel (%p503) target = $region20
        $region19: #{transformer_encoder1_forward.1} parent=11 // pred_region
          _
        $region20: #{transformer_encoder1_forward.1} parent=11 // pred_fallthru
          _
        // Predicated region
        $region21: #{transformer_encoder1_forward.1} parent=11 // pred_check
          %p506 = pneg %p144
        $region22: #{transformer_encoder1_forward.1} parent=11 // pred_check_branch
          %508 = sbr.rel (%p506) target = $region24
        $region23: #{transformer_encoder1_forward.1} parent=11 // pred_region
          _
        $region24: #{transformer_encoder1_forward.1} parent=11 // pred_fallthru
          _
        // Predicated region
        $region25: #{transformer_encoder1_forward.1} parent=11 // pred_check
          %p509 = pneg %p165
        $region26: #{transformer_encoder1_forward.1} parent=11 // pred_check_branch
          %511 = sbr.rel (%p509) target = $region28
        $region27: #{transformer_encoder1_forward.1} parent=11 // pred_region
          _
        $region28: #{transformer_encoder1_forward.1} parent=11 // pred_fallthru
          _
        // Predicated region
        $region29: #{transformer_encoder1_forward.1} parent=11 // pred_check
          %p512 = pneg %p186
        $region30: #{transformer_encoder1_forward.1} parent=11 // pred_check_branch
          %514 = sbr.rel (%p512) target = $region32
        $region31: #{transformer_encoder1_forward.1} parent=11 // pred_region
          _
        $region32: #{transformer_encoder1_forward.1} parent=11 // pred_fallthru
          _
        // Predicated region
        $region33: #{transformer_encoder1_forward.1} parent=11 // pred_check
          %p515 = pneg %p207
        $region34: #{transformer_encoder1_forward.1} parent=11 // pred_check_branch
          %517 = sbr.rel (%p515) target = $region36
        $region35: #{transformer_encoder1_forward.1} parent=11 // pred_region
          _
        $region36: #{transformer_encoder1_forward.1} parent=11 // pred_fallthru
          _
        // Predicated region
        $region37: #{transformer_encoder1_forward.1} parent=11 // pred_check
          %p518 = pneg %p228
        $region38: #{transformer_encoder1_forward.1} parent=11 // pred_check_branch
          %520 = sbr.rel (%p518) target = $region40
        $region39: #{transformer_encoder1_forward.1} parent=11 // pred_region
          _
        $region40: #{transformer_encoder1_forward.1} parent=11 // pred_fallthru
          _
        // Predicated region
        $region41: #{transformer_encoder1_forward.1} parent=11 // pred_check
          %p521 = pneg %p249
        $region42: #{transformer_encoder1_forward.1} parent=11 // pred_check_branch
          %523 = sbr.rel (%p521) target = $region44
        $region43: #{transformer_encoder1_forward.1} parent=11 // pred_region
          _
        $region44: #{transformer_encoder1_forward.1} parent=11 // pred_fallthru
          _
        // Predicated region
        $region45: #{transformer_encoder1_forward.1} parent=11 // pred_check
          %p524 = pneg %p270
        $region46: #{transformer_encoder1_forward.1} parent=11 // pred_check_branch
          %526 = sbr.rel (%p524) target = $region48
        $region47: #{transformer_encoder1_forward.1} parent=11 // pred_region
          _
        $region48: #{transformer_encoder1_forward.1} parent=11 // pred_fallthru
          _
        // Predicated region
        $region49: #{transformer_encoder1_forward.1} parent=11 // pred_check
          %p527 = pneg %p291
        $region50: #{transformer_encoder1_forward.1} parent=11 // pred_check_branch
          %529 = sbr.rel (%p527) target = $region52
        $region51: #{transformer_encoder1_forward.1} parent=11 // pred_region
          _
        $region52: #{transformer_encoder1_forward.1} parent=11 // pred_fallthru
          _
        // Predicated region
        $region53: #{transformer_encoder1_forward.1} parent=11 // pred_check
          %p530 = pneg %p312
        $region54: #{transformer_encoder1_forward.1} parent=11 // pred_check_branch
          %532 = sbr.rel (%p530) target = $region56
        $region55: #{transformer_encoder1_forward.1} parent=11 // pred_region
          _
        $region56: #{transformer_encoder1_forward.1} parent=11 // pred_fallthru
          _
        // Predicated region
        $region57: #{transformer_encoder1_forward.1} parent=11 // pred_check
          %p533 = pneg %p333
        $region58: #{transformer_encoder1_forward.1} parent=11 // pred_check_branch
          %535 = sbr.rel (%p533) target = $region60
        $region59: #{transformer_encoder1_forward.1} parent=11 // pred_region
          _
        $region60: #{transformer_encoder1_forward.1} parent=11 // pred_fallthru
          _
        // Predicated region
        $region61: #{transformer_encoder1_forward.1} parent=11 // pred_check
          %p536 = pneg %p354
        $region62: #{transformer_encoder1_forward.1} parent=11 // pred_check_branch
          %538 = sbr.rel (%p536) target = $region64
        $region63: #{transformer_encoder1_forward.1} parent=11 // pred_region
          _
        $region64: #{transformer_encoder1_forward.1} parent=11 // pred_fallthru
          _
        // Predicated region
        $region65: #{transformer_encoder1_forward.1} parent=11 // pred_check
          %p539 = pneg %p375
        $region66: #{transformer_encoder1_forward.1} parent=11 // pred_check_branch
          %541 = sbr.rel (%p539) target = $region68
        $region67: #{transformer_encoder1_forward.1} parent=11 // pred_region
          _
        $region68: #{transformer_encoder1_forward.1} parent=11 // pred_fallthru
          _
        // Predicated region
        $region69: #{transformer_encoder1_forward.1} parent=11 // pred_check
          %p542 = pneg %p396
        $region70: #{transformer_encoder1_forward.1} parent=11 // pred_check_branch
          %544 = sbr.rel (%p542) target = $region72
        $region71: #{transformer_encoder1_forward.1} parent=11 // pred_region
          _
        $region72: #{transformer_encoder1_forward.1} parent=11 // pred_fallthru
          _
        // Predicated region
        $region73: #{transformer_encoder1_forward.1} parent=11 // pred_check
          %p545 = pneg %p417
        $region74: #{transformer_encoder1_forward.1} parent=11 // pred_check_branch
          %547 = sbr.rel (%p545) target = $region76
        $region75: #{transformer_encoder1_forward.1} parent=11 // pred_region
          _
        $region76: #{transformer_encoder1_forward.1} parent=11 // pred_fallthru
          _
        // Predicated region
        $region77: #{transformer_encoder1_forward.1} parent=11 // pred_check
          %p548 = pneg %p438
        $region78: #{transformer_encoder1_forward.1} parent=11 // pred_check_branch
          %550 = sbr.rel (%p548) target = $region80
        $region79: #{transformer_encoder1_forward.1} parent=11 // pred_region
          _
        $region80: #{transformer_encoder1_forward.1} parent=11 // pred_fallthru
          _
        // Predicated region
        $region81: #{transformer_encoder1_forward.1} parent=11 // pred_check
          %p551 = pneg %p459
        $region82: #{transformer_encoder1_forward.1} parent=11 // pred_check_branch
          %553 = sbr.rel (%p551) target = $region84
        $region83: #{transformer_encoder1_forward.1} parent=11 // pred_region
          _
        $region84: #{transformer_encoder1_forward.1} parent=11 // pred_fallthru
          _
      $region12: #{transformer_encoder1_forward.1} parent=5 // pred_fallthru
        _
      %p554 = scmp.lt.s32.totalorder %s29, 2
      // Predicated region
      $region85: #{transformer_encoder1_forward.1} parent=5 // pred_check
        %p555 = pneg %p554
      $region86: #{transformer_encoder1_forward.1} parent=5 // pred_check_branch
        %557 = sbr.rel (%p555) target = $region88
      $region87: #{transformer_encoder1_forward.1} parent=5 // pred_region
        // Predicated region
        $region89: #{transformer_encoder1_forward.1} parent=87 // pred_check
          %p558 = pneg %p49
        $region90: #{transformer_encoder1_forward.1} parent=87 // pred_check_branch
          %560 = sbr.rel (%p558) target = $region92
        $region91: #{transformer_encoder1_forward.1} parent=87 // pred_region
          %p561 = scmp.lt.s32.totalorder %s29, 1
          %s562 = scalar_select %p561, %s29, 1
          %s563 = smul.addr %s562, 2
          %s564 = smul.addr %s563, 8
          %s565 = scalar_lea.vmem %s0, %s564
        $region92: #{transformer_encoder1_forward.1} parent=87 // pred_fallthru
          _
        // Predicated region
        $region93: #{transformer_encoder1_forward.1} parent=87 // pred_check
          %p566 = pneg %p75
        $region94: #{transformer_encoder1_forward.1} parent=87 // pred_check_branch
          %568 = sbr.rel (%p566) target = $region96
        $region95: #{transformer_encoder1_forward.1} parent=87 // pred_region
          %p569 = scmp.lt.s32.totalorder %s29, 1
          %s570 = scalar_select %p569, %s29, 1
          %s571 = smul.addr %s570, 8
          %s572 = scalar_lea.vmem %s1, %s571
        $region96: #{transformer_encoder1_forward.1} parent=87 // pred_fallthru
          _
      $region88: #{transformer_encoder1_forward.1} parent=5 // pred_fallthru
        _
      %p573 = scmp.le.s32.totalorder 1, %s29
      %p574 = scmp.lt.s32.totalorder %s29, 3
      %p575 = pnand %p573, %p574
      %p576 = pneg %p575
      // Predicated region
      $region97: #{transformer_encoder1_forward.1} parent=5 // pred_check
        _
      $region98: #{transformer_encoder1_forward.1} parent=5 // pred_check_branch
        %578 = sbr.rel (%p575) target = $region100
      $region99: #{transformer_encoder1_forward.1} parent=5 // pred_region
        %s579 = ssub.s32 %s29, 1
        %p580 = scmp.lt.s32.totalorder %s34, 1
        %s581 = scalar_select %p580, %s34, 1
        %s582 = smul.addr %s581, 2
        %s583 = smul.addr %s582, 8
        %s584 = scalar_lea.vmem %s0, %s583
        %p585 = pneg %p55
        %p586 = pneg %p52
        %p587 = scmp.lt.s32.totalorder %s34, 1
        %s588 = scalar_select %p587, %s34, 1
        %s589 = smul.addr %s588, 8
        %s590 = scalar_lea.vmem %s1, %s589
        %p591 = pneg %p81
        %p592 = pneg %p78
        %p593 = pneg %p102
        %p594 = pneg %p99
        %p595 = pneg %p123
        %p596 = pneg %p120
        %p597 = pneg %p144
        %p598 = pneg %p141
        %p599 = pneg %p165
        %p600 = pneg %p162
        %p601 = pneg %p186
        %p602 = pneg %p183
        %p603 = pneg %p207
        %p604 = pneg %p204
        %p605 = pneg %p228
        %p606 = pneg %p225
        %p607 = pneg %p249
        %p608 = pneg %p246
        %p609 = pneg %p270
        %p610 = pneg %p267
        %p611 = pneg %p291
        %p612 = pneg %p288
        %p613 = pneg %p312
        %p614 = pneg %p309
        %p615 = pneg %p333
        %p616 = pneg %p330
        %p617 = pneg %p354
        %p618 = pneg %p351
        %p619 = pneg %p375
        %p620 = pneg %p372
        %p621 = pneg %p396
        %p622 = pneg %p393
        %p623 = pneg %p417
        %p624 = pneg %p414
        %p625 = pneg %p438
        %p626 = pneg %p435
        %p627 = pneg %p459
        %p628 = pneg %p456
        %p629 = pneg %p485
        %p630 = pneg %p482
        %s631 = sand.u32 %s472, 1
        %s632 = scalar_lea.sflag [#allocation3], %s631
        %s633 = sand.u32 %s472, 1
        %s634 = smul.addr %s633, 16
        %s635 = scalar_lea.vmem [#allocation2], %s634
        %p636 = scmp.lt.s32.totalorder %s34, 1
        %s637 = scalar_select %p636, %s34, 1
        %s638 = smul.addr %s637, 2
        %s639 = smul.addr %s638, 8
        %s640 = scalar_lea.vmem %s0, %s639
        %p641 = scmp.lt.s32.totalorder %s34, 1
        %s642 = scalar_select %p641, %s34, 1
        %s643 = smul.addr %s642, 8
        %s644 = scalar_lea.vmem %s1, %s643
        %v645 = vld [vmem:[%s640] sm:$0xff]
        %v646 = vld [vmem:[%s640 + $0x8] sm:$0xff]
        %v647 = vld [vmem:[%s644] sm:$0xff]
        %vm648 = vcmask 261120
        %v649 = vsel %vm648, %v645, 0.0
        %650 = vadd.xlane.f32.xlu0 %v649
        %v651 = vpop.xlane.xlu0 %650
        %v652 = vsel %vm648, %v646, 0.0
        %653 = vadd.xlane.f32.xlu0 %v652
        %v654 = vpop.xlane.xlu0 %653
        %v655 = vrcp.pop 32.0
        %v656 = vmul.f32 32.0, %v655
        %v657 = vsub.f32 1.0, %v656
        %v658 = vmul.f32 %v655, %v657
        %v659 = vadd.f32 %v655, %v658
        %vm660 = vweird.f32 %v655
        %v661 = vsel %vm660, %v655, %v659
        %v662 = vmul.f32 %v651, %v661
        %v663 = vmul.f32 %v654, %v661
        %v664 = vsub.f32 %v645, %v662
        %v665 = vsub.f32 %v646, %v663
        %v666 = vmul.f32 %v664, %v664
        %v667 = vmul.f32 %v665, %v665
        %v668 = vsel %vm648, %v666, 0.0
        %669 = vadd.xlane.f32.xlu0 %v668
        %v670 = vpop.xlane.xlu0 %669
        %v671 = vsel %vm648, %v667, 0.0
        %672 = vadd.xlane.f32.xlu0 %v671
        %v673 = vpop.xlane.xlu0 %672
        %v674 = vmul.f32 %v670, %v661
        %v675 = vmul.f32 %v673, %v661
        %v676 = vadd.f32 %v674, 1e-05
        %v677 = vadd.f32 %v675, 1e-05
        %v678 = vrsqrt.pop %v676
        %v679 = vmul.f32 %v678, %v676
        %v680 = vmul.f32 %v679, %v678
        %v681 = vmul.f32 0.5, %v680
        %v682 = vsub.f32 1.5, %v681
        %v683 = vmul.f32 %v678, %v682
        %vm684 = vweird.f32 %v676
        %vm685 = vweird.f32 %v678
        %vm686 = vmor %vm684, %vm685
        %v687 = vsel %vm686, %v678, %v683
        %v688 = vrsqrt.pop %v677
        %v689 = vmul.f32 %v688, %v677
        %v690 = vmul.f32 %v689, %v688
        %v691 = vmul.f32 0.5, %v690
        %v692 = vsub.f32 1.5, %v691
        %v693 = vmul.f32 %v688, %v692
        %vm694 = vweird.f32 %v677
        %vm695 = vweird.f32 %v688
        %vm696 = vmor %vm694, %vm695
        %v697 = vsel %vm696, %v688, %v693
        %v698 = vmul.f32 %v664, %v687
        %v699 = vmul.f32 %v665, %v697
        %v700 = vld [vmem:[%s2] sm:$0x1]
        %v702 = vperm.slane %v700, 0
        %v704 = vmul.f32 %v698, %v702
        %v705 = vmul.f32 %v699, %v702
        %v706 = vld [vmem:[%s3] sm:$0x1]
        %v708 = vperm.slane %v706, 0
        %v710 = vadd.f32 %v704, %v708
        %v711 = vadd.f32 %v705, %v708
        %v712 = vld [vmem:[%s8] sm:$0xff]
        %v713 = vld [vmem:[%s8 + $0x8] sm:$0xff]
        %v714 = vld [vmem:[%s8 + $0x10] sm:$0xff]
        %v715 = vld [vmem:[%s8 + $0x18] sm:$0xff]
        %v716 = vld [vmem:[%s9] sm:$0x1]
        %v718 = vperm.slane %v716, 0
        %v721 = vsel %vm648, %v710, 0
        %v724 = vsel %vm648, %v711, 0
        %726 = vmatpush.msra.mxu0 0.0
        %727 = vmatpush.msra.mxu0 0.0
        %728 = vmatpush.msra.mxu0 0.0
        %729 = vmatpush.msra.mxu0 0.0
        %730 = vmatpush.msra.mxu0 0.0
        %731 = vmatpush.msra.mxu0 0.0
        %732 = vmatpush.msra.mxu0 0.0
        %733 = vmatpush.msra.mxu0 0.0
        %734 = vmatpush.msra.mxu0 0.0
        %735 = vmatpush.msra.mxu0 0.0
        %736 = vmatpush.msra.mxu0 0.0
        %737 = vmatpush.msra.mxu0 0.0
        %738 = vmatpush.msra.mxu0 %v715
        %739 = vmatpush.msra.mxu0 %v714
        %740 = vmatpush.msra.mxu0 %v713
        %741 = vmatpush.msra.mxu0 %v712
        %742 = vmatmul.f32.gmra.mxu0 %v721
        %v743 = vpop.f32.mrf.mxu0
        %v744 = vadd.f32 %v718, %v743
        %745 = vmatmul.f32.gmra.mxu0 %v724
        %v746 = vpop.f32.mrf.mxu0
        %v747 = vadd.f32 %v718, %v746
        %748 = vdwg.mxu0
        %s749 = scalar_lea.vmem %s8, 128
        %v750 = vld [vmem:[%s749] sm:$0xff]
        %v751 = vld [vmem:[%s749 + $0x8] sm:$0xff]
        %v752 = vld [vmem:[%s749 + $0x10] sm:$0xff]
        %v753 = vld [vmem:[%s749 + $0x18] sm:$0xff]
        %s754 = scalar_lea.vmem %s9, 4
        %v755 = vld [vmem:[%s754] sm:$0x1]
        %v757 = vperm.slane %v755, 0
        %759 = vmatpush.msra.mxu0 0.0
        %760 = vmatpush.msra.mxu0 0.0
        %761 = vmatpush.msra.mxu0 0.0
        %762 = vmatpush.msra.mxu0 0.0
        %763 = vmatpush.msra.mxu0 0.0
        %764 = vmatpush.msra.mxu0 0.0
        %765 = vmatpush.msra.mxu0 0.0
        %766 = vmatpush.msra.mxu0 0.0
        %767 = vmatpush.msra.mxu0 0.0
        %768 = vmatpush.msra.mxu0 0.0
        %769 = vmatpush.msra.mxu0 0.0
        %770 = vmatpush.msra.mxu0 0.0
        %771 = vmatpush.msra.mxu0 %v753
        %772 = vmatpush.msra.mxu0 %v752
        %773 = vmatpush.msra.mxu0 %v751
        %774 = vmatpush.msra.mxu0 %v750
        %775 = vmatmul.f32.gmra.mxu0 %v721
        %v776 = vpop.f32.mrf.mxu0
        %v777 = vadd.f32 %v757, %v776
        %778 = vmatmul.f32.gmra.mxu0 %v724
        %v779 = vpop.f32.mrf.mxu0
        %v780 = vadd.f32 %v757, %v779
        %781 = vdwg.mxu0
        %s782 = scalar_lea.vmem %s8, 256
        %v783 = vld [vmem:[%s782] sm:$0xff]
        %v784 = vld [vmem:[%s782 + $0x8] sm:$0xff]
        %v785 = vld [vmem:[%s782 + $0x10] sm:$0xff]
        %v786 = vld [vmem:[%s782 + $0x18] sm:$0xff]
        %s787 = scalar_lea.vmem %s9, 8
        %v788 = vld [vmem:[%s787] sm:$0x1]
        %v790 = vperm.slane %v788, 0
        %792 = vmatpush.msra.mxu0 0.0
        %793 = vmatpush.msra.mxu0 0.0
        %794 = vmatpush.msra.mxu0 0.0
        %795 = vmatpush.msra.mxu0 0.0
        %796 = vmatpush.msra.mxu0 0.0
        %797 = vmatpush.msra.mxu0 0.0
        %798 = vmatpush.msra.mxu0 0.0
        %799 = vmatpush.msra.mxu0 0.0
        %800 = vmatpush.msra.mxu0 0.0
        %801 = vmatpush.msra.mxu0 0.0
        %802 = vmatpush.msra.mxu0 0.0
        %803 = vmatpush.msra.mxu0 0.0
        %804 = vmatpush.msra.mxu0 %v786
        %805 = vmatpush.msra.mxu0 %v785
        %806 = vmatpush.msra.mxu0 %v784
        %807 = vmatpush.msra.mxu0 %v783
        %808 = vmatmul.f32.gmra.mxu0 %v721
        %v809 = vpop.f32.mrf.mxu0
        %v810 = vadd.f32 %v790, %v809
        %811 = vmatmul.f32.gmra.mxu0 %v724
        %v812 = vpop.f32.mrf.mxu0
        %v813 = vadd.f32 %v790, %v812
        %814 = vdwg.mxu0
        %vm815 = vcmask 64512
        %v817 = vsel %vm815, %v744, 0
        %v820 = vsel %vm815, %v747, 0
        %v823 = vsel %vm815, %v777, 0
        %v826 = vsel %vm815, %v780, 0
        %828 = vmatpush.xpose.msra.mxu0 0.0
        %829 = vmatpush.xpose.msra.mxu0 0.0
        %830 = vmatpush.xpose.msra.mxu0 0.0
        %831 = vmatpush.xpose.msra.mxu0 0.0
        %832 = vmatpush.xpose.msra.mxu0 0.0
        %833 = vmatpush.xpose.msra.mxu0 0.0
        %834 = vmatpush.xpose.msra.mxu0 0.0
        %835 = vmatpush.xpose.msra.mxu0 0.0
        %836 = vmatpush.xpose.msra.mxu0 0.0
        %837 = vmatpush.xpose.msra.mxu0 0.0
        %838 = vmatpush.xpose.msra.mxu0 0.0
        %839 = vmatpush.xpose.msra.mxu0 0.0
        %840 = vmatpush.xpose.msra.mxu0 0.0
        %841 = vmatpush.xpose.msra.mxu0 0.0
        %842 = vmatpush.xpose.msra.mxu0 %v826
        %843 = vmatpush.xpose.msra.mxu0 %v823
        %844 = vmatmul.f32.gmra.mxu0 %v817
        %v845 = vpop.f32.mrf.mxu0
        %v846 = vadd.f32 0.0, %v845
        %847 = vmatmul.f32.gmra.mxu0 %v820
        %v848 = vpop.f32.mrf.mxu0
        %v849 = vadd.f32 0.0, %v848
        %850 = vdwg.mxu0
        %v851 = vmul.f32 %v846, 0.35355338
        %v852 = vmul.f32 %v849, 0.35355338
        %vm853 = vcmask 130048
        %v854 = vsel %vm853, %v851, -inf
        %855 = vmax.xlane.f32.xlu0 %v854
        %v856 = vpop.xlane.xlu0 %855
        %v857 = vsel %vm853, %v852, -inf
        %858 = vmax.xlane.f32.xlu0 %v857
        %v859 = vpop.xlane.xlu0 %858
        %v860 = vsub.f32 %v851, %v856
        %v861 = vsub.f32 %v852, %v859
        %v862 = vmul.f32 %v860, 1.442695
        %v863 = vpow.pop %v862
        %v864 = vmul.f32 %v861, 1.442695
        %v865 = vpow.pop %v864
        %v866 = vsel %vm853, %v863, 0.0
        %867 = vadd.xlane.f32.xlu0 %v866
        %v868 = vpop.xlane.xlu0 %867
        %v869 = vsel %vm853, %v865, 0.0
        %870 = vadd.xlane.f32.xlu0 %v869
        %v871 = vpop.xlane.xlu0 %870
        %v872 = vrcp.pop %v868
        %v873 = vrcp.pop %v871
        %v874 = vmul.f32 %v863, %v872
        %v875 = vmul.f32 %v865, %v873
        %v877 = vsel %vm853, %v874, 0
        %v880 = vsel %vm853, %v875, 0
        %882 = vmatpush.msra.mxu0 0.0
        %883 = vmatpush.msra.mxu0 0.0
        %884 = vmatpush.msra.mxu0 0.0
        %885 = vmatpush.msra.mxu0 0.0
        %886 = vmatpush.msra.mxu0 0.0
        %887 = vmatpush.msra.mxu0 0.0
        %888 = vmatpush.msra.mxu0 0.0
        %889 = vmatpush.msra.mxu0 0.0
        %890 = vmatpush.msra.mxu0 0.0
        %891 = vmatpush.msra.mxu0 0.0
        %892 = vmatpush.msra.mxu0 0.0
        %893 = vmatpush.msra.mxu0 0.0
        %894 = vmatpush.msra.mxu0 0.0
        %895 = vmatpush.msra.mxu0 0.0
        %896 = vmatpush.msra.mxu0 %v813
        %897 = vmatpush.msra.mxu0 %v810
        %898 = vmatmul.f32.gmra.mxu0 %v877
        %v899 = vpop.f32.mrf.mxu0
        %v900 = vadd.f32 0.0, %v899
        %901 = vmatmul.f32.gmra.mxu0 %v880
        %v902 = vpop.f32.mrf.mxu0
        %v903 = vadd.f32 0.0, %v902
        %904 = vdwg.mxu0
        %v905 = vld [vmem:[%s10] sm:$0xff]
        %s906 = scalar_lea.vmem %s8, 32
        %v907 = vld [vmem:[%s906] sm:$0xff]
        %v908 = vld [vmem:[%s906 + $0x8] sm:$0xff]
        %v909 = vld [vmem:[%s906 + $0x10] sm:$0xff]
        %v910 = vld [vmem:[%s906 + $0x18] sm:$0xff]
        %s911 = scalar_lea.vmem %s9, 1
        %v912 = vld [vmem:[%s911] sm:$0x1]
        %v914 = vperm.slane %v912, 0
        %916 = vmatpush.msra.mxu0 0.0
        %917 = vmatpush.msra.mxu0 0.0
        %918 = vmatpush.msra.mxu0 0.0
        %919 = vmatpush.msra.mxu0 0.0
        %920 = vmatpush.msra.mxu0 0.0
        %921 = vmatpush.msra.mxu0 0.0
        %922 = vmatpush.msra.mxu0 0.0
        %923 = vmatpush.msra.mxu0 0.0
        %924 = vmatpush.msra.mxu0 0.0
        %925 = vmatpush.msra.mxu0 0.0
        %926 = vmatpush.msra.mxu0 0.0
        %927 = vmatpush.msra.mxu0 0.0
        %928 = vmatpush.msra.mxu0 %v910
        %929 = vmatpush.msra.mxu0 %v909
        %930 = vmatpush.msra.mxu0 %v908
        %931 = vmatpush.msra.mxu0 %v907
        %932 = vmatmul.f32.gmra.mxu0 %v721
        %v933 = vpop.f32.mrf.mxu0
        %v934 = vadd.f32 %v914, %v933
        %935 = vmatmul.f32.gmra.mxu0 %v724
        %v936 = vpop.f32.mrf.mxu0
        %v937 = vadd.f32 %v914, %v936
        %938 = vdwg.mxu0
        %s939 = scalar_lea.vmem %s8, 160
        %v940 = vld [vmem:[%s939] sm:$0xff]
        %v941 = vld [vmem:[%s939 + $0x8] sm:$0xff]
        %v942 = vld [vmem:[%s939 + $0x10] sm:$0xff]
        %v943 = vld [vmem:[%s939 + $0x18] sm:$0xff]
        %s944 = scalar_lea.vmem %s9, 5
        %v945 = vld [vmem:[%s944] sm:$0x1]
        %v947 = vperm.slane %v945, 0
        %949 = vmatpush.msra.mxu0 0.0
        %950 = vmatpush.msra.mxu0 0.0
        %951 = vmatpush.msra.mxu0 0.0
        %952 = vmatpush.msra.mxu0 0.0
        %953 = vmatpush.msra.mxu0 0.0
        %954 = vmatpush.msra.mxu0 0.0
        %955 = vmatpush.msra.mxu0 0.0
        %956 = vmatpush.msra.mxu0 0.0
        %957 = vmatpush.msra.mxu0 0.0
        %958 = vmatpush.msra.mxu0 0.0
        %959 = vmatpush.msra.mxu0 0.0
        %960 = vmatpush.msra.mxu0 0.0
        %961 = vmatpush.msra.mxu0 %v943
        %962 = vmatpush.msra.mxu0 %v942
        %963 = vmatpush.msra.mxu0 %v941
        %964 = vmatpush.msra.mxu0 %v940
        %965 = vmatmul.f32.gmra.mxu0 %v721
        %v966 = vpop.f32.mrf.mxu0
        %v967 = vadd.f32 %v947, %v966
        %968 = vmatmul.f32.gmra.mxu0 %v724
        %v969 = vpop.f32.mrf.mxu0
        %v970 = vadd.f32 %v947, %v969
        %971 = vdwg.mxu0
        %s972 = scalar_lea.vmem %s8, 288
        %v973 = vld [vmem:[%s972] sm:$0xff]
        %v974 = vld [vmem:[%s972 + $0x8] sm:$0xff]
        %v975 = vld [vmem:[%s972 + $0x10] sm:$0xff]
        %v976 = vld [vmem:[%s972 + $0x18] sm:$0xff]
        %s977 = scalar_lea.vmem %s9, 9
        %v978 = vld [vmem:[%s977] sm:$0x1]
        %v980 = vperm.slane %v978, 0
        %982 = vmatpush.msra.mxu0 0.0
        %983 = vmatpush.msra.mxu0 0.0
        %984 = vmatpush.msra.mxu0 0.0
        %985 = vmatpush.msra.mxu0 0.0
        %986 = vmatpush.msra.mxu0 0.0
        %987 = vmatpush.msra.mxu0 0.0
        %988 = vmatpush.msra.mxu0 0.0
        %989 = vmatpush.msra.mxu0 0.0
        %990 = vmatpush.msra.mxu0 0.0
        %991 = vmatpush.msra.mxu0 0.0
        %992 = vmatpush.msra.mxu0 0.0
        %993 = vmatpush.msra.mxu0 0.0
        %994 = vmatpush.msra.mxu0 %v976
        %995 = vmatpush.msra.mxu0 %v975
        %996 = vmatpush.msra.mxu0 %v974
        %997 = vmatpush.msra.mxu0 %v973
        %998 = vmatmul.f32.gmra.mxu0 %v721
        %v999 = vpop.f32.mrf.mxu0
        %v1000 = vadd.f32 %v980, %v999
        %1001 = vmatmul.f32.gmra.mxu0 %v724
        %v1002 = vpop.f32.mrf.mxu0
        %v1003 = vadd.f32 %v980, %v1002
        %1004 = vdwg.mxu0
        %v1006 = vsel %vm815, %v934, 0
        %v1009 = vsel %vm815, %v937, 0
        %v1012 = vsel %vm815, %v967, 0
        %v1015 = vsel %vm815, %v970, 0
        %1017 = vmatpush.xpose.msra.mxu0 0.0
        %1018 = vmatpush.xpose.msra.mxu0 0.0
        %1019 = vmatpush.xpose.msra.mxu0 0.0
        %1020 = vmatpush.xpose.msra.mxu0 0.0
        %1021 = vmatpush.xpose.msra.mxu0 0.0
        %1022 = vmatpush.xpose.msra.mxu0 0.0
        %1023 = vmatpush.xpose.msra.mxu0 0.0
        %1024 = vmatpush.xpose.msra.mxu0 0.0
        %1025 = vmatpush.xpose.msra.mxu0 0.0
        %1026 = vmatpush.xpose.msra.mxu0 0.0
        %1027 = vmatpush.xpose.msra.mxu0 0.0
        %1028 = vmatpush.xpose.msra.mxu0 0.0
        %1029 = vmatpush.xpose.msra.mxu0 0.0
        %1030 = vmatpush.xpose.msra.mxu0 0.0
        %1031 = vmatpush.xpose.msra.mxu0 %v1015
        %1032 = vmatpush.xpose.msra.mxu0 %v1012
        %1033 = vmatmul.f32.gmra.mxu0 %v1006
        %v1034 = vpop.f32.mrf.mxu0
        %v1035 = vadd.f32 0.0, %v1034
        %1036 = vmatmul.f32.gmra.mxu0 %v1009
        %v1037 = vpop.f32.mrf.mxu0
        %v1038 = vadd.f32 0.0, %v1037
        %1039 = vdwg.mxu0
        %v1040 = vmul.f32 %v1035, 0.35355338
        %v1041 = vmul.f32 %v1038, 0.35355338
        %v1042 = vsel %vm853, %v1040, -inf
        %1043 = vmax.xlane.f32.xlu0 %v1042
        %v1044 = vpop.xlane.xlu0 %1043
        %v1045 = vsel %vm853, %v1041, -inf
        %1046 = vmax.xlane.f32.xlu0 %v1045
        %v1047 = vpop.xlane.xlu0 %1046
        %v1048 = vsub.f32 %v1040, %v1044
        %v1049 = vsub.f32 %v1041, %v1047
        %v1050 = vmul.f32 %v1048, 1.442695
        %v1051 = vpow.pop %v1050
        %v1052 = vmul.f32 %v1049, 1.442695
        %v1053 = vpow.pop %v1052
        %v1054 = vsel %vm853, %v1051, 0.0
        %1055 = vadd.xlane.f32.xlu0 %v1054
        %v1056 = vpop.xlane.xlu0 %1055
        %v1057 = vsel %vm853, %v1053, 0.0
        %1058 = vadd.xlane.f32.xlu0 %v1057
        %v1059 = vpop.xlane.xlu0 %1058
        %v1060 = vrcp.pop %v1056
        %v1061 = vrcp.pop %v1059
        %v1062 = vmul.f32 %v1051, %v1060
        %v1063 = vmul.f32 %v1053, %v1061
        %v1065 = vsel %vm853, %v1062, 0
        %v1068 = vsel %vm853, %v1063, 0
        %1070 = vmatpush.msra.mxu0 0.0
        %1071 = vmatpush.msra.mxu0 0.0
        %1072 = vmatpush.msra.mxu0 0.0
        %1073 = vmatpush.msra.mxu0 0.0
        %1074 = vmatpush.msra.mxu0 0.0
        %1075 = vmatpush.msra.mxu0 0.0
        %1076 = vmatpush.msra.mxu0 0.0
        %1077 = vmatpush.msra.mxu0 0.0
        %1078 = vmatpush.msra.mxu0 0.0
        %1079 = vmatpush.msra.mxu0 0.0
        %1080 = vmatpush.msra.mxu0 0.0
        %1081 = vmatpush.msra.mxu0 0.0
        %1082 = vmatpush.msra.mxu0 0.0
        %1083 = vmatpush.msra.mxu0 0.0
        %1084 = vmatpush.msra.mxu0 %v1003
        %1085 = vmatpush.msra.mxu0 %v1000
        %1086 = vmatmul.f32.gmra.mxu0 %v1065
        %v1087 = vpop.f32.mrf.mxu0
        %v1088 = vadd.f32 0.0, %v1087
        %1089 = vmatmul.f32.gmra.mxu0 %v1068
        %v1090 = vpop.f32.mrf.mxu0
        %v1091 = vadd.f32 0.0, %v1090
        %1092 = vdwg.mxu0
        %s1093 = scalar_lea.vmem %s10, 8
        %v1094 = vld [vmem:[%s1093] sm:$0xff]
        %v1096 = vsel %vm815, %v1088, 0
        %v1099 = vsel %vm815, %v1091, 0
        %1101 = vmatpush.msra.mxu0 0.0
        %1102 = vmatpush.msra.mxu0 0.0
        %1103 = vmatpush.msra.mxu0 0.0
        %1104 = vmatpush.msra.mxu0 0.0
        %1105 = vmatpush.msra.mxu0 0.0
        %1106 = vmatpush.msra.mxu0 0.0
        %1107 = vmatpush.msra.mxu0 0.0
        %1108 = vmatpush.msra.mxu0 0.0
        %1109 = vmatpush.msra.mxu0 0.0
        %1110 = vmatpush.msra.mxu0 0.0
        %1111 = vmatpush.msra.mxu0 0.0
        %1112 = vmatpush.msra.mxu0 0.0
        %1113 = vmatpush.msra.mxu0 0.0
        %1114 = vmatpush.msra.mxu0 0.0
        %1115 = vmatpush.msra.mxu0 0.0
        %1116 = vmatpush.msra.mxu0 %v1094
        %1117 = vmatmul.f32.gmra.mxu0 %v1096
        %v1118 = vpop.f32.mrf.mxu0
        %v1119 = vadd.f32 0.0, %v1118
        %1120 = vmatmul.f32.gmra.mxu0 %v1099
        %v1121 = vpop.f32.mrf.mxu0
        %v1122 = vadd.f32 0.0, %v1121
        %1123 = vdwg.mxu0
        %v1125 = vsel %vm815, %v900, 0
        %v1128 = vsel %vm815, %v903, 0
        %1130 = vmatpush.msra.mxu0 0.0
        %1131 = vmatpush.msra.mxu0 0.0
        %1132 = vmatpush.msra.mxu0 0.0
        %1133 = vmatpush.msra.mxu0 0.0
        %1134 = vmatpush.msra.mxu0 0.0
        %1135 = vmatpush.msra.mxu0 0.0
        %1136 = vmatpush.msra.mxu0 0.0
        %1137 = vmatpush.msra.mxu0 0.0
        %1138 = vmatpush.msra.mxu0 0.0
        %1139 = vmatpush.msra.mxu0 0.0
        %1140 = vmatpush.msra.mxu0 0.0
        %1141 = vmatpush.msra.mxu0 0.0
        %1142 = vmatpush.msra.mxu0 0.0
        %1143 = vmatpush.msra.mxu0 0.0
        %1144 = vmatpush.msra.mxu0 0.0
        %1145 = vmatpush.msra.mxu0 %v905
        %1146 = vmatmul.f32.gmra.mxu0 %v1125
        %v1147 = vpop.f32.mrf.mxu0
        %v1148 = vadd.f32 %v1119, %v1147
        %1149 = vmatmul.f32.gmra.mxu0 %v1128
        %v1150 = vpop.f32.mrf.mxu0
        %v1151 = vadd.f32 %v1122, %v1150
        %1152 = vdwg.mxu0
        %s1153 = scalar_lea.vmem %s8, 64
        %v1154 = vld [vmem:[%s1153] sm:$0xff]
        %v1155 = vld [vmem:[%s1153 + $0x8] sm:$0xff]
        %v1156 = vld [vmem:[%s1153 + $0x10] sm:$0xff]
        %v1157 = vld [vmem:[%s1153 + $0x18] sm:$0xff]
        %s1158 = scalar_lea.vmem %s9, 2
        %v1159 = vld [vmem:[%s1158] sm:$0x1]
        %v1161 = vperm.slane %v1159, 0
        %1163 = vmatpush.msra.mxu0 0.0
        %1164 = vmatpush.msra.mxu0 0.0
        %1165 = vmatpush.msra.mxu0 0.0
        %1166 = vmatpush.msra.mxu0 0.0
        %1167 = vmatpush.msra.mxu0 0.0
        %1168 = vmatpush.msra.mxu0 0.0
        %1169 = vmatpush.msra.mxu0 0.0
        %1170 = vmatpush.msra.mxu0 0.0
        %1171 = vmatpush.msra.mxu0 0.0
        %1172 = vmatpush.msra.mxu0 0.0
        %1173 = vmatpush.msra.mxu0 0.0
        %1174 = vmatpush.msra.mxu0 0.0
        %1175 = vmatpush.msra.mxu0 %v1157
        %1176 = vmatpush.msra.mxu0 %v1156
        %1177 = vmatpush.msra.mxu0 %v1155
        %1178 = vmatpush.msra.mxu0 %v1154
        %1179 = vmatmul.f32.gmra.mxu0 %v721
        %v1180 = vpop.f32.mrf.mxu0
        %v1181 = vadd.f32 %v1161, %v1180
        %1182 = vmatmul.f32.gmra.mxu0 %v724
        %v1183 = vpop.f32.mrf.mxu0
        %v1184 = vadd.f32 %v1161, %v1183
        %1185 = vdwg.mxu0
        %s1186 = scalar_lea.vmem %s8, 192
        %v1187 = vld [vmem:[%s1186] sm:$0xff]
        %v1188 = vld [vmem:[%s1186 + $0x8] sm:$0xff]
        %v1189 = vld [vmem:[%s1186 + $0x10] sm:$0xff]
        %v1190 = vld [vmem:[%s1186 + $0x18] sm:$0xff]
        %s1191 = scalar_lea.vmem %s9, 6
        %v1192 = vld [vmem:[%s1191] sm:$0x1]
        %v1194 = vperm.slane %v1192, 0
        %1196 = vmatpush.msra.mxu0 0.0
        %1197 = vmatpush.msra.mxu0 0.0
        %1198 = vmatpush.msra.mxu0 0.0
        %1199 = vmatpush.msra.mxu0 0.0
        %1200 = vmatpush.msra.mxu0 0.0
        %1201 = vmatpush.msra.mxu0 0.0
        %1202 = vmatpush.msra.mxu0 0.0
        %1203 = vmatpush.msra.mxu0 0.0
        %1204 = vmatpush.msra.mxu0 0.0
        %1205 = vmatpush.msra.mxu0 0.0
        %1206 = vmatpush.msra.mxu0 0.0
        %1207 = vmatpush.msra.mxu0 0.0
        %1208 = vmatpush.msra.mxu0 %v1190
        %1209 = vmatpush.msra.mxu0 %v1189
        %1210 = vmatpush.msra.mxu0 %v1188
        %1211 = vmatpush.msra.mxu0 %v1187
        %1212 = vmatmul.f32.gmra.mxu0 %v721
        %v1213 = vpop.f32.mrf.mxu0
        %v1214 = vadd.f32 %v1194, %v1213
        %1215 = vmatmul.f32.gmra.mxu0 %v724
        %v1216 = vpop.f32.mrf.mxu0
        %v1217 = vadd.f32 %v1194, %v1216
        %1218 = vdwg.mxu0
        %s1219 = scalar_lea.vmem %s8, 320
        %v1220 = vld [vmem:[%s1219] sm:$0xff]
        %v1221 = vld [vmem:[%s1219 + $0x8] sm:$0xff]
        %v1222 = vld [vmem:[%s1219 + $0x10] sm:$0xff]
        %v1223 = vld [vmem:[%s1219 + $0x18] sm:$0xff]
        %s1224 = scalar_lea.vmem %s9, 10
        %v1225 = vld [vmem:[%s1224] sm:$0x1]
        %v1227 = vperm.slane %v1225, 0
        %1229 = vmatpush.msra.mxu0 0.0
        %1230 = vmatpush.msra.mxu0 0.0
        %1231 = vmatpush.msra.mxu0 0.0
        %1232 = vmatpush.msra.mxu0 0.0
        %1233 = vmatpush.msra.mxu0 0.0
        %1234 = vmatpush.msra.mxu0 0.0
        %1235 = vmatpush.msra.mxu0 0.0
        %1236 = vmatpush.msra.mxu0 0.0
        %1237 = vmatpush.msra.mxu0 0.0
        %1238 = vmatpush.msra.mxu0 0.0
        %1239 = vmatpush.msra.mxu0 0.0
        %1240 = vmatpush.msra.mxu0 0.0
        %1241 = vmatpush.msra.mxu0 %v1223
        %1242 = vmatpush.msra.mxu0 %v1222
        %1243 = vmatpush.msra.mxu0 %v1221
        %1244 = vmatpush.msra.mxu0 %v1220
        %1245 = vmatmul.f32.gmra.mxu0 %v721
        %v1246 = vpop.f32.mrf.mxu0
        %v1247 = vadd.f32 %v1227, %v1246
        %1248 = vmatmul.f32.gmra.mxu0 %v724
        %v1249 = vpop.f32.mrf.mxu0
        %v1250 = vadd.f32 %v1227, %v1249
        %1251 = vdwg.mxu0
        %v1253 = vsel %vm815, %v1181, 0
        %v1256 = vsel %vm815, %v1184, 0
        %v1259 = vsel %vm815, %v1214, 0
        %v1262 = vsel %vm815, %v1217, 0
        %1264 = vmatpush.xpose.msra.mxu0 0.0
        %1265 = vmatpush.xpose.msra.mxu0 0.0
        %1266 = vmatpush.xpose.msra.mxu0 0.0
        %1267 = vmatpush.xpose.msra.mxu0 0.0
        %1268 = vmatpush.xpose.msra.mxu0 0.0
        %1269 = vmatpush.xpose.msra.mxu0 0.0
        %1270 = vmatpush.xpose.msra.mxu0 0.0
        %1271 = vmatpush.xpose.msra.mxu0 0.0
        %1272 = vmatpush.xpose.msra.mxu0 0.0
        %1273 = vmatpush.xpose.msra.mxu0 0.0
        %1274 = vmatpush.xpose.msra.mxu0 0.0
        %1275 = vmatpush.xpose.msra.mxu0 0.0
        %1276 = vmatpush.xpose.msra.mxu0 0.0
        %1277 = vmatpush.xpose.msra.mxu0 0.0
        %1278 = vmatpush.xpose.msra.mxu0 %v1262
        %1279 = vmatpush.xpose.msra.mxu0 %v1259
        %1280 = vmatmul.f32.gmra.mxu0 %v1253
        %v1281 = vpop.f32.mrf.mxu0
        %v1282 = vadd.f32 0.0, %v1281
        %1283 = vmatmul.f32.gmra.mxu0 %v1256
        %v1284 = vpop.f32.mrf.mxu0
        %v1285 = vadd.f32 0.0, %v1284
        %1286 = vdwg.mxu0
        %v1287 = vmul.f32 %v1282, 0.35355338
        %v1288 = vmul.f32 %v1285, 0.35355338
        %v1289 = vsel %vm853, %v1287, -inf
        %1290 = vmax.xlane.f32.xlu0 %v1289
        %v1291 = vpop.xlane.xlu0 %1290
        %v1292 = vsel %vm853, %v1288, -inf
        %1293 = vmax.xlane.f32.xlu0 %v1292
        %v1294 = vpop.xlane.xlu0 %1293
        %v1295 = vsub.f32 %v1287, %v1291
        %v1296 = vsub.f32 %v1288, %v1294
        %v1297 = vmul.f32 %v1295, 1.442695
        %v1298 = vpow.pop %v1297
        %v1299 = vmul.f32 %v1296, 1.442695
        %v1300 = vpow.pop %v1299
        %v1301 = vsel %vm853, %v1298, 0.0
        %1302 = vadd.xlane.f32.xlu0 %v1301
        %v1303 = vpop.xlane.xlu0 %1302
        %v1304 = vsel %vm853, %v1300, 0.0
        %1305 = vadd.xlane.f32.xlu0 %v1304
        %v1306 = vpop.xlane.xlu0 %1305
        %v1307 = vrcp.pop %v1303
        %v1308 = vrcp.pop %v1306
        %v1309 = vmul.f32 %v1298, %v1307
        %v1310 = vmul.f32 %v1300, %v1308
        %v1312 = vsel %vm853, %v1309, 0
        %v1315 = vsel %vm853, %v1310, 0
        %1317 = vmatpush.msra.mxu0 0.0
        %1318 = vmatpush.msra.mxu0 0.0
        %1319 = vmatpush.msra.mxu0 0.0
        %1320 = vmatpush.msra.mxu0 0.0
        %1321 = vmatpush.msra.mxu0 0.0
        %1322 = vmatpush.msra.mxu0 0.0
        %1323 = vmatpush.msra.mxu0 0.0
        %1324 = vmatpush.msra.mxu0 0.0
        %1325 = vmatpush.msra.mxu0 0.0
        %1326 = vmatpush.msra.mxu0 0.0
        %1327 = vmatpush.msra.mxu0 0.0
        %1328 = vmatpush.msra.mxu0 0.0
        %1329 = vmatpush.msra.mxu0 0.0
        %1330 = vmatpush.msra.mxu0 0.0
        %1331 = vmatpush.msra.mxu0 %v1250
        %1332 = vmatpush.msra.mxu0 %v1247
        %1333 = vmatmul.f32.gmra.mxu0 %v1312
        %v1334 = vpop.f32.mrf.mxu0
        %v1335 = vadd.f32 0.0, %v1334
        %1336 = vmatmul.f32.gmra.mxu0 %v1315
        %v1337 = vpop.f32.mrf.mxu0
        %v1338 = vadd.f32 0.0, %v1337
        %1339 = vdwg.mxu0
        %s1340 = scalar_lea.vmem %s10, 16
        %v1341 = vld [vmem:[%s1340] sm:$0xff]
        %v1343 = vsel %vm815, %v1335, 0
        %v1346 = vsel %vm815, %v1338, 0
        %1348 = vmatpush.msra.mxu0 0.0
        %1349 = vmatpush.msra.mxu0 0.0
        %1350 = vmatpush.msra.mxu0 0.0
        %1351 = vmatpush.msra.mxu0 0.0
        %1352 = vmatpush.msra.mxu0 0.0
        %1353 = vmatpush.msra.mxu0 0.0
        %1354 = vmatpush.msra.mxu0 0.0
        %1355 = vmatpush.msra.mxu0 0.0
        %1356 = vmatpush.msra.mxu0 0.0
        %1357 = vmatpush.msra.mxu0 0.0
        %1358 = vmatpush.msra.mxu0 0.0
        %1359 = vmatpush.msra.mxu0 0.0
        %1360 = vmatpush.msra.mxu0 0.0
        %1361 = vmatpush.msra.mxu0 0.0
        %1362 = vmatpush.msra.mxu0 0.0
        %1363 = vmatpush.msra.mxu0 %v1341
        %1364 = vmatmul.f32.gmra.mxu0 %v1343
        %v1365 = vpop.f32.mrf.mxu0
        %v1366 = vadd.f32 0.0, %v1365
        %1367 = vmatmul.f32.gmra.mxu0 %v1346
        %v1368 = vpop.f32.mrf.mxu0
        %v1369 = vadd.f32 0.0, %v1368
        %1370 = vdwg.mxu0
        %v1371 = vadd.f32 %v1148, %v1366
        %v1372 = vadd.f32 %v1151, %v1369
        %s1373 = scalar_lea.vmem %s8, 96
        %v1374 = vld [vmem:[%s1373] sm:$0xff]
        %v1375 = vld [vmem:[%s1373 + $0x8] sm:$0xff]
        %v1376 = vld [vmem:[%s1373 + $0x10] sm:$0xff]
        %v1377 = vld [vmem:[%s1373 + $0x18] sm:$0xff]
        %s1378 = scalar_lea.vmem %s9, 3
        %v1379 = vld [vmem:[%s1378] sm:$0x1]
        %v1381 = vperm.slane %v1379, 0
        %1383 = vmatpush.msra.mxu0 0.0
        %1384 = vmatpush.msra.mxu0 0.0
        %1385 = vmatpush.msra.mxu0 0.0
        %1386 = vmatpush.msra.mxu0 0.0
        %1387 = vmatpush.msra.mxu0 0.0
        %1388 = vmatpush.msra.mxu0 0.0
        %1389 = vmatpush.msra.mxu0 0.0
        %1390 = vmatpush.msra.mxu0 0.0
        %1391 = vmatpush.msra.mxu0 0.0
        %1392 = vmatpush.msra.mxu0 0.0
        %1393 = vmatpush.msra.mxu0 0.0
        %1394 = vmatpush.msra.mxu0 0.0
        %1395 = vmatpush.msra.mxu0 %v1377
        %1396 = vmatpush.msra.mxu0 %v1376
        %1397 = vmatpush.msra.mxu0 %v1375
        %1398 = vmatpush.msra.mxu0 %v1374
        %1399 = vmatmul.f32.gmra.mxu0 %v721
        %v1400 = vpop.f32.mrf.mxu0
        %v1401 = vadd.f32 %v1381, %v1400
        %1402 = vmatmul.f32.gmra.mxu0 %v724
        %v1403 = vpop.f32.mrf.mxu0
        %v1404 = vadd.f32 %v1381, %v1403
        %1405 = vdwg.mxu0
        %s1406 = scalar_lea.vmem %s8, 224
        %v1407 = vld [vmem:[%s1406] sm:$0xff]
        %v1408 = vld [vmem:[%s1406 + $0x8] sm:$0xff]
        %v1409 = vld [vmem:[%s1406 + $0x10] sm:$0xff]
        %v1410 = vld [vmem:[%s1406 + $0x18] sm:$0xff]
        %s1411 = scalar_lea.vmem %s9, 7
        %v1412 = vld [vmem:[%s1411] sm:$0x1]
        %v1414 = vperm.slane %v1412, 0
        %1416 = vmatpush.msra.mxu0 0.0
        %1417 = vmatpush.msra.mxu0 0.0
        %1418 = vmatpush.msra.mxu0 0.0
        %1419 = vmatpush.msra.mxu0 0.0
        %1420 = vmatpush.msra.mxu0 0.0
        %1421 = vmatpush.msra.mxu0 0.0
        %1422 = vmatpush.msra.mxu0 0.0
        %1423 = vmatpush.msra.mxu0 0.0
        %1424 = vmatpush.msra.mxu0 0.0
        %1425 = vmatpush.msra.mxu0 0.0
        %1426 = vmatpush.msra.mxu0 0.0
        %1427 = vmatpush.msra.mxu0 0.0
        %1428 = vmatpush.msra.mxu0 %v1410
        %1429 = vmatpush.msra.mxu0 %v1409
        %1430 = vmatpush.msra.mxu0 %v1408
        %1431 = vmatpush.msra.mxu0 %v1407
        %1432 = vmatmul.f32.gmra.mxu0 %v721
        %v1433 = vpop.f32.mrf.mxu0
        %v1434 = vadd.f32 %v1414, %v1433
        %1435 = vmatmul.f32.gmra.mxu0 %v724
        %v1436 = vpop.f32.mrf.mxu0
        %v1437 = vadd.f32 %v1414, %v1436
        %1438 = vdwg.mxu0
        %s1439 = scalar_lea.vmem %s8, 352
        %v1440 = vld [vmem:[%s1439] sm:$0xff]
        %v1441 = vld [vmem:[%s1439 + $0x8] sm:$0xff]
        %v1442 = vld [vmem:[%s1439 + $0x10] sm:$0xff]
        %v1443 = vld [vmem:[%s1439 + $0x18] sm:$0xff]
        %s1444 = scalar_lea.vmem %s9, 11
        %v1445 = vld [vmem:[%s1444] sm:$0x1]
        %v1447 = vperm.slane %v1445, 0
        %1449 = vmatpush.msra.mxu0 0.0
        %1450 = vmatpush.msra.mxu0 0.0
        %1451 = vmatpush.msra.mxu0 0.0
        %1452 = vmatpush.msra.mxu0 0.0
        %1453 = vmatpush.msra.mxu0 0.0
        %1454 = vmatpush.msra.mxu0 0.0
        %1455 = vmatpush.msra.mxu0 0.0
        %1456 = vmatpush.msra.mxu0 0.0
        %1457 = vmatpush.msra.mxu0 0.0
        %1458 = vmatpush.msra.mxu0 0.0
        %1459 = vmatpush.msra.mxu0 0.0
        %1460 = vmatpush.msra.mxu0 0.0
        %1461 = vmatpush.msra.mxu0 %v1443
        %1462 = vmatpush.msra.mxu0 %v1442
        %1463 = vmatpush.msra.mxu0 %v1441
        %1464 = vmatpush.msra.mxu0 %v1440
        %1465 = vmatmul.f32.gmra.mxu0 %v721
        %v1466 = vpop.f32.mrf.mxu0
        %v1467 = vadd.f32 %v1447, %v1466
        %1468 = vmatmul.f32.gmra.mxu0 %v724
        %v1469 = vpop.f32.mrf.mxu0
        %v1470 = vadd.f32 %v1447, %v1469
        %1471 = vdwg.mxu0
        %v1473 = vsel %vm815, %v1401, 0
        %v1476 = vsel %vm815, %v1404, 0
        %v1479 = vsel %vm815, %v1434, 0
        %v1482 = vsel %vm815, %v1437, 0
        %1484 = vmatpush.xpose.msra.mxu0 0.0
        %1485 = vmatpush.xpose.msra.mxu0 0.0
        %1486 = vmatpush.xpose.msra.mxu0 0.0
        %1487 = vmatpush.xpose.msra.mxu0 0.0
        %1488 = vmatpush.xpose.msra.mxu0 0.0
        %1489 = vmatpush.xpose.msra.mxu0 0.0
        %1490 = vmatpush.xpose.msra.mxu0 0.0
        %1491 = vmatpush.xpose.msra.mxu0 0.0
        %1492 = vmatpush.xpose.msra.mxu0 0.0
        %1493 = vmatpush.xpose.msra.mxu0 0.0
        %1494 = vmatpush.xpose.msra.mxu0 0.0
        %1495 = vmatpush.xpose.msra.mxu0 0.0
        %1496 = vmatpush.xpose.msra.mxu0 0.0
        %1497 = vmatpush.xpose.msra.mxu0 0.0
        %1498 = vmatpush.xpose.msra.mxu0 %v1482
        %1499 = vmatpush.xpose.msra.mxu0 %v1479
        %1500 = vmatmul.f32.gmra.mxu0 %v1473
        %v1501 = vpop.f32.mrf.mxu0
        %v1502 = vadd.f32 0.0, %v1501
        %1503 = vmatmul.f32.gmra.mxu0 %v1476
        %v1504 = vpop.f32.mrf.mxu0
        %v1505 = vadd.f32 0.0, %v1504
        %1506 = vdwg.mxu0
        %v1507 = vmul.f32 %v1502, 0.35355338
        %v1508 = vmul.f32 %v1505, 0.35355338
        %v1509 = vsel %vm853, %v1507, -inf
        %1510 = vmax.xlane.f32.xlu0 %v1509
        %v1511 = vpop.xlane.xlu0 %1510
        %v1512 = vsel %vm853, %v1508, -inf
        %1513 = vmax.xlane.f32.xlu0 %v1512
        %v1514 = vpop.xlane.xlu0 %1513
        %v1515 = vsub.f32 %v1507, %v1511
        %v1516 = vsub.f32 %v1508, %v1514
        %v1517 = vmul.f32 %v1515, 1.442695
        %v1518 = vpow.pop %v1517
        %v1519 = vmul.f32 %v1516, 1.442695
        %v1520 = vpow.pop %v1519
        %v1521 = vsel %vm853, %v1518, 0.0
        %1522 = vadd.xlane.f32.xlu0 %v1521
        %v1523 = vpop.xlane.xlu0 %1522
        %v1524 = vsel %vm853, %v1520, 0.0
        %1525 = vadd.xlane.f32.xlu0 %v1524
        %v1526 = vpop.xlane.xlu0 %1525
        %v1527 = vrcp.pop %v1523
        %v1528 = vrcp.pop %v1526
        %v1529 = vmul.f32 %v1518, %v1527
        %v1530 = vmul.f32 %v1520, %v1528
        %v1532 = vsel %vm853, %v1529, 0
        %v1535 = vsel %vm853, %v1530, 0
        %1537 = vmatpush.msra.mxu0 0.0
        %1538 = vmatpush.msra.mxu0 0.0
        %1539 = vmatpush.msra.mxu0 0.0
        %1540 = vmatpush.msra.mxu0 0.0
        %1541 = vmatpush.msra.mxu0 0.0
        %1542 = vmatpush.msra.mxu0 0.0
        %1543 = vmatpush.msra.mxu0 0.0
        %1544 = vmatpush.msra.mxu0 0.0
        %1545 = vmatpush.msra.mxu0 0.0
        %1546 = vmatpush.msra.mxu0 0.0
        %1547 = vmatpush.msra.mxu0 0.0
        %1548 = vmatpush.msra.mxu0 0.0
        %1549 = vmatpush.msra.mxu0 0.0
        %1550 = vmatpush.msra.mxu0 0.0
        %1551 = vmatpush.msra.mxu0 %v1470
        %1552 = vmatpush.msra.mxu0 %v1467
        %1553 = vmatmul.f32.gmra.mxu0 %v1532
        %v1554 = vpop.f32.mrf.mxu0
        %v1555 = vadd.f32 0.0, %v1554
        %1556 = vmatmul.f32.gmra.mxu0 %v1535
        %v1557 = vpop.f32.mrf.mxu0
        %v1558 = vadd.f32 0.0, %v1557
        %1559 = vdwg.mxu0
        %s1560 = scalar_lea.vmem %s10, 24
        %v1561 = vld [vmem:[%s1560] sm:$0xff]
        %v1563 = vsel %vm815, %v1555, 0
        %v1566 = vsel %vm815, %v1558, 0
        %1568 = vmatpush.msra.mxu0 0.0
        %1569 = vmatpush.msra.mxu0 0.0
        %1570 = vmatpush.msra.mxu0 0.0
        %1571 = vmatpush.msra.mxu0 0.0
        %1572 = vmatpush.msra.mxu0 0.0
        %1573 = vmatpush.msra.mxu0 0.0
        %1574 = vmatpush.msra.mxu0 0.0
        %1575 = vmatpush.msra.mxu0 0.0
        %1576 = vmatpush.msra.mxu0 0.0
        %1577 = vmatpush.msra.mxu0 0.0
        %1578 = vmatpush.msra.mxu0 0.0
        %1579 = vmatpush.msra.mxu0 0.0
        %1580 = vmatpush.msra.mxu0 0.0
        %1581 = vmatpush.msra.mxu0 0.0
        %1582 = vmatpush.msra.mxu0 0.0
        %1583 = vmatpush.msra.mxu0 %v1561
        %1584 = vmatmul.f32.gmra.mxu0 %v1563
        %v1585 = vpop.f32.mrf.mxu0
        %v1586 = vadd.f32 0.0, %v1585
        %1587 = vmatmul.f32.gmra.mxu0 %v1566
        %v1588 = vpop.f32.mrf.mxu0
        %v1589 = vadd.f32 0.0, %v1588
        %1590 = vdwg.mxu0
        %v1591 = vadd.f32 %v1371, %v1586
        %v1592 = vadd.f32 %v1372, %v1589
        %v1593 = vld [vmem:[%s11] sm:$0x1]
        %v1595 = vperm.slane %v1593, 0
        %v1597 = vadd.f32 %v1591, %v1595
        %v1598 = vadd.f32 %v1592, %v1595
        %v1599 = vadd.f32 %v645, %v1597
        %v1600 = vadd.f32 %v646, %v1598
        %v1601 = vld [vmem:[%s16] sm:$0xff]
        %v1602 = vld [vmem:[%s16 + $0x8] sm:$0xff]
        %v1603 = vld [vmem:[%s16 + $0x10] sm:$0xff]
        %v1604 = vld [vmem:[%s16 + $0x18] sm:$0xff]
        %v1605 = vld [vmem:[%s17] sm:$0x1]
        %v1607 = vperm.slane %v1605, 0
        %v1610 = vsel %vm648, %v1599, 0
        %v1613 = vsel %vm648, %v1600, 0
        %1615 = vmatpush.msra.mxu0 0.0
        %1616 = vmatpush.msra.mxu0 0.0
        %1617 = vmatpush.msra.mxu0 0.0
        %1618 = vmatpush.msra.mxu0 0.0
        %1619 = vmatpush.msra.mxu0 0.0
        %1620 = vmatpush.msra.mxu0 0.0
        %1621 = vmatpush.msra.mxu0 0.0
        %1622 = vmatpush.msra.mxu0 0.0
        %1623 = vmatpush.msra.mxu0 0.0
        %1624 = vmatpush.msra.mxu0 0.0
        %1625 = vmatpush.msra.mxu0 0.0
        %1626 = vmatpush.msra.mxu0 0.0
        %1627 = vmatpush.msra.mxu0 %v1604
        %1628 = vmatpush.msra.mxu0 %v1603
        %1629 = vmatpush.msra.mxu0 %v1602
        %1630 = vmatpush.msra.mxu0 %v1601
        %1631 = vmatmul.f32.gmra.mxu0 %v1610
        %v1632 = vpop.f32.mrf.mxu0
        %v1633 = vadd.f32 %v1607, %v1632
        %1634 = vmatmul.f32.gmra.mxu0 %v1613
        %v1635 = vpop.f32.mrf.mxu0
        %v1636 = vadd.f32 %v1607, %v1635
        %1637 = vdwg.mxu0
        %v1638 = vmul.f32 %v1633, 0.5
        %v1639 = vmul.f32 %v1636, 0.5
        %v1640 = vmul.f32 %v1633, 0.70710677
        %v1641 = vmul.f32 %v1636, 0.70710677
        %v1642 = vmul.f32 %v1640, %v1640
        %v1643 = vmin.f32 16.0, %v1642
        %v1644 = vmul.f32 %v1643, 2.1237322e-06
        %v1645 = vadd.f32 %v1644, 0.00028619796
        %v1646 = vmul.f32 %v1643, %v1645
        %v1647 = vadd.f32 %v1646, 0.0036580483
        %v1648 = vmul.f32 %v1643, %v1647
        %v1649 = vadd.f32 %v1648, 0.05243302
        %v1650 = vmul.f32 %v1643, %v1649
        %v1651 = vadd.f32 %v1650, 0.18741608
        %v1652 = vmul.f32 %v1643, %v1651
        %v1653 = vadd.f32 %v1652, 1.1283791
        %v1654 = vmul.f32 %v1640, %v1653
        %v1655 = vmul.f32 %v1643, 3.8918573e-05
        %v1656 = vadd.f32 %v1655, 0.001143296
        %v1657 = vmul.f32 %v1643, %v1656
        %v1658 = vadd.f32 %v1657, 0.014752088
        %v1659 = vmul.f32 %v1643, %v1658
        %v1660 = vadd.f32 %v1659, 0.112945676
        %v1661 = vmul.f32 %v1643, %v1660
        %v1662 = vadd.f32 %v1661, 0.4994258
        %v1663 = vmul.f32 %v1643, %v1662
        %v1664 = vadd.f32 %v1663, 1.0
        %v1665 = vrcp.pop %v1664
        %v1666 = vmul.f32 %v1664, %v1665
        %v1667 = vsub.f32 1.0, %v1666
        %v1668 = vmul.f32 %v1665, %v1667
        %v1669 = vadd.f32 %v1665, %v1668
        %vm1670 = vweird.f32 %v1664
        %vm1671 = vweird.f32 %v1665
        %vm1672 = vmor %vm1670, %vm1671
        %v1673 = vsel %vm1672, %v1665, %v1669
        %v1674 = vand.u32 2147483647, %v1664
        %vm1675 = vcmp.eq.f32.partialorder %v1674, 8.507059e+37
        %v1676 = vand.u32 %v1664, 2147483648
        %v1677 = vor.u32 1.1754944e-38, %v1676
        %v1678 = vsel %vm1675, %v1677, %v1673
        %v1679 = vmul.f32 %v1654, %v1678
        %v1680 = vmin.f32 %v1679, 1.0
        %v1681 = vmax.f32 %v1680, -1.0
        %v1682 = vmul.f32 %v1641, %v1641
        %v1683 = vmin.f32 16.0, %v1682
        %v1684 = vmul.f32 %v1683, 2.1237322e-06
        %v1685 = vadd.f32 %v1684, 0.00028619796
        %v1686 = vmul.f32 %v1683, %v1685
        %v1687 = vadd.f32 %v1686, 0.0036580483
        %v1688 = vmul.f32 %v1683, %v1687
        %v1689 = vadd.f32 %v1688, 0.05243302
        %v1690 = vmul.f32 %v1683, %v1689
        %v1691 = vadd.f32 %v1690, 0.18741608
        %v1692 = vmul.f32 %v1683, %v1691
        %v1693 = vadd.f32 %v1692, 1.1283791
        %v1694 = vmul.f32 %v1641, %v1693
        %v1695 = vmul.f32 %v1683, 3.8918573e-05
        %v1696 = vadd.f32 %v1695, 0.001143296
        %v1697 = vmul.f32 %v1683, %v1696
        %v1698 = vadd.f32 %v1697, 0.014752088
        %v1699 = vmul.f32 %v1683, %v1698
        %v1700 = vadd.f32 %v1699, 0.112945676
        %v1701 = vmul.f32 %v1683, %v1700
        %v1702 = vadd.f32 %v1701, 0.4994258
        %v1703 = vmul.f32 %v1683, %v1702
        %v1704 = vadd.f32 %v1703, 1.0
        %v1705 = vrcp.pop %v1704
        %v1706 = vmul.f32 %v1704, %v1705
        %v1707 = vsub.f32 1.0, %v1706
        %v1708 = vmul.f32 %v1705, %v1707
        %v1709 = vadd.f32 %v1705, %v1708
        %vm1710 = vweird.f32 %v1704
        %vm1711 = vweird.f32 %v1705
        %vm1712 = vmor %vm1710, %vm1711
        %v1713 = vsel %vm1712, %v1705, %v1709
        %v1714 = vand.u32 2147483647, %v1704
        %vm1715 = vcmp.eq.f32.partialorder %v1714, 8.507059e+37
        %v1716 = vand.u32 %v1704, 2147483648
        %v1717 = vor.u32 1.1754944e-38, %v1716
        %v1718 = vsel %vm1715, %v1717, %v1713
        %v1719 = vmul.f32 %v1694, %v1718
        %v1720 = vmin.f32 %v1719, 1.0
        %v1721 = vmax.f32 %v1720, -1.0
        %v1722 = vadd.f32 %v1681, 1.0
        %v1723 = vadd.f32 %v1721, 1.0
        %v1724 = vmul.f32 %v1638, %v1722
        %v1725 = vmul.f32 %v1639, %v1723
        %v1726 = vld [vmem:[%s18] sm:$0xff]
        %v1727 = vld [vmem:[%s18 + $0x8] sm:$0xff]
        %v1728 = vld [vmem:[%s18 + $0x10] sm:$0xff]
        %v1729 = vld [vmem:[%s18 + $0x18] sm:$0xff]
        %v1730 = vld [vmem:[%s18 + $0x20] sm:$0xff]
        %v1731 = vld [vmem:[%s18 + $0x28] sm:$0xff]
        %v1732 = vld [vmem:[%s18 + $0x30] sm:$0xff]
        %v1733 = vld [vmem:[%s18 + $0x38] sm:$0xff]
        %v1734 = vld [vmem:[%s18 + $0x40] sm:$0xff]
        %v1735 = vld [vmem:[%s18 + $0x48] sm:$0xff]
        %v1736 = vld [vmem:[%s18 + $0x50] sm:$0xff]
        %v1737 = vld [vmem:[%s18 + $0x58] sm:$0xff]
        %v1738 = vld [vmem:[%s18 + $0x60] sm:$0xff]
        %v1739 = vld [vmem:[%s18 + $0x68] sm:$0xff]
        %v1740 = vld [vmem:[%s18 + $0x70] sm:$0xff]
        %v1741 = vld [vmem:[%s18 + $0x78] sm:$0xff]
        %v1742 = vld [vmem:[%s19] sm:$0x1]
        %v1744 = vperm.slane %v1742, 0
        %1746 = vmatpush.msra.mxu0 %v1741
        %1747 = vmatpush.msra.mxu0 %v1740
        %1748 = vmatpush.msra.mxu0 %v1739
        %1749 = vmatpush.msra.mxu0 %v1738
        %1750 = vmatpush.msra.mxu0 %v1737
        %1751 = vmatpush.msra.mxu0 %v1736
        %1752 = vmatpush.msra.mxu0 %v1735
        %1753 = vmatpush.msra.mxu0 %v1734
        %1754 = vmatpush.msra.mxu0 %v1733
        %1755 = vmatpush.msra.mxu0 %v1732
        %1756 = vmatpush.msra.mxu0 %v1731
        %1757 = vmatpush.msra.mxu0 %v1730
        %1758 = vmatpush.msra.mxu0 %v1729
        %1759 = vmatpush.msra.mxu0 %v1728
        %1760 = vmatpush.msra.mxu0 %v1727
        %1761 = vmatpush.msra.mxu0 %v1726
        %1762 = vmatmul.f32.gmra.mxu0 %v1724
        %v1763 = vpop.f32.mrf.mxu0
        %v1764 = vadd.f32 %v1744, %v1763
        %1765 = vmatmul.f32.gmra.mxu0 %v1725
        %v1766 = vpop.f32.mrf.mxu0
        %v1767 = vadd.f32 %v1744, %v1766
        %1768 = vdwg.mxu0
        %v1769 = vsel %vm648, %v1764, 0.0
        %1770 = vadd.xlane.f32.xlu0 %v1769
        %v1771 = vpop.xlane.xlu0 %1770
        %v1772 = vsel %vm648, %v1767, 0.0
        %1773 = vadd.xlane.f32.xlu0 %v1772
        %v1774 = vpop.xlane.xlu0 %1773
        %v1775 = vmul.f32 %v1771, %v661
        %v1776 = vmul.f32 %v1774, %v661
        %v1777 = vsub.f32 %v1764, %v1775
        %v1778 = vsub.f32 %v1767, %v1776
        %v1779 = vmul.f32 %v1777, %v1777
        %v1780 = vmul.f32 %v1778, %v1778
        %v1781 = vsel %vm648, %v1779, 0.0
        %1782 = vadd.xlane.f32.xlu0 %v1781
        %v1783 = vpop.xlane.xlu0 %1782
        %v1784 = vsel %vm648, %v1780, 0.0
        %1785 = vadd.xlane.f32.xlu0 %v1784
        %v1786 = vpop.xlane.xlu0 %1785
        %v1787 = vmul.f32 %v1783, %v661
        %v1788 = vmul.f32 %v1786, %v661
        %v1789 = vadd.f32 %v1787, 1e-05
        %v1790 = vadd.f32 %v1788, 1e-05
        %v1791 = vrsqrt.pop %v1789
        %v1792 = vmul.f32 %v1791, %v1789
        %v1793 = vmul.f32 %v1792, %v1791
        %v1794 = vmul.f32 0.5, %v1793
        %v1795 = vsub.f32 1.5, %v1794
        %v1796 = vmul.f32 %v1791, %v1795
        %vm1797 = vweird.f32 %v1789
        %vm1798 = vweird.f32 %v1791
        %vm1799 = vmor %vm1797, %vm1798
        %v1800 = vsel %vm1799, %v1791, %v1796
        %v1801 = vrsqrt.pop %v1790
        %v1802 = vmul.f32 %v1801, %v1790
        %v1803 = vmul.f32 %v1802, %v1801
        %v1804 = vmul.f32 0.5, %v1803
        %v1805 = vsub.f32 1.5, %v1804
        %v1806 = vmul.f32 %v1801, %v1805
        %vm1807 = vweird.f32 %v1790
        %vm1808 = vweird.f32 %v1801
        %vm1809 = vmor %vm1807, %vm1808
        %v1810 = vsel %vm1809, %v1801, %v1806
        %v1811 = vmul.f32 %v1777, %v1800
        %v1812 = vmul.f32 %v1778, %v1810
        %v1813 = vld [vmem:[%s4] sm:$0x1]
        %v1815 = vperm.slane %v1813, 0
        %v1817 = vmul.f32 %v1811, %v1815
        %v1818 = vmul.f32 %v1812, %v1815
        %v1819 = vld [vmem:[%s5] sm:$0x1]
        %v1821 = vperm.slane %v1819, 0
        %v1823 = vadd.f32 %v1817, %v1821
        %v1824 = vadd.f32 %v1818, %v1821
        %v1825 = vld [vmem:[%s12] sm:$0xff]
        %v1826 = vld [vmem:[%s12 + $0x8] sm:$0xff]
        %v1827 = vld [vmem:[%s12 + $0x10] sm:$0xff]
        %v1828 = vld [vmem:[%s12 + $0x18] sm:$0xff]
        %v1829 = vld [vmem:[%s13] sm:$0x1]
        %v1831 = vperm.slane %v1829, 0
        %v1834 = vsel %vm648, %v1823, 0
        %v1837 = vsel %vm648, %v1824, 0
        %1839 = vmatpush.msra.mxu0 0.0
        %1840 = vmatpush.msra.mxu0 0.0
        %1841 = vmatpush.msra.mxu0 0.0
        %1842 = vmatpush.msra.mxu0 0.0
        %1843 = vmatpush.msra.mxu0 0.0
        %1844 = vmatpush.msra.mxu0 0.0
        %1845 = vmatpush.msra.mxu0 0.0
        %1846 = vmatpush.msra.mxu0 0.0
        %1847 = vmatpush.msra.mxu0 0.0
        %1848 = vmatpush.msra.mxu0 0.0
        %1849 = vmatpush.msra.mxu0 0.0
        %1850 = vmatpush.msra.mxu0 0.0
        %1851 = vmatpush.msra.mxu0 %v1828
        %1852 = vmatpush.msra.mxu0 %v1827
        %1853 = vmatpush.msra.mxu0 %v1826
        %1854 = vmatpush.msra.mxu0 %v1825
        %1855 = vmatmul.f32.gmra.mxu0 %v1834
        %v1856 = vpop.f32.mrf.mxu0
        %v1857 = vadd.f32 %v1831, %v1856
        %1858 = vmatmul.f32.gmra.mxu0 %v1837
        %v1859 = vpop.f32.mrf.mxu0
        %v1860 = vadd.f32 %v1831, %v1859
        %1861 = vdwg.mxu0
        %s1862 = scalar_lea.vmem %s12, 128
        %v1863 = vld [vmem:[%s1862] sm:$0xff]
        %v1864 = vld [vmem:[%s1862 + $0x8] sm:$0xff]
        %v1865 = vld [vmem:[%s1862 + $0x10] sm:$0xff]
        %v1866 = vld [vmem:[%s1862 + $0x18] sm:$0xff]
        %s1867 = scalar_lea.vmem %s13, 4
        %v1868 = vld [vmem:[%s1867] sm:$0x1]
        %v1870 = vperm.slane %v1868, 0
        %v1873 = vsel %vm648, %v647, 0
        %1875 = vmatpush.msra.mxu0 0.0
        %1876 = vmatpush.msra.mxu0 0.0
        %1877 = vmatpush.msra.mxu0 0.0
        %1878 = vmatpush.msra.mxu0 0.0
        %1879 = vmatpush.msra.mxu0 0.0
        %1880 = vmatpush.msra.mxu0 0.0
        %1881 = vmatpush.msra.mxu0 0.0
        %1882 = vmatpush.msra.mxu0 0.0
        %1883 = vmatpush.msra.mxu0 0.0
        %1884 = vmatpush.msra.mxu0 0.0
        %1885 = vmatpush.msra.mxu0 0.0
        %1886 = vmatpush.msra.mxu0 0.0
        %1887 = vmatpush.msra.mxu0 %v1866
        %1888 = vmatpush.msra.mxu0 %v1865
        %1889 = vmatpush.msra.mxu0 %v1864
        %1890 = vmatpush.msra.mxu0 %v1863
        %1891 = vmatmul.f32.gmra.mxu0 %v1873
        %v1892 = vpop.f32.mrf.mxu0
        %v1893 = vadd.f32 %v1870, %v1892
        %1894 = vdwg.mxu0
        %s1895 = scalar_lea.vmem %s12, 256
        %v1896 = vld [vmem:[%s1895] sm:$0xff]
        %v1897 = vld [vmem:[%s1895 + $0x8] sm:$0xff]
        %v1898 = vld [vmem:[%s1895 + $0x10] sm:$0xff]
        %v1899 = vld [vmem:[%s1895 + $0x18] sm:$0xff]
        %s1900 = scalar_lea.vmem %s13, 8
        %v1901 = vld [vmem:[%s1900] sm:$0x1]
        %v1903 = vperm.slane %v1901, 0
        %1905 = vmatpush.msra.mxu0 0.0
        %1906 = vmatpush.msra.mxu0 0.0
        %1907 = vmatpush.msra.mxu0 0.0
        %1908 = vmatpush.msra.mxu0 0.0
        %1909 = vmatpush.msra.mxu0 0.0
        %1910 = vmatpush.msra.mxu0 0.0
        %1911 = vmatpush.msra.mxu0 0.0
        %1912 = vmatpush.msra.mxu0 0.0
        %1913 = vmatpush.msra.mxu0 0.0
        %1914 = vmatpush.msra.mxu0 0.0
        %1915 = vmatpush.msra.mxu0 0.0
        %1916 = vmatpush.msra.mxu0 0.0
        %1917 = vmatpush.msra.mxu0 %v1899
        %1918 = vmatpush.msra.mxu0 %v1898
        %1919 = vmatpush.msra.mxu0 %v1897
        %1920 = vmatpush.msra.mxu0 %v1896
        %1921 = vmatmul.f32.gmra.mxu0 %v1873
        %v1922 = vpop.f32.mrf.mxu0
        %v1923 = vadd.f32 %v1903, %v1922
        %1924 = vdwg.mxu0
        %v1926 = vsel %vm815, %v1857, 0
        %v1929 = vsel %vm815, %v1860, 0
        %v1932 = vsel %vm815, %v1893, 0
        %1934 = vmatpush.xpose.msra.mxu0 0.0
        %1935 = vmatpush.xpose.msra.mxu0 0.0
        %1936 = vmatpush.xpose.msra.mxu0 0.0
        %1937 = vmatpush.xpose.msra.mxu0 0.0
        %1938 = vmatpush.xpose.msra.mxu0 0.0
        %1939 = vmatpush.xpose.msra.mxu0 0.0
        %1940 = vmatpush.xpose.msra.mxu0 0.0
        %1941 = vmatpush.xpose.msra.mxu0 0.0
        %1942 = vmatpush.xpose.msra.mxu0 0.0
        %1943 = vmatpush.xpose.msra.mxu0 0.0
        %1944 = vmatpush.xpose.msra.mxu0 0.0
        %1945 = vmatpush.xpose.msra.mxu0 0.0
        %1946 = vmatpush.xpose.msra.mxu0 0.0
        %1947 = vmatpush.xpose.msra.mxu0 0.0
        %1948 = vmatpush.xpose.msra.mxu0 0.0
        %1949 = vmatpush.xpose.msra.mxu0 %v1932
        %1950 = vmatmul.f32.gmra.mxu0 %v1926
        %v1951 = vpop.f32.mrf.mxu0
        %v1952 = vadd.f32 0.0, %v1951
        %1953 = vmatmul.f32.gmra.mxu0 %v1929
        %v1954 = vpop.f32.mrf.mxu0
        %v1955 = vadd.f32 0.0, %v1954
        %1956 = vdwg.mxu0
        %v1957 = vmul.f32 %v1952, 0.35355338
        %v1958 = vmul.f32 %v1955, 0.35355338
        %v1959 = vsel %vm815, %v1957, -inf
        %1960 = vmax.xlane.f32.xlu0 %v1959
        %v1961 = vpop.xlane.xlu0 %1960
        %v1962 = vsel %vm815, %v1958, -inf
        %1963 = vmax.xlane.f32.xlu0 %v1962
        %v1964 = vpop.xlane.xlu0 %1963
        %v1965 = vsub.f32 %v1957, %v1961
        %v1966 = vsub.f32 %v1958, %v1964
        %v1967 = vmul.f32 %v1965, 1.442695
        %v1968 = vpow.pop %v1967
        %v1969 = vmul.f32 %v1966, 1.442695
        %v1970 = vpow.pop %v1969
        %v1971 = vsel %vm815, %v1968, 0.0
        %1972 = vadd.xlane.f32.xlu0 %v1971
        %v1973 = vpop.xlane.xlu0 %1972
        %v1974 = vsel %vm815, %v1970, 0.0
        %1975 = vadd.xlane.f32.xlu0 %v1974
        %v1976 = vpop.xlane.xlu0 %1975
        %v1977 = vrcp.pop %v1973
        %v1978 = vrcp.pop %v1976
        %v1979 = vmul.f32 %v1968, %v1977
        %v1980 = vmul.f32 %v1970, %v1978
        %v1982 = vsel %vm815, %v1979, 0
        %v1985 = vsel %vm815, %v1980, 0
        %1987 = vmatpush.msra.mxu0 0.0
        %1988 = vmatpush.msra.mxu0 0.0
        %1989 = vmatpush.msra.mxu0 0.0
        %1990 = vmatpush.msra.mxu0 0.0
        %1991 = vmatpush.msra.mxu0 0.0
        %1992 = vmatpush.msra.mxu0 0.0
        %1993 = vmatpush.msra.mxu0 0.0
        %1994 = vmatpush.msra.mxu0 0.0
        %1995 = vmatpush.msra.mxu0 0.0
        %1996 = vmatpush.msra.mxu0 0.0
        %1997 = vmatpush.msra.mxu0 0.0
        %1998 = vmatpush.msra.mxu0 0.0
        %1999 = vmatpush.msra.mxu0 0.0
        %2000 = vmatpush.msra.mxu0 0.0
        %2001 = vmatpush.msra.mxu0 0.0
        %2002 = vmatpush.msra.mxu0 %v1923
        %2003 = vmatmul.f32.gmra.mxu0 %v1982
        %v2004 = vpop.f32.mrf.mxu0
        %v2005 = vadd.f32 0.0, %v2004
        %2006 = vmatmul.f32.gmra.mxu0 %v1985
        %v2007 = vpop.f32.mrf.mxu0
        %v2008 = vadd.f32 0.0, %v2007
        %2009 = vdwg.mxu0
        %v2010 = vld [vmem:[%s14] sm:$0xff]
        %s2011 = scalar_lea.vmem %s12, 32
        %v2012 = vld [vmem:[%s2011] sm:$0xff]
        %v2013 = vld [vmem:[%s2011 + $0x8] sm:$0xff]
        %v2014 = vld [vmem:[%s2011 + $0x10] sm:$0xff]
        %v2015 = vld [vmem:[%s2011 + $0x18] sm:$0xff]
        %s2016 = scalar_lea.vmem %s13, 1
        %v2017 = vld [vmem:[%s2016] sm:$0x1]
        %v2019 = vperm.slane %v2017, 0
        %2021 = vmatpush.msra.mxu0 0.0
        %2022 = vmatpush.msra.mxu0 0.0
        %2023 = vmatpush.msra.mxu0 0.0
        %2024 = vmatpush.msra.mxu0 0.0
        %2025 = vmatpush.msra.mxu0 0.0
        %2026 = vmatpush.msra.mxu0 0.0
        %2027 = vmatpush.msra.mxu0 0.0
        %2028 = vmatpush.msra.mxu0 0.0
        %2029 = vmatpush.msra.mxu0 0.0
        %2030 = vmatpush.msra.mxu0 0.0
        %2031 = vmatpush.msra.mxu0 0.0
        %2032 = vmatpush.msra.mxu0 0.0
        %2033 = vmatpush.msra.mxu0 %v2015
        %2034 = vmatpush.msra.mxu0 %v2014
        %2035 = vmatpush.msra.mxu0 %v2013
        %2036 = vmatpush.msra.mxu0 %v2012
        %2037 = vmatmul.f32.gmra.mxu0 %v1834
        %v2038 = vpop.f32.mrf.mxu0
        %v2039 = vadd.f32 %v2019, %v2038
        %2040 = vmatmul.f32.gmra.mxu0 %v1837
        %v2041 = vpop.f32.mrf.mxu0
        %v2042 = vadd.f32 %v2019, %v2041
        %2043 = vdwg.mxu0
        %s2044 = scalar_lea.vmem %s12, 160
        %v2045 = vld [vmem:[%s2044] sm:$0xff]
        %v2046 = vld [vmem:[%s2044 + $0x8] sm:$0xff]
        %v2047 = vld [vmem:[%s2044 + $0x10] sm:$0xff]
        %v2048 = vld [vmem:[%s2044 + $0x18] sm:$0xff]
        %s2049 = scalar_lea.vmem %s13, 5
        %v2050 = vld [vmem:[%s2049] sm:$0x1]
        %v2052 = vperm.slane %v2050, 0
        %2054 = vmatpush.msra.mxu0 0.0
        %2055 = vmatpush.msra.mxu0 0.0
        %2056 = vmatpush.msra.mxu0 0.0
        %2057 = vmatpush.msra.mxu0 0.0
        %2058 = vmatpush.msra.mxu0 0.0
        %2059 = vmatpush.msra.mxu0 0.0
        %2060 = vmatpush.msra.mxu0 0.0
        %2061 = vmatpush.msra.mxu0 0.0
        %2062 = vmatpush.msra.mxu0 0.0
        %2063 = vmatpush.msra.mxu0 0.0
        %2064 = vmatpush.msra.mxu0 0.0
        %2065 = vmatpush.msra.mxu0 0.0
        %2066 = vmatpush.msra.mxu0 %v2048
        %2067 = vmatpush.msra.mxu0 %v2047
        %2068 = vmatpush.msra.mxu0 %v2046
        %2069 = vmatpush.msra.mxu0 %v2045
        %2070 = vmatmul.f32.gmra.mxu0 %v1873
        %v2071 = vpop.f32.mrf.mxu0
        %v2072 = vadd.f32 %v2052, %v2071
        %2073 = vdwg.mxu0
        %s2074 = scalar_lea.vmem %s12, 288
        %v2075 = vld [vmem:[%s2074] sm:$0xff]
        %v2076 = vld [vmem:[%s2074 + $0x8] sm:$0xff]
        %v2077 = vld [vmem:[%s2074 + $0x10] sm:$0xff]
        %v2078 = vld [vmem:[%s2074 + $0x18] sm:$0xff]
        %s2079 = scalar_lea.vmem %s13, 9
        %v2080 = vld [vmem:[%s2079] sm:$0x1]
        %v2082 = vperm.slane %v2080, 0
        %2084 = vmatpush.msra.mxu0 0.0
        %2085 = vmatpush.msra.mxu0 0.0
        %2086 = vmatpush.msra.mxu0 0.0
        %2087 = vmatpush.msra.mxu0 0.0
        %2088 = vmatpush.msra.mxu0 0.0
        %2089 = vmatpush.msra.mxu0 0.0
        %2090 = vmatpush.msra.mxu0 0.0
        %2091 = vmatpush.msra.mxu0 0.0
        %2092 = vmatpush.msra.mxu0 0.0
        %2093 = vmatpush.msra.mxu0 0.0
        %2094 = vmatpush.msra.mxu0 0.0
        %2095 = vmatpush.msra.mxu0 0.0
        %2096 = vmatpush.msra.mxu0 %v2078
        %2097 = vmatpush.msra.mxu0 %v2077
        %2098 = vmatpush.msra.mxu0 %v2076
        %2099 = vmatpush.msra.mxu0 %v2075
        %2100 = vmatmul.f32.gmra.mxu0 %v1873
        %v2101 = vpop.f32.mrf.mxu0
        %v2102 = vadd.f32 %v2082, %v2101
        %2103 = vdwg.mxu0
        %v2105 = vsel %vm815, %v2039, 0
        %v2108 = vsel %vm815, %v2042, 0
        %v2111 = vsel %vm815, %v2072, 0
        %2113 = vmatpush.xpose.msra.mxu0 0.0
        %2114 = vmatpush.xpose.msra.mxu0 0.0
        %2115 = vmatpush.xpose.msra.mxu0 0.0
        %2116 = vmatpush.xpose.msra.mxu0 0.0
        %2117 = vmatpush.xpose.msra.mxu0 0.0
        %2118 = vmatpush.xpose.msra.mxu0 0.0
        %2119 = vmatpush.xpose.msra.mxu0 0.0
        %2120 = vmatpush.xpose.msra.mxu0 0.0
        %2121 = vmatpush.xpose.msra.mxu0 0.0
        %2122 = vmatpush.xpose.msra.mxu0 0.0
        %2123 = vmatpush.xpose.msra.mxu0 0.0
        %2124 = vmatpush.xpose.msra.mxu0 0.0
        %2125 = vmatpush.xpose.msra.mxu0 0.0
        %2126 = vmatpush.xpose.msra.mxu0 0.0
        %2127 = vmatpush.xpose.msra.mxu0 0.0
        %2128 = vmatpush.xpose.msra.mxu0 %v2111
        %2129 = vmatmul.f32.gmra.mxu0 %v2105
        %v2130 = vpop.f32.mrf.mxu0
        %v2131 = vadd.f32 0.0, %v2130
        %2132 = vmatmul.f32.gmra.mxu0 %v2108
        %v2133 = vpop.f32.mrf.mxu0
        %v2134 = vadd.f32 0.0, %v2133
        %2135 = vdwg.mxu0
        %v2136 = vmul.f32 %v2131, 0.35355338
        %v2137 = vmul.f32 %v2134, 0.35355338
        %v2138 = vsel %vm815, %v2136, -inf
        %2139 = vmax.xlane.f32.xlu0 %v2138
        %v2140 = vpop.xlane.xlu0 %2139
        %v2141 = vsel %vm815, %v2137, -inf
        %2142 = vmax.xlane.f32.xlu0 %v2141
        %v2143 = vpop.xlane.xlu0 %2142
        %v2144 = vsub.f32 %v2136, %v2140
        %v2145 = vsub.f32 %v2137, %v2143
        %v2146 = vmul.f32 %v2144, 1.442695
        %v2147 = vpow.pop %v2146
        %v2148 = vmul.f32 %v2145, 1.442695
        %v2149 = vpow.pop %v2148
        %v2150 = vsel %vm815, %v2147, 0.0
        %2151 = vadd.xlane.f32.xlu0 %v2150
        %v2152 = vpop.xlane.xlu0 %2151
        %v2153 = vsel %vm815, %v2149, 0.0
        %2154 = vadd.xlane.f32.xlu0 %v2153
        %v2155 = vpop.xlane.xlu0 %2154
        %v2156 = vrcp.pop %v2152
        %v2157 = vrcp.pop %v2155
        %v2158 = vmul.f32 %v2147, %v2156
        %v2159 = vmul.f32 %v2149, %v2157
        %v2161 = vsel %vm815, %v2158, 0
        %v2164 = vsel %vm815, %v2159, 0
        %2166 = vmatpush.msra.mxu0 0.0
        %2167 = vmatpush.msra.mxu0 0.0
        %2168 = vmatpush.msra.mxu0 0.0
        %2169 = vmatpush.msra.mxu0 0.0
        %2170 = vmatpush.msra.mxu0 0.0
        %2171 = vmatpush.msra.mxu0 0.0
        %2172 = vmatpush.msra.mxu0 0.0
        %2173 = vmatpush.msra.mxu0 0.0
        %2174 = vmatpush.msra.mxu0 0.0
        %2175 = vmatpush.msra.mxu0 0.0
        %2176 = vmatpush.msra.mxu0 0.0
        %2177 = vmatpush.msra.mxu0 0.0
        %2178 = vmatpush.msra.mxu0 0.0
        %2179 = vmatpush.msra.mxu0 0.0
        %2180 = vmatpush.msra.mxu0 0.0
        %2181 = vmatpush.msra.mxu0 %v2102
        %2182 = vmatmul.f32.gmra.mxu0 %v2161
        %v2183 = vpop.f32.mrf.mxu0
        %v2184 = vadd.f32 0.0, %v2183
        %2185 = vmatmul.f32.gmra.mxu0 %v2164
        %v2186 = vpop.f32.mrf.mxu0
        %v2187 = vadd.f32 0.0, %v2186
        %2188 = vdwg.mxu0
        %s2189 = scalar_lea.vmem %s14, 8
        %v2190 = vld [vmem:[%s2189] sm:$0xff]
        %v2192 = vsel %vm815, %v2184, 0
        %v2195 = vsel %vm815, %v2187, 0
        %2197 = vmatpush.msra.mxu0 0.0
        %2198 = vmatpush.msra.mxu0 0.0
        %2199 = vmatpush.msra.mxu0 0.0
        %2200 = vmatpush.msra.mxu0 0.0
        %2201 = vmatpush.msra.mxu0 0.0
        %2202 = vmatpush.msra.mxu0 0.0
        %2203 = vmatpush.msra.mxu0 0.0
        %2204 = vmatpush.msra.mxu0 0.0
        %2205 = vmatpush.msra.mxu0 0.0
        %2206 = vmatpush.msra.mxu0 0.0
        %2207 = vmatpush.msra.mxu0 0.0
        %2208 = vmatpush.msra.mxu0 0.0
        %2209 = vmatpush.msra.mxu0 0.0
        %2210 = vmatpush.msra.mxu0 0.0
        %2211 = vmatpush.msra.mxu0 0.0
        %2212 = vmatpush.msra.mxu0 %v2190
        %2213 = vmatmul.f32.gmra.mxu0 %v2192
        %v2214 = vpop.f32.mrf.mxu0
        %v2215 = vadd.f32 0.0, %v2214
        %2216 = vmatmul.f32.gmra.mxu0 %v2195
        %v2217 = vpop.f32.mrf.mxu0
        %v2218 = vadd.f32 0.0, %v2217
        %2219 = vdwg.mxu0
        %v2221 = vsel %vm815, %v2005, 0
        %v2224 = vsel %vm815, %v2008, 0
        %2226 = vmatpush.msra.mxu0 0.0
        %2227 = vmatpush.msra.mxu0 0.0
        %2228 = vmatpush.msra.mxu0 0.0
        %2229 = vmatpush.msra.mxu0 0.0
        %2230 = vmatpush.msra.mxu0 0.0
        %2231 = vmatpush.msra.mxu0 0.0
        %2232 = vmatpush.msra.mxu0 0.0
        %2233 = vmatpush.msra.mxu0 0.0
        %2234 = vmatpush.msra.mxu0 0.0
        %2235 = vmatpush.msra.mxu0 0.0
        %2236 = vmatpush.msra.mxu0 0.0
        %2237 = vmatpush.msra.mxu0 0.0
        %2238 = vmatpush.msra.mxu0 0.0
        %2239 = vmatpush.msra.mxu0 0.0
        %2240 = vmatpush.msra.mxu0 0.0
        %2241 = vmatpush.msra.mxu0 %v2010
        %2242 = vmatmul.f32.gmra.mxu0 %v2221
        %v2243 = vpop.f32.mrf.mxu0
        %v2244 = vadd.f32 %v2215, %v2243
        %2245 = vmatmul.f32.gmra.mxu0 %v2224
        %v2246 = vpop.f32.mrf.mxu0
        %v2247 = vadd.f32 %v2218, %v2246
        %2248 = vdwg.mxu0
        %s2249 = scalar_lea.vmem %s12, 64
        %v2250 = vld [vmem:[%s2249] sm:$0xff]
        %v2251 = vld [vmem:[%s2249 + $0x8] sm:$0xff]
        %v2252 = vld [vmem:[%s2249 + $0x10] sm:$0xff]
        %v2253 = vld [vmem:[%s2249 + $0x18] sm:$0xff]
        %s2254 = scalar_lea.vmem %s13, 2
        %v2255 = vld [vmem:[%s2254] sm:$0x1]
        %v2257 = vperm.slane %v2255, 0
        %2259 = vmatpush.msra.mxu0 0.0
        %2260 = vmatpush.msra.mxu0 0.0
        %2261 = vmatpush.msra.mxu0 0.0
        %2262 = vmatpush.msra.mxu0 0.0
        %2263 = vmatpush.msra.mxu0 0.0
        %2264 = vmatpush.msra.mxu0 0.0
        %2265 = vmatpush.msra.mxu0 0.0
        %2266 = vmatpush.msra.mxu0 0.0
        %2267 = vmatpush.msra.mxu0 0.0
        %2268 = vmatpush.msra.mxu0 0.0
        %2269 = vmatpush.msra.mxu0 0.0
        %2270 = vmatpush.msra.mxu0 0.0
        %2271 = vmatpush.msra.mxu0 %v2253
        %2272 = vmatpush.msra.mxu0 %v2252
        %2273 = vmatpush.msra.mxu0 %v2251
        %2274 = vmatpush.msra.mxu0 %v2250
        %2275 = vmatmul.f32.gmra.mxu0 %v1834
        %v2276 = vpop.f32.mrf.mxu0
        %v2277 = vadd.f32 %v2257, %v2276
        %2278 = vmatmul.f32.gmra.mxu0 %v1837
        %v2279 = vpop.f32.mrf.mxu0
        %v2280 = vadd.f32 %v2257, %v2279
        %2281 = vdwg.mxu0
        %s2282 = scalar_lea.vmem %s12, 192
        %v2283 = vld [vmem:[%s2282] sm:$0xff]
        %v2284 = vld [vmem:[%s2282 + $0x8] sm:$0xff]
        %v2285 = vld [vmem:[%s2282 + $0x10] sm:$0xff]
        %v2286 = vld [vmem:[%s2282 + $0x18] sm:$0xff]
        %s2287 = scalar_lea.vmem %s13, 6
        %v2288 = vld [vmem:[%s2287] sm:$0x1]
        %v2290 = vperm.slane %v2288, 0
        %2292 = vmatpush.msra.mxu0 0.0
        %2293 = vmatpush.msra.mxu0 0.0
        %2294 = vmatpush.msra.mxu0 0.0
        %2295 = vmatpush.msra.mxu0 0.0
        %2296 = vmatpush.msra.mxu0 0.0
        %2297 = vmatpush.msra.mxu0 0.0
        %2298 = vmatpush.msra.mxu0 0.0
        %2299 = vmatpush.msra.mxu0 0.0
        %2300 = vmatpush.msra.mxu0 0.0
        %2301 = vmatpush.msra.mxu0 0.0
        %2302 = vmatpush.msra.mxu0 0.0
        %2303 = vmatpush.msra.mxu0 0.0
        %2304 = vmatpush.msra.mxu0 %v2286
        %2305 = vmatpush.msra.mxu0 %v2285
        %2306 = vmatpush.msra.mxu0 %v2284
        %2307 = vmatpush.msra.mxu0 %v2283
        %2308 = vmatmul.f32.gmra.mxu0 %v1873
        %v2309 = vpop.f32.mrf.mxu0
        %v2310 = vadd.f32 %v2290, %v2309
        %2311 = vdwg.mxu0
        %s2312 = scalar_lea.vmem %s12, 320
        %v2313 = vld [vmem:[%s2312] sm:$0xff]
        %v2314 = vld [vmem:[%s2312 + $0x8] sm:$0xff]
        %v2315 = vld [vmem:[%s2312 + $0x10] sm:$0xff]
        %v2316 = vld [vmem:[%s2312 + $0x18] sm:$0xff]
        %s2317 = scalar_lea.vmem %s13, 10
        %v2318 = vld [vmem:[%s2317] sm:$0x1]
        %v2320 = vperm.slane %v2318, 0
        %2322 = vmatpush.msra.mxu0 0.0
        %2323 = vmatpush.msra.mxu0 0.0
        %2324 = vmatpush.msra.mxu0 0.0
        %2325 = vmatpush.msra.mxu0 0.0
        %2326 = vmatpush.msra.mxu0 0.0
        %2327 = vmatpush.msra.mxu0 0.0
        %2328 = vmatpush.msra.mxu0 0.0
        %2329 = vmatpush.msra.mxu0 0.0
        %2330 = vmatpush.msra.mxu0 0.0
        %2331 = vmatpush.msra.mxu0 0.0
        %2332 = vmatpush.msra.mxu0 0.0
        %2333 = vmatpush.msra.mxu0 0.0
        %2334 = vmatpush.msra.mxu0 %v2316
        %2335 = vmatpush.msra.mxu0 %v2315
        %2336 = vmatpush.msra.mxu0 %v2314
        %2337 = vmatpush.msra.mxu0 %v2313
        %2338 = vmatmul.f32.gmra.mxu0 %v1873
        %v2339 = vpop.f32.mrf.mxu0
        %v2340 = vadd.f32 %v2320, %v2339
        %2341 = vdwg.mxu0
        %v2343 = vsel %vm815, %v2277, 0
        %v2346 = vsel %vm815, %v2280, 0
        %v2349 = vsel %vm815, %v2310, 0
        %2351 = vmatpush.xpose.msra.mxu0 0.0
        %2352 = vmatpush.xpose.msra.mxu0 0.0
        %2353 = vmatpush.xpose.msra.mxu0 0.0
        %2354 = vmatpush.xpose.msra.mxu0 0.0
        %2355 = vmatpush.xpose.msra.mxu0 0.0
        %2356 = vmatpush.xpose.msra.mxu0 0.0
        %2357 = vmatpush.xpose.msra.mxu0 0.0
        %2358 = vmatpush.xpose.msra.mxu0 0.0
        %2359 = vmatpush.xpose.msra.mxu0 0.0
        %2360 = vmatpush.xpose.msra.mxu0 0.0
        %2361 = vmatpush.xpose.msra.mxu0 0.0
        %2362 = vmatpush.xpose.msra.mxu0 0.0
        %2363 = vmatpush.xpose.msra.mxu0 0.0
        %2364 = vmatpush.xpose.msra.mxu0 0.0
        %2365 = vmatpush.xpose.msra.mxu0 0.0
        %2366 = vmatpush.xpose.msra.mxu0 %v2349
        %2367 = vmatmul.f32.gmra.mxu0 %v2343
        %v2368 = vpop.f32.mrf.mxu0
        %v2369 = vadd.f32 0.0, %v2368
        %2370 = vmatmul.f32.gmra.mxu0 %v2346
        %v2371 = vpop.f32.mrf.mxu0
        %v2372 = vadd.f32 0.0, %v2371
        %2373 = vdwg.mxu0
        %v2374 = vmul.f32 %v2369, 0.35355338
        %v2375 = vmul.f32 %v2372, 0.35355338
        %v2376 = vsel %vm815, %v2374, -inf
        %2377 = vmax.xlane.f32.xlu0 %v2376
        %v2378 = vpop.xlane.xlu0 %2377
        %v2379 = vsel %vm815, %v2375, -inf
        %2380 = vmax.xlane.f32.xlu0 %v2379
        %v2381 = vpop.xlane.xlu0 %2380
        %v2382 = vsub.f32 %v2374, %v2378
        %v2383 = vsub.f32 %v2375, %v2381
        %v2384 = vmul.f32 %v2382, 1.442695
        %v2385 = vpow.pop %v2384
        %v2386 = vmul.f32 %v2383, 1.442695
        %v2387 = vpow.pop %v2386
        %v2388 = vsel %vm815, %v2385, 0.0
        %2389 = vadd.xlane.f32.xlu0 %v2388
        %v2390 = vpop.xlane.xlu0 %2389
        %v2391 = vsel %vm815, %v2387, 0.0
        %2392 = vadd.xlane.f32.xlu0 %v2391
        %v2393 = vpop.xlane.xlu0 %2392
        %v2394 = vrcp.pop %v2390
        %v2395 = vrcp.pop %v2393
        %v2396 = vmul.f32 %v2385, %v2394
        %v2397 = vmul.f32 %v2387, %v2395
        %v2399 = vsel %vm815, %v2396, 0
        %v2402 = vsel %vm815, %v2397, 0
        %2404 = vmatpush.msra.mxu0 0.0
        %2405 = vmatpush.msra.mxu0 0.0
        %2406 = vmatpush.msra.mxu0 0.0
        %2407 = vmatpush.msra.mxu0 0.0
        %2408 = vmatpush.msra.mxu0 0.0
        %2409 = vmatpush.msra.mxu0 0.0
        %2410 = vmatpush.msra.mxu0 0.0
        %2411 = vmatpush.msra.mxu0 0.0
        %2412 = vmatpush.msra.mxu0 0.0
        %2413 = vmatpush.msra.mxu0 0.0
        %2414 = vmatpush.msra.mxu0 0.0
        %2415 = vmatpush.msra.mxu0 0.0
        %2416 = vmatpush.msra.mxu0 0.0
        %2417 = vmatpush.msra.mxu0 0.0
        %2418 = vmatpush.msra.mxu0 0.0
        %2419 = vmatpush.msra.mxu0 %v2340
        %2420 = vmatmul.f32.gmra.mxu0 %v2399
        %v2421 = vpop.f32.mrf.mxu0
        %v2422 = vadd.f32 0.0, %v2421
        %2423 = vmatmul.f32.gmra.mxu0 %v2402
        %v2424 = vpop.f32.mrf.mxu0
        %v2425 = vadd.f32 0.0, %v2424
        %2426 = vdwg.mxu0
        %s2427 = scalar_lea.vmem %s14, 16
        %v2428 = vld [vmem:[%s2427] sm:$0xff]
        %v2430 = vsel %vm815, %v2422, 0
        %v2433 = vsel %vm815, %v2425, 0
        %2435 = vmatpush.msra.mxu0 0.0
        %2436 = vmatpush.msra.mxu0 0.0
        %2437 = vmatpush.msra.mxu0 0.0
        %2438 = vmatpush.msra.mxu0 0.0
        %2439 = vmatpush.msra.mxu0 0.0
        %2440 = vmatpush.msra.mxu0 0.0
        %2441 = vmatpush.msra.mxu0 0.0
        %2442 = vmatpush.msra.mxu0 0.0
        %2443 = vmatpush.msra.mxu0 0.0
        %2444 = vmatpush.msra.mxu0 0.0
        %2445 = vmatpush.msra.mxu0 0.0
        %2446 = vmatpush.msra.mxu0 0.0
        %2447 = vmatpush.msra.mxu0 0.0
        %2448 = vmatpush.msra.mxu0 0.0
        %2449 = vmatpush.msra.mxu0 0.0
        %2450 = vmatpush.msra.mxu0 %v2428
        %2451 = vmatmul.f32.gmra.mxu0 %v2430
        %v2452 = vpop.f32.mrf.mxu0
        %v2453 = vadd.f32 0.0, %v2452
        %2454 = vmatmul.f32.gmra.mxu0 %v2433
        %v2455 = vpop.f32.mrf.mxu0
        %v2456 = vadd.f32 0.0, %v2455
        %2457 = vdwg.mxu0
        %v2458 = vadd.f32 %v2244, %v2453
        %v2459 = vadd.f32 %v2247, %v2456
        %s2460 = scalar_lea.vmem %s12, 96
        %v2461 = vld [vmem:[%s2460] sm:$0xff]
        %v2462 = vld [vmem:[%s2460 + $0x8] sm:$0xff]
        %v2463 = vld [vmem:[%s2460 + $0x10] sm:$0xff]
        %v2464 = vld [vmem:[%s2460 + $0x18] sm:$0xff]
        %s2465 = scalar_lea.vmem %s13, 3
        %v2466 = vld [vmem:[%s2465] sm:$0x1]
        %v2468 = vperm.slane %v2466, 0
        %2470 = vmatpush.msra.mxu0 0.0
        %2471 = vmatpush.msra.mxu0 0.0
        %2472 = vmatpush.msra.mxu0 0.0
        %2473 = vmatpush.msra.mxu0 0.0
        %2474 = vmatpush.msra.mxu0 0.0
        %2475 = vmatpush.msra.mxu0 0.0
        %2476 = vmatpush.msra.mxu0 0.0
        %2477 = vmatpush.msra.mxu0 0.0
        %2478 = vmatpush.msra.mxu0 0.0
        %2479 = vmatpush.msra.mxu0 0.0
        %2480 = vmatpush.msra.mxu0 0.0
        %2481 = vmatpush.msra.mxu0 0.0
        %2482 = vmatpush.msra.mxu0 %v2464
        %2483 = vmatpush.msra.mxu0 %v2463
        %2484 = vmatpush.msra.mxu0 %v2462
        %2485 = vmatpush.msra.mxu0 %v2461
        %2486 = vmatmul.f32.gmra.mxu0 %v1834
        %v2487 = vpop.f32.mrf.mxu0
        %v2488 = vadd.f32 %v2468, %v2487
        %2489 = vmatmul.f32.gmra.mxu0 %v1837
        %v2490 = vpop.f32.mrf.mxu0
        %v2491 = vadd.f32 %v2468, %v2490
        %2492 = vdwg.mxu0
        %s2493 = scalar_lea.vmem %s12, 224
        %v2494 = vld [vmem:[%s2493] sm:$0xff]
        %v2495 = vld [vmem:[%s2493 + $0x8] sm:$0xff]
        %v2496 = vld [vmem:[%s2493 + $0x10] sm:$0xff]
        %v2497 = vld [vmem:[%s2493 + $0x18] sm:$0xff]
        %s2498 = scalar_lea.vmem %s13, 7
        %v2499 = vld [vmem:[%s2498] sm:$0x1]
        %v2501 = vperm.slane %v2499, 0
        %2503 = vmatpush.msra.mxu0 0.0
        %2504 = vmatpush.msra.mxu0 0.0
        %2505 = vmatpush.msra.mxu0 0.0
        %2506 = vmatpush.msra.mxu0 0.0
        %2507 = vmatpush.msra.mxu0 0.0
        %2508 = vmatpush.msra.mxu0 0.0
        %2509 = vmatpush.msra.mxu0 0.0
        %2510 = vmatpush.msra.mxu0 0.0
        %2511 = vmatpush.msra.mxu0 0.0
        %2512 = vmatpush.msra.mxu0 0.0
        %2513 = vmatpush.msra.mxu0 0.0
        %2514 = vmatpush.msra.mxu0 0.0
        %2515 = vmatpush.msra.mxu0 %v2497
        %2516 = vmatpush.msra.mxu0 %v2496
        %2517 = vmatpush.msra.mxu0 %v2495
        %2518 = vmatpush.msra.mxu0 %v2494
        %2519 = vmatmul.f32.gmra.mxu0 %v1873
        %v2520 = vpop.f32.mrf.mxu0
        %v2521 = vadd.f32 %v2501, %v2520
        %2522 = vdwg.mxu0
        %s2523 = scalar_lea.vmem %s12, 352
        %v2524 = vld [vmem:[%s2523] sm:$0xff]
        %v2525 = vld [vmem:[%s2523 + $0x8] sm:$0xff]
        %v2526 = vld [vmem:[%s2523 + $0x10] sm:$0xff]
        %v2527 = vld [vmem:[%s2523 + $0x18] sm:$0xff]
        %s2528 = scalar_lea.vmem %s13, 11
        %v2529 = vld [vmem:[%s2528] sm:$0x1]
        %v2531 = vperm.slane %v2529, 0
        %2533 = vmatpush.msra.mxu0 0.0
        %2534 = vmatpush.msra.mxu0 0.0
        %2535 = vmatpush.msra.mxu0 0.0
        %2536 = vmatpush.msra.mxu0 0.0
        %2537 = vmatpush.msra.mxu0 0.0
        %2538 = vmatpush.msra.mxu0 0.0
        %2539 = vmatpush.msra.mxu0 0.0
        %2540 = vmatpush.msra.mxu0 0.0
        %2541 = vmatpush.msra.mxu0 0.0
        %2542 = vmatpush.msra.mxu0 0.0
        %2543 = vmatpush.msra.mxu0 0.0
        %2544 = vmatpush.msra.mxu0 0.0
        %2545 = vmatpush.msra.mxu0 %v2527
        %2546 = vmatpush.msra.mxu0 %v2526
        %2547 = vmatpush.msra.mxu0 %v2525
        %2548 = vmatpush.msra.mxu0 %v2524
        %2549 = vmatmul.f32.gmra.mxu0 %v1873
        %v2550 = vpop.f32.mrf.mxu0
        %v2551 = vadd.f32 %v2531, %v2550
        %2552 = vdwg.mxu0
        %v2554 = vsel %vm815, %v2488, 0
        %v2557 = vsel %vm815, %v2491, 0
        %v2560 = vsel %vm815, %v2521, 0
        %2562 = vmatpush.xpose.msra.mxu0 0.0
        %2563 = vmatpush.xpose.msra.mxu0 0.0
        %2564 = vmatpush.xpose.msra.mxu0 0.0
        %2565 = vmatpush.xpose.msra.mxu0 0.0
        %2566 = vmatpush.xpose.msra.mxu0 0.0
        %2567 = vmatpush.xpose.msra.mxu0 0.0
        %2568 = vmatpush.xpose.msra.mxu0 0.0
        %2569 = vmatpush.xpose.msra.mxu0 0.0
        %2570 = vmatpush.xpose.msra.mxu0 0.0
        %2571 = vmatpush.xpose.msra.mxu0 0.0
        %2572 = vmatpush.xpose.msra.mxu0 0.0
        %2573 = vmatpush.xpose.msra.mxu0 0.0
        %2574 = vmatpush.xpose.msra.mxu0 0.0
        %2575 = vmatpush.xpose.msra.mxu0 0.0
        %2576 = vmatpush.xpose.msra.mxu0 0.0
        %2577 = vmatpush.xpose.msra.mxu0 %v2560
        %2578 = vmatmul.f32.gmra.mxu0 %v2554
        %v2579 = vpop.f32.mrf.mxu0
        %v2580 = vadd.f32 0.0, %v2579
        %2581 = vmatmul.f32.gmra.mxu0 %v2557
        %v2582 = vpop.f32.mrf.mxu0
        %v2583 = vadd.f32 0.0, %v2582
        %2584 = vdwg.mxu0
        %v2585 = vmul.f32 %v2580, 0.35355338
        %v2586 = vmul.f32 %v2583, 0.35355338
        %v2587 = vsel %vm815, %v2585, -inf
        %2588 = vmax.xlane.f32.xlu0 %v2587
        %v2589 = vpop.xlane.xlu0 %2588
        %v2590 = vsel %vm815, %v2586, -inf
        %2591 = vmax.xlane.f32.xlu0 %v2590
        %v2592 = vpop.xlane.xlu0 %2591
        %v2593 = vsub.f32 %v2585, %v2589
        %v2594 = vsub.f32 %v2586, %v2592
        %v2595 = vmul.f32 %v2593, 1.442695
        %v2596 = vpow.pop %v2595
        %v2597 = vmul.f32 %v2594, 1.442695
        %v2598 = vpow.pop %v2597
        %v2599 = vsel %vm815, %v2596, 0.0
        %2600 = vadd.xlane.f32.xlu0 %v2599
        %v2601 = vpop.xlane.xlu0 %2600
        %v2602 = vsel %vm815, %v2598, 0.0
        %2603 = vadd.xlane.f32.xlu0 %v2602
        %v2604 = vpop.xlane.xlu0 %2603
        %v2605 = vrcp.pop %v2601
        %v2606 = vrcp.pop %v2604
        %v2607 = vmul.f32 %v2596, %v2605
        %v2608 = vmul.f32 %v2598, %v2606
        %v2610 = vsel %vm815, %v2607, 0
        %v2613 = vsel %vm815, %v2608, 0
        %2615 = vmatpush.msra.mxu0 0.0
        %2616 = vmatpush.msra.mxu0 0.0
        %2617 = vmatpush.msra.mxu0 0.0
        %2618 = vmatpush.msra.mxu0 0.0
        %2619 = vmatpush.msra.mxu0 0.0
        %2620 = vmatpush.msra.mxu0 0.0
        %2621 = vmatpush.msra.mxu0 0.0
        %2622 = vmatpush.msra.mxu0 0.0
        %2623 = vmatpush.msra.mxu0 0.0
        %2624 = vmatpush.msra.mxu0 0.0
        %2625 = vmatpush.msra.mxu0 0.0
        %2626 = vmatpush.msra.mxu0 0.0
        %2627 = vmatpush.msra.mxu0 0.0
        %2628 = vmatpush.msra.mxu0 0.0
        %2629 = vmatpush.msra.mxu0 0.0
        %2630 = vmatpush.msra.mxu0 %v2551
        %2631 = vmatmul.f32.gmra.mxu0 %v2610
        %v2632 = vpop.f32.mrf.mxu0
        %v2633 = vadd.f32 0.0, %v2632
        %2634 = vmatmul.f32.gmra.mxu0 %v2613
        %v2635 = vpop.f32.mrf.mxu0
        %v2636 = vadd.f32 0.0, %v2635
        %2637 = vdwg.mxu0
        %s2638 = scalar_lea.vmem %s14, 24
        %v2639 = vld [vmem:[%s2638] sm:$0xff]
        %v2641 = vsel %vm815, %v2633, 0
        %v2644 = vsel %vm815, %v2636, 0
        %2646 = vmatpush.msra.mxu0 0.0
        %2647 = vmatpush.msra.mxu0 0.0
        %2648 = vmatpush.msra.mxu0 0.0
        %2649 = vmatpush.msra.mxu0 0.0
        %2650 = vmatpush.msra.mxu0 0.0
        %2651 = vmatpush.msra.mxu0 0.0
        %2652 = vmatpush.msra.mxu0 0.0
        %2653 = vmatpush.msra.mxu0 0.0
        %2654 = vmatpush.msra.mxu0 0.0
        %2655 = vmatpush.msra.mxu0 0.0
        %2656 = vmatpush.msra.mxu0 0.0
        %2657 = vmatpush.msra.mxu0 0.0
        %2658 = vmatpush.msra.mxu0 0.0
        %2659 = vmatpush.msra.mxu0 0.0
        %2660 = vmatpush.msra.mxu0 0.0
        %2661 = vmatpush.msra.mxu0 %v2639
        %2662 = vmatmul.f32.gmra.mxu0 %v2641
        %v2663 = vpop.f32.mrf.mxu0
        %v2664 = vadd.f32 0.0, %v2663
        %2665 = vmatmul.f32.gmra.mxu0 %v2644
        %v2666 = vpop.f32.mrf.mxu0
        %v2667 = vadd.f32 0.0, %v2666
        %2668 = vdwg.mxu0
        %v2669 = vadd.f32 %v2458, %v2664
        %v2670 = vadd.f32 %v2459, %v2667
        %v2671 = vld [vmem:[%s15] sm:$0x1]
        %v2673 = vperm.slane %v2671, 0
        %v2675 = vadd.f32 %v2669, %v2673
        %v2676 = vadd.f32 %v2670, %v2673
        %v2677 = vadd.f32 %v1764, %v2675
        %v2678 = vadd.f32 %v1767, %v2676
        %v2679 = vsel %vm648, %v2677, 0.0
        %2680 = vadd.xlane.f32.xlu0 %v2679
        %v2681 = vpop.xlane.xlu0 %2680
        %v2682 = vsel %vm648, %v2678, 0.0
        %2683 = vadd.xlane.f32.xlu0 %v2682
        %v2684 = vpop.xlane.xlu0 %2683
        %v2685 = vmul.f32 %v2681, %v661
        %v2686 = vmul.f32 %v2684, %v661
        %v2687 = vsub.f32 %v2677, %v2685
        %v2688 = vsub.f32 %v2678, %v2686
        %v2689 = vmul.f32 %v2687, %v2687
        %v2690 = vmul.f32 %v2688, %v2688
        %v2691 = vsel %vm648, %v2689, 0.0
        %2692 = vadd.xlane.f32.xlu0 %v2691
        %v2693 = vpop.xlane.xlu0 %2692
        %v2694 = vsel %vm648, %v2690, 0.0
        %2695 = vadd.xlane.f32.xlu0 %v2694
        %v2696 = vpop.xlane.xlu0 %2695
        %v2697 = vmul.f32 %v2693, %v661
        %v2698 = vmul.f32 %v2696, %v661
        %v2699 = vadd.f32 %v2697, 1e-05
        %v2700 = vadd.f32 %v2698, 1e-05
        %v2701 = vrsqrt.pop %v2699
        %v2702 = vmul.f32 %v2701, %v2699
        %v2703 = vmul.f32 %v2702, %v2701
        %v2704 = vmul.f32 0.5, %v2703
        %v2705 = vsub.f32 1.5, %v2704
        %v2706 = vmul.f32 %v2701, %v2705
        %vm2707 = vweird.f32 %v2699
        %vm2708 = vweird.f32 %v2701
        %vm2709 = vmor %vm2707, %vm2708
        %v2710 = vsel %vm2709, %v2701, %v2706
        %v2711 = vrsqrt.pop %v2700
        %v2712 = vmul.f32 %v2711, %v2700
        %v2713 = vmul.f32 %v2712, %v2711
        %v2714 = vmul.f32 0.5, %v2713
        %v2715 = vsub.f32 1.5, %v2714
        %v2716 = vmul.f32 %v2711, %v2715
        %vm2717 = vweird.f32 %v2700
        %vm2718 = vweird.f32 %v2711
        %vm2719 = vmor %vm2717, %vm2718
        %v2720 = vsel %vm2719, %v2711, %v2716
        %v2721 = vmul.f32 %v2687, %v2710
        %v2722 = vmul.f32 %v2688, %v2720
        %v2723 = vld [vmem:[%s6] sm:$0x1]
        %v2725 = vperm.slane %v2723, 0
        %v2727 = vmul.f32 %v2721, %v2725
        %v2728 = vmul.f32 %v2722, %v2725
        %v2729 = vld [vmem:[%s7] sm:$0x1]
        %v2731 = vperm.slane %v2729, 0
        %v2733 = vadd.f32 %v2727, %v2731
        %v2734 = vadd.f32 %v2728, %v2731
        %v2736 = vsel %vm648, %v2733, 0
        %v2739 = vsel %vm648, %v2734, 0
        %2741 = vmatpush.msra.mxu0 0.0
        %2742 = vmatpush.msra.mxu0 0.0
        %2743 = vmatpush.msra.mxu0 0.0
        %2744 = vmatpush.msra.mxu0 0.0
        %2745 = vmatpush.msra.mxu0 0.0
        %2746 = vmatpush.msra.mxu0 0.0
        %2747 = vmatpush.msra.mxu0 0.0
        %2748 = vmatpush.msra.mxu0 0.0
        %2749 = vmatpush.msra.mxu0 0.0
        %2750 = vmatpush.msra.mxu0 0.0
        %2751 = vmatpush.msra.mxu0 0.0
        %2752 = vmatpush.msra.mxu0 0.0
        %2753 = vmatpush.msra.mxu0 %v715
        %2754 = vmatpush.msra.mxu0 %v714
        %2755 = vmatpush.msra.mxu0 %v713
        %2756 = vmatpush.msra.mxu0 %v712
        %2757 = vmatmul.f32.gmra.mxu0 %v2736
        %v2758 = vpop.f32.mrf.mxu0
        %v2759 = vadd.f32 %v718, %v2758
        %2760 = vmatmul.f32.gmra.mxu0 %v2739
        %v2761 = vpop.f32.mrf.mxu0
        %v2762 = vadd.f32 %v718, %v2761
        %2763 = vdwg.mxu0
        %2764 = vmatpush.msra.mxu0 0.0
        %2765 = vmatpush.msra.mxu0 0.0
        %2766 = vmatpush.msra.mxu0 0.0
        %2767 = vmatpush.msra.mxu0 0.0
        %2768 = vmatpush.msra.mxu0 0.0
        %2769 = vmatpush.msra.mxu0 0.0
        %2770 = vmatpush.msra.mxu0 0.0
        %2771 = vmatpush.msra.mxu0 0.0
        %2772 = vmatpush.msra.mxu0 0.0
        %2773 = vmatpush.msra.mxu0 0.0
        %2774 = vmatpush.msra.mxu0 0.0
        %2775 = vmatpush.msra.mxu0 0.0
        %2776 = vmatpush.msra.mxu0 %v753
        %2777 = vmatpush.msra.mxu0 %v752
        %2778 = vmatpush.msra.mxu0 %v751
        %2779 = vmatpush.msra.mxu0 %v750
        %2780 = vmatmul.f32.gmra.mxu0 %v2736
        %v2781 = vpop.f32.mrf.mxu0
        %v2782 = vadd.f32 %v757, %v2781
        %2783 = vmatmul.f32.gmra.mxu0 %v2739
        %v2784 = vpop.f32.mrf.mxu0
        %v2785 = vadd.f32 %v757, %v2784
        %2786 = vdwg.mxu0
        %2787 = vmatpush.msra.mxu0 0.0
        %2788 = vmatpush.msra.mxu0 0.0
        %2789 = vmatpush.msra.mxu0 0.0
        %2790 = vmatpush.msra.mxu0 0.0
        %2791 = vmatpush.msra.mxu0 0.0
        %2792 = vmatpush.msra.mxu0 0.0
        %2793 = vmatpush.msra.mxu0 0.0
        %2794 = vmatpush.msra.mxu0 0.0
        %2795 = vmatpush.msra.mxu0 0.0
        %2796 = vmatpush.msra.mxu0 0.0
        %2797 = vmatpush.msra.mxu0 0.0
        %2798 = vmatpush.msra.mxu0 0.0
        %2799 = vmatpush.msra.mxu0 %v786
        %2800 = vmatpush.msra.mxu0 %v785
        %2801 = vmatpush.msra.mxu0 %v784
        %2802 = vmatpush.msra.mxu0 %v783
        %2803 = vmatmul.f32.gmra.mxu0 %v2736
        %v2804 = vpop.f32.mrf.mxu0
        %v2805 = vadd.f32 %v790, %v2804
        %2806 = vmatmul.f32.gmra.mxu0 %v2739
        %v2807 = vpop.f32.mrf.mxu0
        %v2808 = vadd.f32 %v790, %v2807
        %2809 = vdwg.mxu0
        %v2811 = vsel %vm815, %v2759, 0
        %v2814 = vsel %vm815, %v2762, 0
        %v2817 = vsel %vm815, %v2782, 0
        %v2820 = vsel %vm815, %v2785, 0
        %2822 = vmatpush.xpose.msra.mxu0 0.0
        %2823 = vmatpush.xpose.msra.mxu0 0.0
        %2824 = vmatpush.xpose.msra.mxu0 0.0
        %2825 = vmatpush.xpose.msra.mxu0 0.0
        %2826 = vmatpush.xpose.msra.mxu0 0.0
        %2827 = vmatpush.xpose.msra.mxu0 0.0
        %2828 = vmatpush.xpose.msra.mxu0 0.0
        %2829 = vmatpush.xpose.msra.mxu0 0.0
        %2830 = vmatpush.xpose.msra.mxu0 0.0
        %2831 = vmatpush.xpose.msra.mxu0 0.0
        %2832 = vmatpush.xpose.msra.mxu0 0.0
        %2833 = vmatpush.xpose.msra.mxu0 0.0
        %2834 = vmatpush.xpose.msra.mxu0 0.0
        %2835 = vmatpush.xpose.msra.mxu0 0.0
        %2836 = vmatpush.xpose.msra.mxu0 %v2820
        %2837 = vmatpush.xpose.msra.mxu0 %v2817
        %2838 = vmatmul.f32.gmra.mxu0 %v2811
        %v2839 = vpop.f32.mrf.mxu0
        %v2840 = vadd.f32 0.0, %v2839
        %2841 = vmatmul.f32.gmra.mxu0 %v2814
        %v2842 = vpop.f32.mrf.mxu0
        %v2843 = vadd.f32 0.0, %v2842
        %2844 = vdwg.mxu0
        %v2845 = vmul.f32 %v2840, 0.35355338
        %v2846 = vmul.f32 %v2843, 0.35355338
        %v2847 = vsel %vm853, %v2845, -inf
        %2848 = vmax.xlane.f32.xlu0 %v2847
        %v2849 = vpop.xlane.xlu0 %2848
        %v2850 = vsel %vm853, %v2846, -inf
        %2851 = vmax.xlane.f32.xlu0 %v2850
        %v2852 = vpop.xlane.xlu0 %2851
        %v2853 = vsub.f32 %v2845, %v2849
        %v2854 = vsub.f32 %v2846, %v2852
        %v2855 = vmul.f32 %v2853, 1.442695
        %v2856 = vpow.pop %v2855
        %v2857 = vmul.f32 %v2854, 1.442695
        %v2858 = vpow.pop %v2857
        %v2859 = vsel %vm853, %v2856, 0.0
        %2860 = vadd.xlane.f32.xlu0 %v2859
        %v2861 = vpop.xlane.xlu0 %2860
        %v2862 = vsel %vm853, %v2858, 0.0
        %2863 = vadd.xlane.f32.xlu0 %v2862
        %v2864 = vpop.xlane.xlu0 %2863
        %v2865 = vrcp.pop %v2861
        %v2866 = vrcp.pop %v2864
        %v2867 = vmul.f32 %v2856, %v2865
        %v2868 = vmul.f32 %v2858, %v2866
        %v2870 = vsel %vm853, %v2867, 0
        %v2873 = vsel %vm853, %v2868, 0
        %2875 = vmatpush.msra.mxu0 0.0
        %2876 = vmatpush.msra.mxu0 0.0
        %2877 = vmatpush.msra.mxu0 0.0
        %2878 = vmatpush.msra.mxu0 0.0
        %2879 = vmatpush.msra.mxu0 0.0
        %2880 = vmatpush.msra.mxu0 0.0
        %2881 = vmatpush.msra.mxu0 0.0
        %2882 = vmatpush.msra.mxu0 0.0
        %2883 = vmatpush.msra.mxu0 0.0
        %2884 = vmatpush.msra.mxu0 0.0
        %2885 = vmatpush.msra.mxu0 0.0
        %2886 = vmatpush.msra.mxu0 0.0
        %2887 = vmatpush.msra.mxu0 0.0
        %2888 = vmatpush.msra.mxu0 0.0
        %2889 = vmatpush.msra.mxu0 %v2808
        %2890 = vmatpush.msra.mxu0 %v2805
        %2891 = vmatmul.f32.gmra.mxu0 %v2870
        %v2892 = vpop.f32.mrf.mxu0
        %v2893 = vadd.f32 0.0, %v2892
        %2894 = vmatmul.f32.gmra.mxu0 %v2873
        %v2895 = vpop.f32.mrf.mxu0
        %v2896 = vadd.f32 0.0, %v2895
        %2897 = vdwg.mxu0
        %2898 = vmatpush.msra.mxu0 0.0
        %2899 = vmatpush.msra.mxu0 0.0
        %2900 = vmatpush.msra.mxu0 0.0
        %2901 = vmatpush.msra.mxu0 0.0
        %2902 = vmatpush.msra.mxu0 0.0
        %2903 = vmatpush.msra.mxu0 0.0
        %2904 = vmatpush.msra.mxu0 0.0
        %2905 = vmatpush.msra.mxu0 0.0
        %2906 = vmatpush.msra.mxu0 0.0
        %2907 = vmatpush.msra.mxu0 0.0
        %2908 = vmatpush.msra.mxu0 0.0
        %2909 = vmatpush.msra.mxu0 0.0
        %2910 = vmatpush.msra.mxu0 %v910
        %2911 = vmatpush.msra.mxu0 %v909
        %2912 = vmatpush.msra.mxu0 %v908
        %2913 = vmatpush.msra.mxu0 %v907
        %2914 = vmatmul.f32.gmra.mxu0 %v2736
        %v2915 = vpop.f32.mrf.mxu0
        %v2916 = vadd.f32 %v914, %v2915
        %2917 = vmatmul.f32.gmra.mxu0 %v2739
        %v2918 = vpop.f32.mrf.mxu0
        %v2919 = vadd.f32 %v914, %v2918
        %2920 = vdwg.mxu0
        %2921 = vmatpush.msra.mxu0 0.0
        %2922 = vmatpush.msra.mxu0 0.0
        %2923 = vmatpush.msra.mxu0 0.0
        %2924 = vmatpush.msra.mxu0 0.0
        %2925 = vmatpush.msra.mxu0 0.0
        %2926 = vmatpush.msra.mxu0 0.0
        %2927 = vmatpush.msra.mxu0 0.0
        %2928 = vmatpush.msra.mxu0 0.0
        %2929 = vmatpush.msra.mxu0 0.0
        %2930 = vmatpush.msra.mxu0 0.0
        %2931 = vmatpush.msra.mxu0 0.0
        %2932 = vmatpush.msra.mxu0 0.0
        %2933 = vmatpush.msra.mxu0 %v943
        %2934 = vmatpush.msra.mxu0 %v942
        %2935 = vmatpush.msra.mxu0 %v941
        %2936 = vmatpush.msra.mxu0 %v940
        %2937 = vmatmul.f32.gmra.mxu0 %v2736
        %v2938 = vpop.f32.mrf.mxu0
        %v2939 = vadd.f32 %v947, %v2938
        %2940 = vmatmul.f32.gmra.mxu0 %v2739
        %v2941 = vpop.f32.mrf.mxu0
        %v2942 = vadd.f32 %v947, %v2941
        %2943 = vdwg.mxu0
        %2944 = vmatpush.msra.mxu0 0.0
        %2945 = vmatpush.msra.mxu0 0.0
        %2946 = vmatpush.msra.mxu0 0.0
        %2947 = vmatpush.msra.mxu0 0.0
        %2948 = vmatpush.msra.mxu0 0.0
        %2949 = vmatpush.msra.mxu0 0.0
        %2950 = vmatpush.msra.mxu0 0.0
        %2951 = vmatpush.msra.mxu0 0.0
        %2952 = vmatpush.msra.mxu0 0.0
        %2953 = vmatpush.msra.mxu0 0.0
        %2954 = vmatpush.msra.mxu0 0.0
        %2955 = vmatpush.msra.mxu0 0.0
        %2956 = vmatpush.msra.mxu0 %v976
        %2957 = vmatpush.msra.mxu0 %v975
        %2958 = vmatpush.msra.mxu0 %v974
        %2959 = vmatpush.msra.mxu0 %v973
        %2960 = vmatmul.f32.gmra.mxu0 %v2736
        %v2961 = vpop.f32.mrf.mxu0
        %v2962 = vadd.f32 %v980, %v2961
        %2963 = vmatmul.f32.gmra.mxu0 %v2739
        %v2964 = vpop.f32.mrf.mxu0
        %v2965 = vadd.f32 %v980, %v2964
        %2966 = vdwg.mxu0
        %v2968 = vsel %vm815, %v2916, 0
        %v2971 = vsel %vm815, %v2919, 0
        %v2974 = vsel %vm815, %v2939, 0
        %v2977 = vsel %vm815, %v2942, 0
        %2979 = vmatpush.xpose.msra.mxu0 0.0
        %2980 = vmatpush.xpose.msra.mxu0 0.0
        %2981 = vmatpush.xpose.msra.mxu0 0.0
        %2982 = vmatpush.xpose.msra.mxu0 0.0
        %2983 = vmatpush.xpose.msra.mxu0 0.0
        %2984 = vmatpush.xpose.msra.mxu0 0.0
        %2985 = vmatpush.xpose.msra.mxu0 0.0
        %2986 = vmatpush.xpose.msra.mxu0 0.0
        %2987 = vmatpush.xpose.msra.mxu0 0.0
        %2988 = vmatpush.xpose.msra.mxu0 0.0
        %2989 = vmatpush.xpose.msra.mxu0 0.0
        %2990 = vmatpush.xpose.msra.mxu0 0.0
        %2991 = vmatpush.xpose.msra.mxu0 0.0
        %2992 = vmatpush.xpose.msra.mxu0 0.0
        %2993 = vmatpush.xpose.msra.mxu0 %v2977
        %2994 = vmatpush.xpose.msra.mxu0 %v2974
        %2995 = vmatmul.f32.gmra.mxu0 %v2968
        %v2996 = vpop.f32.mrf.mxu0
        %v2997 = vadd.f32 0.0, %v2996
        %2998 = vmatmul.f32.gmra.mxu0 %v2971
        %v2999 = vpop.f32.mrf.mxu0
        %v3000 = vadd.f32 0.0, %v2999
        %3001 = vdwg.mxu0
        %v3002 = vmul.f32 %v2997, 0.35355338
        %v3003 = vmul.f32 %v3000, 0.35355338
        %v3004 = vsel %vm853, %v3002, -inf
        %3005 = vmax.xlane.f32.xlu0 %v3004
        %v3006 = vpop.xlane.xlu0 %3005
        %v3007 = vsel %vm853, %v3003, -inf
        %3008 = vmax.xlane.f32.xlu0 %v3007
        %v3009 = vpop.xlane.xlu0 %3008
        %v3010 = vsub.f32 %v3002, %v3006
        %v3011 = vsub.f32 %v3003, %v3009
        %v3012 = vmul.f32 %v3010, 1.442695
        %v3013 = vpow.pop %v3012
        %v3014 = vmul.f32 %v3011, 1.442695
        %v3015 = vpow.pop %v3014
        %v3016 = vsel %vm853, %v3013, 0.0
        %3017 = vadd.xlane.f32.xlu0 %v3016
        %v3018 = vpop.xlane.xlu0 %3017
        %v3019 = vsel %vm853, %v3015, 0.0
        %3020 = vadd.xlane.f32.xlu0 %v3019
        %v3021 = vpop.xlane.xlu0 %3020
        %v3022 = vrcp.pop %v3018
        %v3023 = vrcp.pop %v3021
        %v3024 = vmul.f32 %v3013, %v3022
        %v3025 = vmul.f32 %v3015, %v3023
        %v3027 = vsel %vm853, %v3024, 0
        %v3030 = vsel %vm853, %v3025, 0
        %3032 = vmatpush.msra.mxu0 0.0
        %3033 = vmatpush.msra.mxu0 0.0
        %3034 = vmatpush.msra.mxu0 0.0
        %3035 = vmatpush.msra.mxu0 0.0
        %3036 = vmatpush.msra.mxu0 0.0
        %3037 = vmatpush.msra.mxu0 0.0
        %3038 = vmatpush.msra.mxu0 0.0
        %3039 = vmatpush.msra.mxu0 0.0
        %3040 = vmatpush.msra.mxu0 0.0
        %3041 = vmatpush.msra.mxu0 0.0
        %3042 = vmatpush.msra.mxu0 0.0
        %3043 = vmatpush.msra.mxu0 0.0
        %3044 = vmatpush.msra.mxu0 0.0
        %3045 = vmatpush.msra.mxu0 0.0
        %3046 = vmatpush.msra.mxu0 %v2965
        %3047 = vmatpush.msra.mxu0 %v2962
        %3048 = vmatmul.f32.gmra.mxu0 %v3027
        %v3049 = vpop.f32.mrf.mxu0
        %v3050 = vadd.f32 0.0, %v3049
        %3051 = vmatmul.f32.gmra.mxu0 %v3030
        %v3052 = vpop.f32.mrf.mxu0
        %v3053 = vadd.f32 0.0, %v3052
        %3054 = vdwg.mxu0
        %v3056 = vsel %vm815, %v3050, 0
        %v3059 = vsel %vm815, %v3053, 0
        %3061 = vmatpush.msra.mxu0 0.0
        %3062 = vmatpush.msra.mxu0 0.0
        %3063 = vmatpush.msra.mxu0 0.0
        %3064 = vmatpush.msra.mxu0 0.0
        %3065 = vmatpush.msra.mxu0 0.0
        %3066 = vmatpush.msra.mxu0 0.0
        %3067 = vmatpush.msra.mxu0 0.0
        %3068 = vmatpush.msra.mxu0 0.0
        %3069 = vmatpush.msra.mxu0 0.0
        %3070 = vmatpush.msra.mxu0 0.0
        %3071 = vmatpush.msra.mxu0 0.0
        %3072 = vmatpush.msra.mxu0 0.0
        %3073 = vmatpush.msra.mxu0 0.0
        %3074 = vmatpush.msra.mxu0 0.0
        %3075 = vmatpush.msra.mxu0 0.0
        %3076 = vmatpush.msra.mxu0 %v1094
        %3077 = vmatmul.f32.gmra.mxu0 %v3056
        %v3078 = vpop.f32.mrf.mxu0
        %v3079 = vadd.f32 0.0, %v3078
        %3080 = vmatmul.f32.gmra.mxu0 %v3059
        %v3081 = vpop.f32.mrf.mxu0
        %v3082 = vadd.f32 0.0, %v3081
        %3083 = vdwg.mxu0
        %v3085 = vsel %vm815, %v2893, 0
        %v3088 = vsel %vm815, %v2896, 0
        %3090 = vmatpush.msra.mxu0 0.0
        %3091 = vmatpush.msra.mxu0 0.0
        %3092 = vmatpush.msra.mxu0 0.0
        %3093 = vmatpush.msra.mxu0 0.0
        %3094 = vmatpush.msra.mxu0 0.0
        %3095 = vmatpush.msra.mxu0 0.0
        %3096 = vmatpush.msra.mxu0 0.0
        %3097 = vmatpush.msra.mxu0 0.0
        %3098 = vmatpush.msra.mxu0 0.0
        %3099 = vmatpush.msra.mxu0 0.0
        %3100 = vmatpush.msra.mxu0 0.0
        %3101 = vmatpush.msra.mxu0 0.0
        %3102 = vmatpush.msra.mxu0 0.0
        %3103 = vmatpush.msra.mxu0 0.0
        %3104 = vmatpush.msra.mxu0 0.0
        %3105 = vmatpush.msra.mxu0 %v905
        %3106 = vmatmul.f32.gmra.mxu0 %v3085
        %v3107 = vpop.f32.mrf.mxu0
        %v3108 = vadd.f32 %v3079, %v3107
        %3109 = vmatmul.f32.gmra.mxu0 %v3088
        %v3110 = vpop.f32.mrf.mxu0
        %v3111 = vadd.f32 %v3082, %v3110
        %3112 = vdwg.mxu0
        %3113 = vmatpush.msra.mxu0 0.0
        %3114 = vmatpush.msra.mxu0 0.0
        %3115 = vmatpush.msra.mxu0 0.0
        %3116 = vmatpush.msra.mxu0 0.0
        %3117 = vmatpush.msra.mxu0 0.0
        %3118 = vmatpush.msra.mxu0 0.0
        %3119 = vmatpush.msra.mxu0 0.0
        %3120 = vmatpush.msra.mxu0 0.0
        %3121 = vmatpush.msra.mxu0 0.0
        %3122 = vmatpush.msra.mxu0 0.0
        %3123 = vmatpush.msra.mxu0 0.0
        %3124 = vmatpush.msra.mxu0 0.0
        %3125 = vmatpush.msra.mxu0 %v1157
        %3126 = vmatpush.msra.mxu0 %v1156
        %3127 = vmatpush.msra.mxu0 %v1155
        %3128 = vmatpush.msra.mxu0 %v1154
        %3129 = vmatmul.f32.gmra.mxu0 %v2736
        %v3130 = vpop.f32.mrf.mxu0
        %v3131 = vadd.f32 %v1161, %v3130
        %3132 = vmatmul.f32.gmra.mxu0 %v2739
        %v3133 = vpop.f32.mrf.mxu0
        %v3134 = vadd.f32 %v1161, %v3133
        %3135 = vdwg.mxu0
        %3136 = vmatpush.msra.mxu0 0.0
        %3137 = vmatpush.msra.mxu0 0.0
        %3138 = vmatpush.msra.mxu0 0.0
        %3139 = vmatpush.msra.mxu0 0.0
        %3140 = vmatpush.msra.mxu0 0.0
        %3141 = vmatpush.msra.mxu0 0.0
        %3142 = vmatpush.msra.mxu0 0.0
        %3143 = vmatpush.msra.mxu0 0.0
        %3144 = vmatpush.msra.mxu0 0.0
        %3145 = vmatpush.msra.mxu0 0.0
        %3146 = vmatpush.msra.mxu0 0.0
        %3147 = vmatpush.msra.mxu0 0.0
        %3148 = vmatpush.msra.mxu0 %v1190
        %3149 = vmatpush.msra.mxu0 %v1189
        %3150 = vmatpush.msra.mxu0 %v1188
        %3151 = vmatpush.msra.mxu0 %v1187
        %3152 = vmatmul.f32.gmra.mxu0 %v2736
        %v3153 = vpop.f32.mrf.mxu0
        %v3154 = vadd.f32 %v1194, %v3153
        %3155 = vmatmul.f32.gmra.mxu0 %v2739
        %v3156 = vpop.f32.mrf.mxu0
        %v3157 = vadd.f32 %v1194, %v3156
        %3158 = vdwg.mxu0
        %3159 = vmatpush.msra.mxu0 0.0
        %3160 = vmatpush.msra.mxu0 0.0
        %3161 = vmatpush.msra.mxu0 0.0
        %3162 = vmatpush.msra.mxu0 0.0
        %3163 = vmatpush.msra.mxu0 0.0
        %3164 = vmatpush.msra.mxu0 0.0
        %3165 = vmatpush.msra.mxu0 0.0
        %3166 = vmatpush.msra.mxu0 0.0
        %3167 = vmatpush.msra.mxu0 0.0
        %3168 = vmatpush.msra.mxu0 0.0
        %3169 = vmatpush.msra.mxu0 0.0
        %3170 = vmatpush.msra.mxu0 0.0
        %3171 = vmatpush.msra.mxu0 %v1223
        %3172 = vmatpush.msra.mxu0 %v1222
        %3173 = vmatpush.msra.mxu0 %v1221
        %3174 = vmatpush.msra.mxu0 %v1220
        %3175 = vmatmul.f32.gmra.mxu0 %v2736
        %v3176 = vpop.f32.mrf.mxu0
        %v3177 = vadd.f32 %v1227, %v3176
        %3178 = vmatmul.f32.gmra.mxu0 %v2739
        %v3179 = vpop.f32.mrf.mxu0
        %v3180 = vadd.f32 %v1227, %v3179
        %3181 = vdwg.mxu0
        %v3183 = vsel %vm815, %v3131, 0
        %v3186 = vsel %vm815, %v3134, 0
        %v3189 = vsel %vm815, %v3154, 0
        %v3192 = vsel %vm815, %v3157, 0
        %3194 = vmatpush.xpose.msra.mxu0 0.0
        %3195 = vmatpush.xpose.msra.mxu0 0.0
        %3196 = vmatpush.xpose.msra.mxu0 0.0
        %3197 = vmatpush.xpose.msra.mxu0 0.0
        %3198 = vmatpush.xpose.msra.mxu0 0.0
        %3199 = vmatpush.xpose.msra.mxu0 0.0
        %3200 = vmatpush.xpose.msra.mxu0 0.0
        %3201 = vmatpush.xpose.msra.mxu0 0.0
        %3202 = vmatpush.xpose.msra.mxu0 0.0
        %3203 = vmatpush.xpose.msra.mxu0 0.0
        %3204 = vmatpush.xpose.msra.mxu0 0.0
        %3205 = vmatpush.xpose.msra.mxu0 0.0
        %3206 = vmatpush.xpose.msra.mxu0 0.0
        %3207 = vmatpush.xpose.msra.mxu0 0.0
        %3208 = vmatpush.xpose.msra.mxu0 %v3192
        %3209 = vmatpush.xpose.msra.mxu0 %v3189
        %3210 = vmatmul.f32.gmra.mxu0 %v3183
        %v3211 = vpop.f32.mrf.mxu0
        %v3212 = vadd.f32 0.0, %v3211
        %3213 = vmatmul.f32.gmra.mxu0 %v3186
        %v3214 = vpop.f32.mrf.mxu0
        %v3215 = vadd.f32 0.0, %v3214
        %3216 = vdwg.mxu0
        %v3217 = vmul.f32 %v3212, 0.35355338
        %v3218 = vmul.f32 %v3215, 0.35355338
        %v3219 = vsel %vm853, %v3217, -inf
        %3220 = vmax.xlane.f32.xlu0 %v3219
        %v3221 = vpop.xlane.xlu0 %3220
        %v3222 = vsel %vm853, %v3218, -inf
        %3223 = vmax.xlane.f32.xlu0 %v3222
        %v3224 = vpop.xlane.xlu0 %3223
        %v3225 = vsub.f32 %v3217, %v3221
        %v3226 = vsub.f32 %v3218, %v3224
        %v3227 = vmul.f32 %v3225, 1.442695
        %v3228 = vpow.pop %v3227
        %v3229 = vmul.f32 %v3226, 1.442695
        %v3230 = vpow.pop %v3229
        %v3231 = vsel %vm853, %v3228, 0.0
        %3232 = vadd.xlane.f32.xlu0 %v3231
        %v3233 = vpop.xlane.xlu0 %3232
        %v3234 = vsel %vm853, %v3230, 0.0
        %3235 = vadd.xlane.f32.xlu0 %v3234
        %v3236 = vpop.xlane.xlu0 %3235
        %v3237 = vrcp.pop %v3233
        %v3238 = vrcp.pop %v3236
        %v3239 = vmul.f32 %v3228, %v3237
        %v3240 = vmul.f32 %v3230, %v3238
        %v3242 = vsel %vm853, %v3239, 0
        %v3245 = vsel %vm853, %v3240, 0
        %3247 = vmatpush.msra.mxu0 0.0
        %3248 = vmatpush.msra.mxu0 0.0
        %3249 = vmatpush.msra.mxu0 0.0
        %3250 = vmatpush.msra.mxu0 0.0
        %3251 = vmatpush.msra.mxu0 0.0
        %3252 = vmatpush.msra.mxu0 0.0
        %3253 = vmatpush.msra.mxu0 0.0
        %3254 = vmatpush.msra.mxu0 0.0
        %3255 = vmatpush.msra.mxu0 0.0
        %3256 = vmatpush.msra.mxu0 0.0
        %3257 = vmatpush.msra.mxu0 0.0
        %3258 = vmatpush.msra.mxu0 0.0
        %3259 = vmatpush.msra.mxu0 0.0
        %3260 = vmatpush.msra.mxu0 0.0
        %3261 = vmatpush.msra.mxu0 %v3180
        %3262 = vmatpush.msra.mxu0 %v3177
        %3263 = vmatmul.f32.gmra.mxu0 %v3242
        %v3264 = vpop.f32.mrf.mxu0
        %v3265 = vadd.f32 0.0, %v3264
        %3266 = vmatmul.f32.gmra.mxu0 %v3245
        %v3267 = vpop.f32.mrf.mxu0
        %v3268 = vadd.f32 0.0, %v3267
        %3269 = vdwg.mxu0
        %v3271 = vsel %vm815, %v3265, 0
        %v3274 = vsel %vm815, %v3268, 0
        %3276 = vmatpush.msra.mxu0 0.0
        %3277 = vmatpush.msra.mxu0 0.0
        %3278 = vmatpush.msra.mxu0 0.0
        %3279 = vmatpush.msra.mxu0 0.0
        %3280 = vmatpush.msra.mxu0 0.0
        %3281 = vmatpush.msra.mxu0 0.0
        %3282 = vmatpush.msra.mxu0 0.0
        %3283 = vmatpush.msra.mxu0 0.0
        %3284 = vmatpush.msra.mxu0 0.0
        %3285 = vmatpush.msra.mxu0 0.0
        %3286 = vmatpush.msra.mxu0 0.0
        %3287 = vmatpush.msra.mxu0 0.0
        %3288 = vmatpush.msra.mxu0 0.0
        %3289 = vmatpush.msra.mxu0 0.0
        %3290 = vmatpush.msra.mxu0 0.0
        %3291 = vmatpush.msra.mxu0 %v1341
        %3292 = vmatmul.f32.gmra.mxu0 %v3271
        %v3293 = vpop.f32.mrf.mxu0
        %v3294 = vadd.f32 0.0, %v3293
        %3295 = vmatmul.f32.gmra.mxu0 %v3274
        %v3296 = vpop.f32.mrf.mxu0
        %v3297 = vadd.f32 0.0, %v3296
        %3298 = vdwg.mxu0
        %v3299 = vadd.f32 %v3108, %v3294
        %v3300 = vadd.f32 %v3111, %v3297
        %3301 = vmatpush.msra.mxu0 0.0
        %3302 = vmatpush.msra.mxu0 0.0
        %3303 = vmatpush.msra.mxu0 0.0
        %3304 = vmatpush.msra.mxu0 0.0
        %3305 = vmatpush.msra.mxu0 0.0
        %3306 = vmatpush.msra.mxu0 0.0
        %3307 = vmatpush.msra.mxu0 0.0
        %3308 = vmatpush.msra.mxu0 0.0
        %3309 = vmatpush.msra.mxu0 0.0
        %3310 = vmatpush.msra.mxu0 0.0
        %3311 = vmatpush.msra.mxu0 0.0
        %3312 = vmatpush.msra.mxu0 0.0
        %3313 = vmatpush.msra.mxu0 %v1377
        %3314 = vmatpush.msra.mxu0 %v1376
        %3315 = vmatpush.msra.mxu0 %v1375
        %3316 = vmatpush.msra.mxu0 %v1374
        %3317 = vmatmul.f32.gmra.mxu0 %v2736
        %v3318 = vpop.f32.mrf.mxu0
        %v3319 = vadd.f32 %v1381, %v3318
        %3320 = vmatmul.f32.gmra.mxu0 %v2739
        %v3321 = vpop.f32.mrf.mxu0
        %v3322 = vadd.f32 %v1381, %v3321
        %3323 = vdwg.mxu0
        %3324 = vmatpush.msra.mxu0 0.0
        %3325 = vmatpush.msra.mxu0 0.0
        %3326 = vmatpush.msra.mxu0 0.0
        %3327 = vmatpush.msra.mxu0 0.0
        %3328 = vmatpush.msra.mxu0 0.0
        %3329 = vmatpush.msra.mxu0 0.0
        %3330 = vmatpush.msra.mxu0 0.0
        %3331 = vmatpush.msra.mxu0 0.0
        %3332 = vmatpush.msra.mxu0 0.0
        %3333 = vmatpush.msra.mxu0 0.0
        %3334 = vmatpush.msra.mxu0 0.0
        %3335 = vmatpush.msra.mxu0 0.0
        %3336 = vmatpush.msra.mxu0 %v1410
        %3337 = vmatpush.msra.mxu0 %v1409
        %3338 = vmatpush.msra.mxu0 %v1408
        %3339 = vmatpush.msra.mxu0 %v1407
        %3340 = vmatmul.f32.gmra.mxu0 %v2736
        %v3341 = vpop.f32.mrf.mxu0
        %v3342 = vadd.f32 %v1414, %v3341
        %3343 = vmatmul.f32.gmra.mxu0 %v2739
        %v3344 = vpop.f32.mrf.mxu0
        %v3345 = vadd.f32 %v1414, %v3344
        %3346 = vdwg.mxu0
        %3347 = vmatpush.msra.mxu0 0.0
        %3348 = vmatpush.msra.mxu0 0.0
        %3349 = vmatpush.msra.mxu0 0.0
        %3350 = vmatpush.msra.mxu0 0.0
        %3351 = vmatpush.msra.mxu0 0.0
        %3352 = vmatpush.msra.mxu0 0.0
        %3353 = vmatpush.msra.mxu0 0.0
        %3354 = vmatpush.msra.mxu0 0.0
        %3355 = vmatpush.msra.mxu0 0.0
        %3356 = vmatpush.msra.mxu0 0.0
        %3357 = vmatpush.msra.mxu0 0.0
        %3358 = vmatpush.msra.mxu0 0.0
        %3359 = vmatpush.msra.mxu0 %v1443
        %3360 = vmatpush.msra.mxu0 %v1442
        %3361 = vmatpush.msra.mxu0 %v1441
        %3362 = vmatpush.msra.mxu0 %v1440
        %3363 = vmatmul.f32.gmra.mxu0 %v2736
        %v3364 = vpop.f32.mrf.mxu0
        %v3365 = vadd.f32 %v1447, %v3364
        %3366 = vmatmul.f32.gmra.mxu0 %v2739
        %v3367 = vpop.f32.mrf.mxu0
        %v3368 = vadd.f32 %v1447, %v3367
        %3369 = vdwg.mxu0
        %v3371 = vsel %vm815, %v3319, 0
        %v3374 = vsel %vm815, %v3322, 0
        %v3377 = vsel %vm815, %v3342, 0
        %v3380 = vsel %vm815, %v3345, 0
        %3382 = vmatpush.xpose.msra.mxu0 0.0
        %3383 = vmatpush.xpose.msra.mxu0 0.0
        %3384 = vmatpush.xpose.msra.mxu0 0.0
        %3385 = vmatpush.xpose.msra.mxu0 0.0
        %3386 = vmatpush.xpose.msra.mxu0 0.0
        %3387 = vmatpush.xpose.msra.mxu0 0.0
        %3388 = vmatpush.xpose.msra.mxu0 0.0
        %3389 = vmatpush.xpose.msra.mxu0 0.0
        %3390 = vmatpush.xpose.msra.mxu0 0.0
        %3391 = vmatpush.xpose.msra.mxu0 0.0
        %3392 = vmatpush.xpose.msra.mxu0 0.0
        %3393 = vmatpush.xpose.msra.mxu0 0.0
        %3394 = vmatpush.xpose.msra.mxu0 0.0
        %3395 = vmatpush.xpose.msra.mxu0 0.0
        %3396 = vmatpush.xpose.msra.mxu0 %v3380
        %3397 = vmatpush.xpose.msra.mxu0 %v3377
        %3398 = vmatmul.f32.gmra.mxu0 %v3371
        %v3399 = vpop.f32.mrf.mxu0
        %v3400 = vadd.f32 0.0, %v3399
        %3401 = vmatmul.f32.gmra.mxu0 %v3374
        %v3402 = vpop.f32.mrf.mxu0
        %v3403 = vadd.f32 0.0, %v3402
        %3404 = vdwg.mxu0
        %v3405 = vmul.f32 %v3400, 0.35355338
        %v3406 = vmul.f32 %v3403, 0.35355338
        %v3407 = vsel %vm853, %v3405, -inf
        %3408 = vmax.xlane.f32.xlu0 %v3407
        %v3409 = vpop.xlane.xlu0 %3408
        %v3410 = vsel %vm853, %v3406, -inf
        %3411 = vmax.xlane.f32.xlu0 %v3410
        %v3412 = vpop.xlane.xlu0 %3411
        %v3413 = vsub.f32 %v3405, %v3409
        %v3414 = vsub.f32 %v3406, %v3412
        %v3415 = vmul.f32 %v3413, 1.442695
        %v3416 = vpow.pop %v3415
        %v3417 = vmul.f32 %v3414, 1.442695
        %v3418 = vpow.pop %v3417
        %v3419 = vsel %vm853, %v3416, 0.0
        %3420 = vadd.xlane.f32.xlu0 %v3419
        %v3421 = vpop.xlane.xlu0 %3420
        %v3422 = vsel %vm853, %v3418, 0.0
        %3423 = vadd.xlane.f32.xlu0 %v3422
        %v3424 = vpop.xlane.xlu0 %3423
        %v3425 = vrcp.pop %v3421
        %v3426 = vrcp.pop %v3424
        %v3427 = vmul.f32 %v3416, %v3425
        %v3428 = vmul.f32 %v3418, %v3426
        %v3430 = vsel %vm853, %v3427, 0
        %v3433 = vsel %vm853, %v3428, 0
        %3435 = vmatpush.msra.mxu0 0.0
        %3436 = vmatpush.msra.mxu0 0.0
        %3437 = vmatpush.msra.mxu0 0.0
        %3438 = vmatpush.msra.mxu0 0.0
        %3439 = vmatpush.msra.mxu0 0.0
        %3440 = vmatpush.msra.mxu0 0.0
        %3441 = vmatpush.msra.mxu0 0.0
        %3442 = vmatpush.msra.mxu0 0.0
        %3443 = vmatpush.msra.mxu0 0.0
        %3444 = vmatpush.msra.mxu0 0.0
        %3445 = vmatpush.msra.mxu0 0.0
        %3446 = vmatpush.msra.mxu0 0.0
        %3447 = vmatpush.msra.mxu0 0.0
        %3448 = vmatpush.msra.mxu0 0.0
        %3449 = vmatpush.msra.mxu0 %v3368
        %3450 = vmatpush.msra.mxu0 %v3365
        %3451 = vmatmul.f32.gmra.mxu0 %v3430
        %v3452 = vpop.f32.mrf.mxu0
        %v3453 = vadd.f32 0.0, %v3452
        %3454 = vmatmul.f32.gmra.mxu0 %v3433
        %v3455 = vpop.f32.mrf.mxu0
        %v3456 = vadd.f32 0.0, %v3455
        %3457 = vdwg.mxu0
        %v3459 = vsel %vm815, %v3453, 0
        %v3462 = vsel %vm815, %v3456, 0
        %3464 = vmatpush.msra.mxu0 0.0
        %3465 = vmatpush.msra.mxu0 0.0
        %3466 = vmatpush.msra.mxu0 0.0
        %3467 = vmatpush.msra.mxu0 0.0
        %3468 = vmatpush.msra.mxu0 0.0
        %3469 = vmatpush.msra.mxu0 0.0
        %3470 = vmatpush.msra.mxu0 0.0
        %3471 = vmatpush.msra.mxu0 0.0
        %3472 = vmatpush.msra.mxu0 0.0
        %3473 = vmatpush.msra.mxu0 0.0
        %3474 = vmatpush.msra.mxu0 0.0
        %3475 = vmatpush.msra.mxu0 0.0
        %3476 = vmatpush.msra.mxu0 0.0
        %3477 = vmatpush.msra.mxu0 0.0
        %3478 = vmatpush.msra.mxu0 0.0
        %3479 = vmatpush.msra.mxu0 %v1561
        %3480 = vmatmul.f32.gmra.mxu0 %v3459
        %v3481 = vpop.f32.mrf.mxu0
        %v3482 = vadd.f32 0.0, %v3481
        %3483 = vmatmul.f32.gmra.mxu0 %v3462
        %v3484 = vpop.f32.mrf.mxu0
        %v3485 = vadd.f32 0.0, %v3484
        %3486 = vdwg.mxu0
        %v3487 = vadd.f32 %v3299, %v3482
        %v3488 = vadd.f32 %v3300, %v3485
        %v3489 = vadd.f32 %v3487, %v1595
        %v3490 = vadd.f32 %v3488, %v1595
        %v3491 = vadd.f32 %v2677, %v3489
        %v3492 = vadd.f32 %v2678, %v3490
        %v3494 = vsel %vm648, %v3491, 0
        %v3497 = vsel %vm648, %v3492, 0
        %3499 = vmatpush.msra.mxu0 0.0
        %3500 = vmatpush.msra.mxu0 0.0
        %3501 = vmatpush.msra.mxu0 0.0
        %3502 = vmatpush.msra.mxu0 0.0
        %3503 = vmatpush.msra.mxu0 0.0
        %3504 = vmatpush.msra.mxu0 0.0
        %3505 = vmatpush.msra.mxu0 0.0
        %3506 = vmatpush.msra.mxu0 0.0
        %3507 = vmatpush.msra.mxu0 0.0
        %3508 = vmatpush.msra.mxu0 0.0
        %3509 = vmatpush.msra.mxu0 0.0
        %3510 = vmatpush.msra.mxu0 0.0
        %3511 = vmatpush.msra.mxu0 %v1604
        %3512 = vmatpush.msra.mxu0 %v1603
        %3513 = vmatpush.msra.mxu0 %v1602
        %3514 = vmatpush.msra.mxu0 %v1601
        %3515 = vmatmul.f32.gmra.mxu0 %v3494
        %v3516 = vpop.f32.mrf.mxu0
        %v3517 = vadd.f32 %v1607, %v3516
        %3518 = vmatmul.f32.gmra.mxu0 %v3497
        %v3519 = vpop.f32.mrf.mxu0
        %v3520 = vadd.f32 %v1607, %v3519
        %3521 = vdwg.mxu0
        %v3522 = vmul.f32 %v3517, 0.5
        %v3523 = vmul.f32 %v3520, 0.5
        %v3524 = vmul.f32 %v3517, 0.70710677
        %v3525 = vmul.f32 %v3520, 0.70710677
        %v3526 = vmul.f32 %v3524, %v3524
        %v3527 = vmin.f32 16.0, %v3526
        %v3528 = vmul.f32 %v3527, 2.1237322e-06
        %v3529 = vadd.f32 %v3528, 0.00028619796
        %v3530 = vmul.f32 %v3527, %v3529
        %v3531 = vadd.f32 %v3530, 0.0036580483
        %v3532 = vmul.f32 %v3527, %v3531
        %v3533 = vadd.f32 %v3532, 0.05243302
        %v3534 = vmul.f32 %v3527, %v3533
        %v3535 = vadd.f32 %v3534, 0.18741608
        %v3536 = vmul.f32 %v3527, %v3535
        %v3537 = vadd.f32 %v3536, 1.1283791
        %v3538 = vmul.f32 %v3524, %v3537
        %v3539 = vmul.f32 %v3527, 3.8918573e-05
        %v3540 = vadd.f32 %v3539, 0.001143296
        %v3541 = vmul.f32 %v3527, %v3540
        %v3542 = vadd.f32 %v3541, 0.014752088
        %v3543 = vmul.f32 %v3527, %v3542
        %v3544 = vadd.f32 %v3543, 0.112945676
        %v3545 = vmul.f32 %v3527, %v3544
        %v3546 = vadd.f32 %v3545, 0.4994258
        %v3547 = vmul.f32 %v3527, %v3546
        %v3548 = vadd.f32 %v3547, 1.0
        %v3549 = vrcp.pop %v3548
        %v3550 = vmul.f32 %v3548, %v3549
        %v3551 = vsub.f32 1.0, %v3550
        %v3552 = vmul.f32 %v3549, %v3551
        %v3553 = vadd.f32 %v3549, %v3552
        %vm3554 = vweird.f32 %v3548
        %vm3555 = vweird.f32 %v3549
        %vm3556 = vmor %vm3554, %vm3555
        %v3557 = vsel %vm3556, %v3549, %v3553
        %v3558 = vand.u32 2147483647, %v3548
        %vm3559 = vcmp.eq.f32.partialorder %v3558, 8.507059e+37
        %v3560 = vand.u32 %v3548, 2147483648
        %v3561 = vor.u32 1.1754944e-38, %v3560
        %v3562 = vsel %vm3559, %v3561, %v3557
        %v3563 = vmul.f32 %v3538, %v3562
        %v3564 = vmin.f32 %v3563, 1.0
        %v3565 = vmax.f32 %v3564, -1.0
        %v3566 = vmul.f32 %v3525, %v3525
        %v3567 = vmin.f32 16.0, %v3566
        %v3568 = vmul.f32 %v3567, 2.1237322e-06
        %v3569 = vadd.f32 %v3568, 0.00028619796
        %v3570 = vmul.f32 %v3567, %v3569
        %v3571 = vadd.f32 %v3570, 0.0036580483
        %v3572 = vmul.f32 %v3567, %v3571
        %v3573 = vadd.f32 %v3572, 0.05243302
        %v3574 = vmul.f32 %v3567, %v3573
        %v3575 = vadd.f32 %v3574, 0.18741608
        %v3576 = vmul.f32 %v3567, %v3575
        %v3577 = vadd.f32 %v3576, 1.1283791
        %v3578 = vmul.f32 %v3525, %v3577
        %v3579 = vmul.f32 %v3567, 3.8918573e-05
        %v3580 = vadd.f32 %v3579, 0.001143296
        %v3581 = vmul.f32 %v3567, %v3580
        %v3582 = vadd.f32 %v3581, 0.014752088
        %v3583 = vmul.f32 %v3567, %v3582
        %v3584 = vadd.f32 %v3583, 0.112945676
        %v3585 = vmul.f32 %v3567, %v3584
        %v3586 = vadd.f32 %v3585, 0.4994258
        %v3587 = vmul.f32 %v3567, %v3586
        %v3588 = vadd.f32 %v3587, 1.0
        %v3589 = vrcp.pop %v3588
        %v3590 = vmul.f32 %v3588, %v3589
        %v3591 = vsub.f32 1.0, %v3590
        %v3592 = vmul.f32 %v3589, %v3591
        %v3593 = vadd.f32 %v3589, %v3592
        %vm3594 = vweird.f32 %v3588
        %vm3595 = vweird.f32 %v3589
        %vm3596 = vmor %vm3594, %vm3595
        %v3597 = vsel %vm3596, %v3589, %v3593
        %v3598 = vand.u32 2147483647, %v3588
        %vm3599 = vcmp.eq.f32.partialorder %v3598, 8.507059e+37
        %v3600 = vand.u32 %v3588, 2147483648
        %v3601 = vor.u32 1.1754944e-38, %v3600
        %v3602 = vsel %vm3599, %v3601, %v3597
        %v3603 = vmul.f32 %v3578, %v3602
        %v3604 = vmin.f32 %v3603, 1.0
        %v3605 = vmax.f32 %v3604, -1.0
        %v3606 = vadd.f32 %v3565, 1.0
        %v3607 = vadd.f32 %v3605, 1.0
        %v3608 = vmul.f32 %v3522, %v3606
        %v3609 = vmul.f32 %v3523, %v3607
        %3610 = vmatpush.msra.mxu0 %v1741
        %3611 = vmatpush.msra.mxu0 %v1740
        %3612 = vmatpush.msra.mxu0 %v1739
        %3613 = vmatpush.msra.mxu0 %v1738
        %3614 = vmatpush.msra.mxu0 %v1737
        %3615 = vmatpush.msra.mxu0 %v1736
        %3616 = vmatpush.msra.mxu0 %v1735
        %3617 = vmatpush.msra.mxu0 %v1734
        %3618 = vmatpush.msra.mxu0 %v1733
        %3619 = vmatpush.msra.mxu0 %v1732
        %3620 = vmatpush.msra.mxu0 %v1731
        %3621 = vmatpush.msra.mxu0 %v1730
        %3622 = vmatpush.msra.mxu0 %v1729
        %3623 = vmatpush.msra.mxu0 %v1728
        %3624 = vmatpush.msra.mxu0 %v1727
        %3625 = vmatpush.msra.mxu0 %v1726
        %3626 = vmatmul.f32.gmra.mxu0 %v3608
        %v3627 = vpop.f32.mrf.mxu0
        %v3628 = vadd.f32 %v1744, %v3627
        %3629 = vmatmul.f32.gmra.mxu0 %v3609
        %v3630 = vpop.f32.mrf.mxu0
        %v3631 = vadd.f32 %v1744, %v3630
        %3632 = vdwg.mxu0
        %3633 = vst.msk [vmem:[%s635] sm:$0xff] %vm648, %v3628
        %3634 = vst.msk [vmem:[%s635 + $0x8] sm:$0xff] %vm648, %v3631
        %s3635 = sand.u32 %s472, 1
        %s3636 = scalar_lea.sflag [#allocation3], %s3635
        %s3637 = sand.u32 %s472, 1
        %s3638 = smul.addr %s3637, 16
        %s3639 = scalar_lea.vmem [#allocation2], %s3638
        // Predicated region
        $region101: #{transformer_encoder1_forward.1} parent=99 // pred_check
          %p3640 = pneg %p482
        $region102: #{transformer_encoder1_forward.1} parent=99 // pred_check_branch
          %3642 = sbr.rel (%p3640) target = $region104
        $region103: #{transformer_encoder1_forward.1} parent=99 // pred_region
          %3644 = vsyncadd %s3636, 0
          %s3645 = smul.addr %s34, 2
          %s3646 = smul.addr %s3645, 8
          %s3647 = scalar_lea.hbm %s20, %s3646
          %s3648 = sshll.u32 %s3639, 4
          %s3649 = int_to_ptr.vmem [resolvable:$true] %s3648
          %s3650 = sshll.u32 %s3647, 4
          %s3651 = int_to_ptr.hbm [resolvable:$true] %s3650
          %3656 = dma.vmem_to_hbm [thread:$0]  %s3649, 256, %s3651, %s3636, 128, 128, 8
        $region104: #{transformer_encoder1_forward.1} parent=99 // pred_fallthru
          _
      $region100: #{transformer_encoder1_forward.1} parent=5 // pred_fallthru
        _
      %p3657 = scmp.le.s32.totalorder 2, %s29
      // Predicated region
      $region105: #{transformer_encoder1_forward.1} parent=5 // pred_check
        %p3658 = pneg %p3657
      $region106: #{transformer_encoder1_forward.1} parent=5 // pred_check_branch
        %3660 = sbr.rel (%p3658) target = $region108
      $region107: #{transformer_encoder1_forward.1} parent=5 // pred_region
        %s3661 = ssub.s32 %s29, 2
        // Predicated region
        $region109: #{transformer_encoder1_forward.1} parent=107 // pred_check
          %p3662 = pneg %p488
        $region110: #{transformer_encoder1_forward.1} parent=107 // pred_check_branch
          %3664 = sbr.rel (%p3662) target = $region112
        $region111: #{transformer_encoder1_forward.1} parent=107 // pred_region
          %s3665 = sand.u32 %s473, 1
          %s3666 = scalar_lea.sflag [#allocation3], %s3665
          %s3667 = sand.u32 %s473, 1
          %s3668 = smul.addr %s3667, 16
          %s3669 = scalar_lea.vmem [#allocation2], %s3668
          %3671 = dma.done %s3666, 256
        $region112: #{transformer_encoder1_forward.1} parent=107 // pred_fallthru
          _
      $region108: #{transformer_encoder1_forward.1} parent=5 // pred_fallthru
        _
    $region6: #{transformer_encoder1_forward.1} parent=1 // loop_footer
      %s33 = sadd.s32 1, %s29
    $region7: #{transformer_encoder1_forward.1} parent=1 // loop_footer_branch
      %28 = sbr.rel target = $region3
    $region8: #{transformer_encoder1_forward.1} parent=1 // loop_exit
      _
    %3672 = vsyncpa [#allocation3], 1
    %s3673 = scalar_lea.sflag [#allocation3], 1
    %3674 = vsyncpa %s3673, 1

</llo_original>
